<compile_context>
chip_gen: v7x
topology: tpu7x:2x2x1
jax: 0.10.0
libtpu: 0.0.40
codegen_flags: <defaults>
</compile_context>

<pallas_src>
import functools

import jax
import jax.numpy as jnp
from jax.experimental import pallas as pl
from jax.experimental.pallas import tpu as pltpu


# ----------------------------------------------------------------------------
# Fused ViT-encoder + reward-head kernel (one grid step == one batch element)
# ----------------------------------------------------------------------------
def _fused_vit_kernel(xp_ref, pw_ref, add_ref, wqkv_ref, wo_ref, w1_ref, w2_ref,
                      vec_ref, fin_ref, hw_ref, out_ref,
                      *, S, H, M, heads, L, NC, scale):
    f32 = jnp.float32
    bf16 = jnp.bfloat16
    dh = H // heads

    def ln(z, g, b):
        mu = jnp.mean(z, axis=-1, keepdims=True)
        zc = z - mu
        var = jnp.mean(zc * zc, axis=-1, keepdims=True)
        return zc * jax.lax.rsqrt(var + 1e-5) * g + b

    def gelu_tanh(z):
        # TODO(synk): PyTorch nn.GELU defaults to the exact erf GELU; erf is not
        # guaranteed to lower in Mosaic, so the tanh approximation is used here.
        c = 0.7978845608028654  # sqrt(2/pi)
        return 0.5 * z * (1.0 + jnp.tanh(c * (z + 0.044715 * z * z * z)))

    # --- patch embedding: Conv3d(kernel == stride) == matmul over flattened patches ---
    emb = jnp.dot(xp_ref[0], pw_ref[...], preferred_element_type=f32)        # (N, H)
    # row 0 of add_ref = cls token (no pos embed / no conv bias);
    # rows 1..N        = pos_embed + conv bias
    x = jnp.concatenate([jnp.zeros((1, H), f32), emb], axis=0) + add_ref[...]  # (S, H)

    # --- transformer layers (statically unrolled, weights resident in VMEM) ---
    for l in range(L):
        vec = vec_ref[l]                                   # (8, 3H) packed f32 vectors

        # attention block: x = x + Wo @ MHSA(LN1(x))
        h = ln(x, vec[0:1, :H], vec[1:2, :H])
        qkv = (jnp.dot(h.astype(bf16), wqkv_ref[l], preferred_element_type=f32)
               + vec[4:5, :3 * H])                          # (S, 3H)
        heads_out = []
        for hh in range(heads):
            q = qkv[:, hh * dh:(hh + 1) * dh]
            k = qkv[:, H + hh * dh:H + (hh + 1) * dh]
            v = qkv[:, 2 * H + hh * dh:2 * H + (hh + 1) * dh]
            s = jax.lax.dot_general(q.astype(bf16), k.astype(bf16),
                                    (((1,), (1,)), ((), ())),
                                    preferred_element_type=f32) * scale       # (S, S)
            s = s - jnp.max(s, axis=-1, keepdims=True)
            p = jnp.exp(s)
            p = p * pl.reciprocal(jnp.sum(p, axis=-1, keepdims=True), approx=True)
            heads_out.append(jnp.dot(p.astype(bf16), v.astype(bf16),
                                     preferred_element_type=f32))             # (S, dh)
        attn = jnp.concatenate(heads_out, axis=1)                             # (S, H)
        x = x + (jnp.dot(attn.astype(bf16), wo_ref[l], preferred_element_type=f32)
                 + vec[5:6, :H])

        # MLP block: x = x + W2 @ gelu(W1 @ LN2(x))
        h = ln(x, vec[2:3, :H], vec[3:4, :H])
        m1 = (jnp.dot(h.astype(bf16), w1_ref[l], preferred_element_type=f32)
              + vec[6:7, :M])
        m1 = gelu_tanh(m1)
        x = x + (jnp.dot(m1.astype(bf16), w2_ref[l], preferred_element_type=f32)
                 + vec[7:8, :H])

    # --- classification head on the cls token only (post_activation=None) ---
    cls = ln(x[0:1, :], fin_ref[0:1, :], fin_ref[1:2, :])                     # (1, H)
    out = jnp.dot(cls, hw_ref[...], preferred_element_type=f32) + fin_ref[2:3, :NC]
    out_ref[0] = out.astype(out_ref.dtype)


# ----------------------------------------------------------------------------
# Parameter init (deterministic, synthetic; packed for the fused kernel)
# ----------------------------------------------------------------------------
def init_params(key, cfg):
    C = cfg["in_channels"]
    p1, p2, p3 = cfg["patch_size"]
    i1, i2, i3 = cfg["img_size"]
    H, M, L, NC = cfg["hidden"], cfg["mlp"], cfg["layers"], cfg["num_classes"]
    N = (i1 // p1) * (i2 // p2) * (i3 // p3)
    Kp = C * p1 * p2 * p3
    VW = max(3 * H, M)          # packed-vector slab width

    keys = jax.random.split(key, 3 + L)

    def dense(k, shape, scale=0.02):
        return scale * jax.random.normal(k, shape, dtype=jnp.float32)

    def pad_row(v):
        return jnp.pad(v, (0, VW - v.shape[0]))

    patch_w = dense(keys[0], (Kp, H))
    patch_b = jnp.zeros((H,), jnp.float32)
    pos_embed = dense(keys[1], (N, H))
    cls_token = jnp.zeros((1, H), jnp.float32)
    head_w = dense(keys[2], (H, NC))
    head_b = jnp.zeros((NC,), jnp.float32)

    wqkv, wo, w1, w2, vec = [], [], [], [], []
    for i in range(L):
        lk = jax.random.split(keys[3 + i], 4)
        wqkv.append(dense(lk[0], (H, 3 * H)))
        wo.append(dense(lk[1], (H, H)))
        w1.append(dense(lk[2], (H, M)))
        w2.append(dense(lk[3], (M, H)))
        vec.append(jnp.stack([
            pad_row(jnp.ones((H,), jnp.float32)),     # ln1 gamma
            pad_row(jnp.zeros((H,), jnp.float32)),    # ln1 beta
            pad_row(jnp.ones((H,), jnp.float32)),     # ln2 gamma
            pad_row(jnp.zeros((H,), jnp.float32)),    # ln2 beta
            pad_row(jnp.zeros((3 * H,), jnp.float32)),  # qkv bias (q|k|v)
            pad_row(jnp.zeros((H,), jnp.float32)),    # out-proj bias
            pad_row(jnp.zeros((M,), jnp.float32)),    # mlp fc1 bias
            pad_row(jnp.zeros((H,), jnp.float32)),    # mlp fc2 bias
        ]))

    return {
        # MXU operands pre-cast to bf16 (halves DMA + VMEM); accumulation stays f32.
        "patch_w": patch_w.astype(jnp.bfloat16),          # (Kp, H)
        "wqkv": jnp.stack(wqkv).astype(jnp.bfloat16),     # (L, H, 3H)
        "wo": jnp.stack(wo).astype(jnp.bfloat16),         # (L, H, H)
        "w1": jnp.stack(w1).astype(jnp.bfloat16),         # (L, H, M)
        "w2": jnp.stack(w2).astype(jnp.bfloat16),         # (L, M, H)
        # row 0 = cls token; rows 1..N = learnable pos embed + conv bias
        "add_seq": jnp.concatenate([cls_token, pos_embed + patch_b[None, :]], axis=0),
        "vec": jnp.stack(vec),                            # (L, 8, VW) packed vectors
        "fin": jnp.stack([jnp.ones((H,), jnp.float32),    # final LN gamma
                          jnp.zeros((H,), jnp.float32),   # final LN beta
                          jnp.pad(head_b, (0, H - NC)),   # head bias (padded)
                          jnp.zeros((H,), jnp.float32)]), # unused pad row
        "head_w": head_w,                                 # (H, NC) f32
    }


# ----------------------------------------------------------------------------
# Forward pass (== RewardModel.forward): single fused pallas_call
# ----------------------------------------------------------------------------
def reward_model_forward(params, x, *, cfg):
    B, C, D1, D2, D3 = x.shape
    p1, p2, p3 = cfg["patch_size"]
    n1, n2, n3 = D1 // p1, D2 // p2, D3 // p3
    N = n1 * n2 * n3
    S = N + 1
    H, M, L = cfg["hidden"], cfg["mlp"], cfg["layers"]
    heads, NC = cfg["heads"], cfg["num_classes"]
    dh = H // heads
    Kp = C * p1 * p2 * p3
    VW = params["vec"].shape[-1]

    # Patch extraction (Conv3d with stride == kernel) as reshape/transpose glue;
    # the patch-embedding matmul itself runs inside the fused kernel.
    xp = x.reshape(B, C, n1, p1, n2, p2, n3, p3)
    xp = xp.transpose(0, 2, 4, 6, 1, 3, 5, 7).reshape(B, N, Kp).astype(jnp.bfloat16)

    kern = functools.partial(_fused_vit_kernel, S=S, H=H, M=M, heads=heads,
                             L=L, NC=NC, scale=dh ** -0.5)

    out3 = pl.pallas_call(
        kern,
        grid=(B,),
        in_specs=[
            pl.BlockSpec((1, N, Kp), lambda b: (b, 0, 0)),      # xp (per batch)
            pl.BlockSpec((Kp, H), lambda b: (0, 0)),            # patch_w
            pl.BlockSpec((S, H), lambda b: (0, 0)),             # add_seq (cls/pos/bias)
            pl.BlockSpec((L, H, 3 * H), lambda b: (0, 0, 0)),   # wqkv
            pl.BlockSpec((L, H, H), lambda b: (0, 0, 0)),       # wo
            pl.BlockSpec((L, H, M), lambda b: (0, 0, 0)),       # w1
            pl.BlockSpec((L, M, H), lambda b: (0, 0, 0)),       # w2
            pl.BlockSpec((L, 8, VW), lambda b: (0, 0, 0)),      # packed per-layer vectors
            pl.BlockSpec((4, H), lambda b: (0, 0)),             # final LN + head bias
            pl.BlockSpec((H, NC), lambda b: (0, 0)),            # head_w
        ],
        out_specs=pl.BlockSpec((1, 1, NC), lambda b: (b, 0, 0)),
        out_shape=jax.ShapeDtypeStruct((B, 1, NC), jnp.float32),
        compiler_params=pltpu.CompilerParams(
            dimension_semantics=("parallel",)),                 # v7x: 2 TCs split batch
    )(xp, params["patch_w"], params["add_seq"], params["wqkv"], params["wo"],
      params["w1"], params["w2"], params["vec"], params["fin"], params["head_w"])

    return out3.reshape(B, NC)


# ----------------------------------------------------------------------------
if __name__ == "__main__":
    cfg = dict(
        in_channels=3,
        img_size=(32, 32, 8),
        patch_size=(16, 16, 4),
        hidden=64,
        mlp=128,
        layers=2,
        heads=4,
        num_classes=1,
    )

    key = jax.random.PRNGKey(0)
    kx, kp = jax.random.split(key)
    x = jax.random.normal(kx, (2, cfg["in_channels"]) + cfg["img_size"], dtype=jnp.float32)
    params = init_params(kp, cfg)

    fwd = jax.jit(functools.partial(reward_model_forward, cfg=cfg))
    out = fwd(params, x)
    jax.block_until_ready(out)

    assert out.shape == (2, cfg["num_classes"]), out.shape
    assert out.dtype == jnp.float32
    print("KERNEL_OK")
</pallas_src>

<mosaic_0001>
module attributes {stable_mosaic.version = 11 : i64} {
  func.func @_fused_vit_kernel(%arg0: i32, %arg1: memref<1x8x3072xbf16, #tpu.memory_space<vmem>>, %arg2: memref<3072x64xbf16, #tpu.memory_space<vmem>>, %arg3: memref<9x64xf32, #tpu.memory_space<vmem>>, %arg4: memref<2x64x192xbf16, #tpu.memory_space<vmem>>, %arg5: memref<2x64x64xbf16, #tpu.memory_space<vmem>>, %arg6: memref<2x64x128xbf16, #tpu.memory_space<vmem>>, %arg7: memref<2x128x64xbf16, #tpu.memory_space<vmem>>, %arg8: memref<2x8x192xf32, #tpu.memory_space<vmem>>, %arg9: memref<4x64xf32, #tpu.memory_space<vmem>>, %arg10: memref<64x1xf32, #tpu.memory_space<vmem>>, %arg11: memref<1x1x1xf32, #tpu.memory_space<vmem>>) attributes {dimension_semantics = [#tpu.dimension_semantics<parallel>], iteration_bounds = array<i64: 2>, scalar_prefetch = 0 : i64, scratch_operands = 0 : i64, tpu.core_type = #tpu.core_type<tc>, window_params = [{transform_indices = @transform_0, window_bounds = array<i64: 1, 8, 3072>}, {pipeline_mode = #tpu.pipeline_mode<synchronous>, transform_indices = @transform_1, window_bounds = array<i64: 3072, 64>}, {pipeline_mode = #tpu.pipeline_mode<synchronous>, transform_indices = @transform_2, window_bounds = array<i64: 9, 64>}, {pipeline_mode = #tpu.pipeline_mode<synchronous>, transform_indices = @transform_3, window_bounds = array<i64: 2, 64, 192>}, {pipeline_mode = #tpu.pipeline_mode<synchronous>, transform_indices = @transform_4, window_bounds = array<i64: 2, 64, 64>}, {pipeline_mode = #tpu.pipeline_mode<synchronous>, transform_indices = @transform_5, window_bounds = array<i64: 2, 64, 128>}, {pipeline_mode = #tpu.pipeline_mode<synchronous>, transform_indices = @transform_6, window_bounds = array<i64: 2, 128, 64>}, {pipeline_mode = #tpu.pipeline_mode<synchronous>, transform_indices = @transform_7, window_bounds = array<i64: 2, 8, 192>}, {pipeline_mode = #tpu.pipeline_mode<synchronous>, transform_indices = @transform_8, window_bounds = array<i64: 4, 64>}, {pipeline_mode = #tpu.pipeline_mode<synchronous>, transform_indices = @transform_9, window_bounds = array<i64: 64, 1>}, {transform_indices = @transform_10, window_bounds = array<i64: 1, 1, 1>}]} {
    %c0 = arith.constant 0 : index
    %c0_0 = arith.constant 0 : index
    %c0_1 = arith.constant 0 : index
    %0 = vector.load %arg1[%c0, %c0_0, %c0_1] : memref<1x8x3072xbf16, #tpu.memory_space<vmem>>, vector<1x8x3072xbf16>
    %1 = vector.shape_cast %0 : vector<1x8x3072xbf16> to vector<8x3072xbf16>
    %c0_2 = arith.constant 0 : index
    %c0_3 = arith.constant 0 : index
    %2 = vector.load %arg2[%c0_2, %c0_3] : memref<3072x64xbf16, #tpu.memory_space<vmem>>, vector<3072x64xbf16>
    %cst = arith.constant dense<0.000000e+00> : vector<8x64xf32>
    %3 = tpu.matmul %1, %2, %cst {dimension_numbers = #tpu.dot_dimension_numbers<[1], [0], [0], [1], [0, 0, 1, 1], [], []>} : vector<8x3072xbf16>, vector<3072x64xbf16>, vector<8x64xf32> -> vector<8x64xf32>
    %cst_4 = arith.constant 0.000000e+00 : f32
    %4 = vector.broadcast %cst_4 : f32 to vector<1x64xf32>
    %5 = tpu.concatenate %4, %3 in 0 : vector<1x64xf32>, vector<8x64xf32> -> vector<9x64xf32>
    %c0_5 = arith.constant 0 : index
    %c0_6 = arith.constant 0 : index
    %6 = vector.load %arg3[%c0_5, %c0_6] : memref<9x64xf32, #tpu.memory_space<vmem>>, vector<9x64xf32>
    %7 = arith.addf %5, %6 : vector<9x64xf32>
    %c0_7 = arith.constant 0 : index
    %c0_8 = arith.constant 0 : index
    %c0_9 = arith.constant 0 : index
    %8 = vector.load %arg8[%c0_7, %c0_8, %c0_9] : memref<2x8x192xf32, #tpu.memory_space<vmem>>, vector<1x8x192xf32>
    %9 = vector.shape_cast %8 : vector<1x8x192xf32> to vector<8x192xf32>
    %10 = vector.extract_strided_slice %9 {offsets = [0, 0], sizes = [1, 64], strides = [1, 1]} : vector<8x192xf32> to vector<1x64xf32>
    %11 = vector.extract_strided_slice %9 {offsets = [1, 0], sizes = [1, 64], strides = [1, 1]} : vector<8x192xf32> to vector<1x64xf32>
    %cst_10 = arith.constant dense<0.000000e+00> : vector<9xf32>
    %12 = vector.multi_reduction <add>, %7, %cst_10 [1] : vector<9x64xf32> to vector<9xf32>
    %13 = vector.shape_cast %12 : vector<9xf32> to vector<9x1xf32>
    %cst_11 = arith.constant 6.400000e+01 : f32
    %14 = vector.broadcast %cst_11 : f32 to vector<9x1xf32>
    %15 = arith.divf %13, %14 : vector<9x1xf32>
    %16 = vector.broadcast %15 : vector<9x1xf32> to vector<9x64xf32>
    %17 = arith.subf %7, %16 : vector<9x64xf32>
    %18 = arith.mulf %17, %17 : vector<9x64xf32>
    %cst_12 = arith.constant dense<0.000000e+00> : vector<9xf32>
    %19 = vector.multi_reduction <add>, %18, %cst_12 [1] : vector<9x64xf32> to vector<9xf32>
    %20 = vector.shape_cast %19 : vector<9xf32> to vector<9x1xf32>
    %cst_13 = arith.constant 6.400000e+01 : f32
    %21 = vector.broadcast %cst_13 : f32 to vector<9x1xf32>
    %22 = arith.divf %20, %21 : vector<9x1xf32>
    %cst_14 = arith.constant 9.99999974E-6 : f32
    %23 = vector.broadcast %cst_14 : f32 to vector<9x1xf32>
    %24 = arith.addf %22, %23 : vector<9x1xf32>
    %25 = math.rsqrt %24 : vector<9x1xf32>
    %26 = vector.broadcast %25 : vector<9x1xf32> to vector<9x64xf32>
    %27 = arith.mulf %17, %26 : vector<9x64xf32>
    %28 = vector.broadcast %10 : vector<1x64xf32> to vector<9x64xf32>
    %29 = arith.mulf %27, %28 : vector<9x64xf32>
    %30 = vector.broadcast %11 : vector<1x64xf32> to vector<9x64xf32>
    %31 = arith.addf %29, %30 : vector<9x64xf32>
    %32 = arith.truncf %31 : vector<9x64xf32> to vector<9x64xbf16>
    %c0_15 = arith.constant 0 : index
    %c0_16 = arith.constant 0 : index
    %c0_17 = arith.constant 0 : index
    %33 = vector.load %arg4[%c0_15, %c0_16, %c0_17] : memref<2x64x192xbf16, #tpu.memory_space<vmem>>, vector<1x64x192xbf16>
    %34 = vector.shape_cast %33 : vector<1x64x192xbf16> to vector<64x192xbf16>
    %cst_18 = arith.constant dense<0.000000e+00> : vector<9x192xf32>
    %35 = tpu.matmul %32, %34, %cst_18 {dimension_numbers = #tpu.dot_dimension_numbers<[1], [0], [0], [1], [0, 0, 1, 1], [], []>} : vector<9x64xbf16>, vector<64x192xbf16>, vector<9x192xf32> -> vector<9x192xf32>
    %36 = vector.extract_strided_slice %9 {offsets = [4, 0], sizes = [1, 192], strides = [1, 1]} : vector<8x192xf32> to vector<1x192xf32>
    %37 = vector.broadcast %36 : vector<1x192xf32> to vector<9x192xf32>
    %38 = arith.addf %35, %37 : vector<9x192xf32>
    %39 = vector.extract_strided_slice %38 {offsets = [0, 0], sizes = [9, 16], strides = [1, 1]} : vector<9x192xf32> to vector<9x16xf32>
    %40 = vector.extract_strided_slice %38 {offsets = [0, 64], sizes = [9, 16], strides = [1, 1]} : vector<9x192xf32> to vector<9x16xf32>
    %41 = vector.extract_strided_slice %38 {offsets = [0, 128], sizes = [9, 16], strides = [1, 1]} : vector<9x192xf32> to vector<9x16xf32>
    %42 = arith.truncf %39 : vector<9x16xf32> to vector<9x16xbf16>
    %43 = arith.truncf %40 : vector<9x16xf32> to vector<9x16xbf16>
    %cst_19 = arith.constant dense<0.000000e+00> : vector<9x9xf32>
    %44 = tpu.matmul %42, %43, %cst_19 {dimension_numbers = #tpu.dot_dimension_numbers<[1], [1], [0], [0], [0, 0, 1, 0], [], []>} : vector<9x16xbf16>, vector<9x16xbf16>, vector<9x9xf32> -> vector<9x9xf32>
    %cst_20 = arith.constant 2.500000e-01 : f32
    %45 = vector.broadcast %cst_20 : f32 to vector<9x9xf32>
    %46 = arith.mulf %44, %45 : vector<9x9xf32>
    %cst_21 = arith.constant dense<0xFF800000> : vector<9xf32>
    %47 = vector.multi_reduction <maximumf>, %46, %cst_21 [1] : vector<9x9xf32> to vector<9xf32>
    %48 = vector.shape_cast %47 : vector<9xf32> to vector<9x1xf32>
    %49 = vector.broadcast %48 : vector<9x1xf32> to vector<9x9xf32>
    %50 = arith.subf %46, %49 : vector<9x9xf32>
    %51 = math.exp %50 : vector<9x9xf32>
    %cst_22 = arith.constant dense<0.000000e+00> : vector<9xf32>
    %52 = vector.multi_reduction <add>, %51, %cst_22 [1] : vector<9x9xf32> to vector<9xf32>
    %53 = vector.shape_cast %52 : vector<9xf32> to vector<9x1xf32>
    %54 = tpu.reciprocal %53 {approx = true} : vector<9x1xf32> -> vector<9x1xf32>
    %55 = vector.broadcast %54 : vector<9x1xf32> to vector<9x9xf32>
    %56 = arith.mulf %51, %55 : vector<9x9xf32>
    %57 = arith.truncf %56 : vector<9x9xf32> to vector<9x9xbf16>
    %58 = arith.truncf %41 : vector<9x16xf32> to vector<9x16xbf16>
    %cst_23 = arith.constant dense<0.000000e+00> : vector<9x16xf32>
    %59 = tpu.matmul %57, %58, %cst_23 {dimension_numbers = #tpu.dot_dimension_numbers<[1], [0], [0], [1], [0, 0, 1, 1], [], []>} : vector<9x9xbf16>, vector<9x16xbf16>, vector<9x16xf32> -> vector<9x16xf32>
    %60 = vector.extract_strided_slice %38 {offsets = [0, 16], sizes = [9, 16], strides = [1, 1]} : vector<9x192xf32> to vector<9x16xf32>
    %61 = vector.extract_strided_slice %38 {offsets = [0, 80], sizes = [9, 16], strides = [1, 1]} : vector<9x192xf32> to vector<9x16xf32>
    %62 = vector.extract_strided_slice %38 {offsets = [0, 144], sizes = [9, 16], strides = [1, 1]} : vector<9x192xf32> to vector<9x16xf32>
    %63 = arith.truncf %60 : vector<9x16xf32> to vector<9x16xbf16>
    %64 = arith.truncf %61 : vector<9x16xf32> to vector<9x16xbf16>
    %cst_24 = arith.constant dense<0.000000e+00> : vector<9x9xf32>
    %65 = tpu.matmul %63, %64, %cst_24 {dimension_numbers = #tpu.dot_dimension_numbers<[1], [1], [0], [0], [0, 0, 1, 0], [], []>} : vector<9x16xbf16>, vector<9x16xbf16>, vector<9x9xf32> -> vector<9x9xf32>
    %cst_25 = arith.constant 2.500000e-01 : f32
    %66 = vector.broadcast %cst_25 : f32 to vector<9x9xf32>
    %67 = arith.mulf %65, %66 : vector<9x9xf32>
    %cst_26 = arith.constant dense<0xFF800000> : vector<9xf32>
    %68 = vector.multi_reduction <maximumf>, %67, %cst_26 [1] : vector<9x9xf32> to vector<9xf32>
    %69 = vector.shape_cast %68 : vector<9xf32> to vector<9x1xf32>
    %70 = vector.broadcast %69 : vector<9x1xf32> to vector<9x9xf32>
    %71 = arith.subf %67, %70 : vector<9x9xf32>
    %72 = math.exp %71 : vector<9x9xf32>
    %cst_27 = arith.constant dense<0.000000e+00> : vector<9xf32>
    %73 = vector.multi_reduction <add>, %72, %cst_27 [1] : vector<9x9xf32> to vector<9xf32>
    %74 = vector.shape_cast %73 : vector<9xf32> to vector<9x1xf32>
    %75 = tpu.reciprocal %74 {approx = true} : vector<9x1xf32> -> vector<9x1xf32>
    %76 = vector.broadcast %75 : vector<9x1xf32> to vector<9x9xf32>
    %77 = arith.mulf %72, %76 : vector<9x9xf32>
    %78 = arith.truncf %77 : vector<9x9xf32> to vector<9x9xbf16>
    %79 = arith.truncf %62 : vector<9x16xf32> to vector<9x16xbf16>
    %cst_28 = arith.constant dense<0.000000e+00> : vector<9x16xf32>
    %80 = tpu.matmul %78, %79, %cst_28 {dimension_numbers = #tpu.dot_dimension_numbers<[1], [0], [0], [1], [0, 0, 1, 1], [], []>} : vector<9x9xbf16>, vector<9x16xbf16>, vector<9x16xf32> -> vector<9x16xf32>
    %81 = vector.extract_strided_slice %38 {offsets = [0, 32], sizes = [9, 16], strides = [1, 1]} : vector<9x192xf32> to vector<9x16xf32>
    %82 = vector.extract_strided_slice %38 {offsets = [0, 96], sizes = [9, 16], strides = [1, 1]} : vector<9x192xf32> to vector<9x16xf32>
    %83 = vector.extract_strided_slice %38 {offsets = [0, 160], sizes = [9, 16], strides = [1, 1]} : vector<9x192xf32> to vector<9x16xf32>
    %84 = arith.truncf %81 : vector<9x16xf32> to vector<9x16xbf16>
    %85 = arith.truncf %82 : vector<9x16xf32> to vector<9x16xbf16>
    %cst_29 = arith.constant dense<0.000000e+00> : vector<9x9xf32>
    %86 = tpu.matmul %84, %85, %cst_29 {dimension_numbers = #tpu.dot_dimension_numbers<[1], [1], [0], [0], [0, 0, 1, 0], [], []>} : vector<9x16xbf16>, vector<9x16xbf16>, vector<9x9xf32> -> vector<9x9xf32>
    %cst_30 = arith.constant 2.500000e-01 : f32
    %87 = vector.broadcast %cst_30 : f32 to vector<9x9xf32>
    %88 = arith.mulf %86, %87 : vector<9x9xf32>
    %cst_31 = arith.constant dense<0xFF800000> : vector<9xf32>
    %89 = vector.multi_reduction <maximumf>, %88, %cst_31 [1] : vector<9x9xf32> to vector<9xf32>
    %90 = vector.shape_cast %89 : vector<9xf32> to vector<9x1xf32>
    %91 = vector.broadcast %90 : vector<9x1xf32> to vector<9x9xf32>
    %92 = arith.subf %88, %91 : vector<9x9xf32>
    %93 = math.exp %92 : vector<9x9xf32>
    %cst_32 = arith.constant dense<0.000000e+00> : vector<9xf32>
    %94 = vector.multi_reduction <add>, %93, %cst_32 [1] : vector<9x9xf32> to vector<9xf32>
    %95 = vector.shape_cast %94 : vector<9xf32> to vector<9x1xf32>
    %96 = tpu.reciprocal %95 {approx = true} : vector<9x1xf32> -> vector<9x1xf32>
    %97 = vector.broadcast %96 : vector<9x1xf32> to vector<9x9xf32>
    %98 = arith.mulf %93, %97 : vector<9x9xf32>
    %99 = arith.truncf %98 : vector<9x9xf32> to vector<9x9xbf16>
    %100 = arith.truncf %83 : vector<9x16xf32> to vector<9x16xbf16>
    %cst_33 = arith.constant dense<0.000000e+00> : vector<9x16xf32>
    %101 = tpu.matmul %99, %100, %cst_33 {dimension_numbers = #tpu.dot_dimension_numbers<[1], [0], [0], [1], [0, 0, 1, 1], [], []>} : vector<9x9xbf16>, vector<9x16xbf16>, vector<9x16xf32> -> vector<9x16xf32>
    %102 = vector.extract_strided_slice %38 {offsets = [0, 48], sizes = [9, 16], strides = [1, 1]} : vector<9x192xf32> to vector<9x16xf32>
    %103 = vector.extract_strided_slice %38 {offsets = [0, 112], sizes = [9, 16], strides = [1, 1]} : vector<9x192xf32> to vector<9x16xf32>
    %104 = vector.extract_strided_slice %38 {offsets = [0, 176], sizes = [9, 16], strides = [1, 1]} : vector<9x192xf32> to vector<9x16xf32>
    %105 = arith.truncf %102 : vector<9x16xf32> to vector<9x16xbf16>
    %106 = arith.truncf %103 : vector<9x16xf32> to vector<9x16xbf16>
    %cst_34 = arith.constant dense<0.000000e+00> : vector<9x9xf32>
    %107 = tpu.matmul %105, %106, %cst_34 {dimension_numbers = #tpu.dot_dimension_numbers<[1], [1], [0], [0], [0, 0, 1, 0], [], []>} : vector<9x16xbf16>, vector<9x16xbf16>, vector<9x9xf32> -> vector<9x9xf32>
    %cst_35 = arith.constant 2.500000e-01 : f32
    %108 = vector.broadcast %cst_35 : f32 to vector<9x9xf32>
    %109 = arith.mulf %107, %108 : vector<9x9xf32>
    %cst_36 = arith.constant dense<0xFF800000> : vector<9xf32>
    %110 = vector.multi_reduction <maximumf>, %109, %cst_36 [1] : vector<9x9xf32> to vector<9xf32>
    %111 = vector.shape_cast %110 : vector<9xf32> to vector<9x1xf32>
    %112 = vector.broadcast %111 : vector<9x1xf32> to vector<9x9xf32>
    %113 = arith.subf %109, %112 : vector<9x9xf32>
    %114 = math.exp %113 : vector<9x9xf32>
    %cst_37 = arith.constant dense<0.000000e+00> : vector<9xf32>
    %115 = vector.multi_reduction <add>, %114, %cst_37 [1] : vector<9x9xf32> to vector<9xf32>
    %116 = vector.shape_cast %115 : vector<9xf32> to vector<9x1xf32>
    %117 = tpu.reciprocal %116 {approx = true} : vector<9x1xf32> -> vector<9x1xf32>
    %118 = vector.broadcast %117 : vector<9x1xf32> to vector<9x9xf32>
    %119 = arith.mulf %114, %118 : vector<9x9xf32>
    %120 = arith.truncf %119 : vector<9x9xf32> to vector<9x9xbf16>
    %121 = arith.truncf %104 : vector<9x16xf32> to vector<9x16xbf16>
    %cst_38 = arith.constant dense<0.000000e+00> : vector<9x16xf32>
    %122 = tpu.matmul %120, %121, %cst_38 {dimension_numbers = #tpu.dot_dimension_numbers<[1], [0], [0], [1], [0, 0, 1, 1], [], []>} : vector<9x9xbf16>, vector<9x16xbf16>, vector<9x16xf32> -> vector<9x16xf32>
    %123 = tpu.concatenate %59, %80, %101, %122 in 1 : vector<9x16xf32>, vector<9x16xf32>, vector<9x16xf32>, vector<9x16xf32> -> vector<9x64xf32>
    %124 = arith.truncf %123 : vector<9x64xf32> to vector<9x64xbf16>
    %c0_39 = arith.constant 0 : index
    %c0_40 = arith.constant 0 : index
    %c0_41 = arith.constant 0 : index
    %125 = vector.load %arg5[%c0_39, %c0_40, %c0_41] : memref<2x64x64xbf16, #tpu.memory_space<vmem>>, vector<1x64x64xbf16>
    %126 = vector.shape_cast %125 : vector<1x64x64xbf16> to vector<64x64xbf16>
    %cst_42 = arith.constant dense<0.000000e+00> : vector<9x64xf32>
    %127 = tpu.matmul %124, %126, %cst_42 {dimension_numbers = #tpu.dot_dimension_numbers<[1], [0], [0], [1], [0, 0, 1, 1], [], []>} : vector<9x64xbf16>, vector<64x64xbf16>, vector<9x64xf32> -> vector<9x64xf32>
    %128 = vector.extract_strided_slice %9 {offsets = [5, 0], sizes = [1, 64], strides = [1, 1]} : vector<8x192xf32> to vector<1x64xf32>
    %129 = vector.broadcast %128 : vector<1x64xf32> to vector<9x64xf32>
    %130 = arith.addf %127, %129 : vector<9x64xf32>
    %131 = arith.addf %7, %130 : vector<9x64xf32>
    %132 = vector.extract_strided_slice %9 {offsets = [2, 0], sizes = [1, 64], strides = [1, 1]} : vector<8x192xf32> to vector<1x64xf32>
    %133 = vector.extract_strided_slice %9 {offsets = [3, 0], sizes = [1, 64], strides = [1, 1]} : vector<8x192xf32> to vector<1x64xf32>
    %cst_43 = arith.constant dense<0.000000e+00> : vector<9xf32>
    %134 = vector.multi_reduction <add>, %131, %cst_43 [1] : vector<9x64xf32> to vector<9xf32>
    %135 = vector.shape_cast %134 : vector<9xf32> to vector<9x1xf32>
    %cst_44 = arith.constant 6.400000e+01 : f32
    %136 = vector.broadcast %cst_44 : f32 to vector<9x1xf32>
    %137 = arith.divf %135, %136 : vector<9x1xf32>
    %138 = vector.broadcast %137 : vector<9x1xf32> to vector<9x64xf32>
    %139 = arith.subf %131, %138 : vector<9x64xf32>
    %140 = arith.mulf %139, %139 : vector<9x64xf32>
    %cst_45 = arith.constant dense<0.000000e+00> : vector<9xf32>
    %141 = vector.multi_reduction <add>, %140, %cst_45 [1] : vector<9x64xf32> to vector<9xf32>
    %142 = vector.shape_cast %141 : vector<9xf32> to vector<9x1xf32>
    %cst_46 = arith.constant 6.400000e+01 : f32
    %143 = vector.broadcast %cst_46 : f32 to vector<9x1xf32>
    %144 = arith.divf %142, %143 : vector<9x1xf32>
    %cst_47 = arith.constant 9.99999974E-6 : f32
    %145 = vector.broadcast %cst_47 : f32 to vector<9x1xf32>
    %146 = arith.addf %144, %145 : vector<9x1xf32>
    %147 = math.rsqrt %146 : vector<9x1xf32>
    %148 = vector.broadcast %147 : vector<9x1xf32> to vector<9x64xf32>
    %149 = arith.mulf %139, %148 : vector<9x64xf32>
    %150 = vector.broadcast %132 : vector<1x64xf32> to vector<9x64xf32>
    %151 = arith.mulf %149, %150 : vector<9x64xf32>
    %152 = vector.broadcast %133 : vector<1x64xf32> to vector<9x64xf32>
    %153 = arith.addf %151, %152 : vector<9x64xf32>
    %154 = arith.truncf %153 : vector<9x64xf32> to vector<9x64xbf16>
    %c0_48 = arith.constant 0 : index
    %c0_49 = arith.constant 0 : index
    %c0_50 = arith.constant 0 : index
    %155 = vector.load %arg6[%c0_48, %c0_49, %c0_50] : memref<2x64x128xbf16, #tpu.memory_space<vmem>>, vector<1x64x128xbf16>
    %156 = vector.shape_cast %155 : vector<1x64x128xbf16> to vector<64x128xbf16>
    %cst_51 = arith.constant dense<0.000000e+00> : vector<9x128xf32>
    %157 = tpu.matmul %154, %156, %cst_51 {dimension_numbers = #tpu.dot_dimension_numbers<[1], [0], [0], [1], [0, 0, 1, 1], [], []>} : vector<9x64xbf16>, vector<64x128xbf16>, vector<9x128xf32> -> vector<9x128xf32>
    %158 = vector.extract_strided_slice %9 {offsets = [6, 0], sizes = [1, 128], strides = [1, 1]} : vector<8x192xf32> to vector<1x128xf32>
    %159 = vector.broadcast %158 : vector<1x128xf32> to vector<9x128xf32>
    %160 = arith.addf %157, %159 : vector<9x128xf32>
    %cst_52 = arith.constant 5.000000e-01 : f32
    %161 = vector.broadcast %cst_52 : f32 to vector<9x128xf32>
    %162 = arith.mulf %161, %160 : vector<9x128xf32>
    %cst_53 = arith.constant 4.471500e-02 : f32
    %163 = vector.broadcast %cst_53 : f32 to vector<9x128xf32>
    %164 = arith.mulf %163, %160 : vector<9x128xf32>
    %165 = arith.mulf %164, %160 : vector<9x128xf32>
    %166 = arith.mulf %165, %160 : vector<9x128xf32>
    %167 = arith.addf %160, %166 : vector<9x128xf32>
    %cst_54 = arith.constant 0.797884583 : f32
    %168 = vector.broadcast %cst_54 : f32 to vector<9x128xf32>
    %169 = arith.mulf %168, %167 : vector<9x128xf32>
    %170 = math.tanh %169 : vector<9x128xf32>
    %cst_55 = arith.constant 1.000000e+00 : f32
    %171 = vector.broadcast %cst_55 : f32 to vector<9x128xf32>
    %172 = arith.addf %171, %170 : vector<9x128xf32>
    %173 = arith.mulf %162, %172 : vector<9x128xf32>
    %174 = arith.truncf %173 : vector<9x128xf32> to vector<9x128xbf16>
    %c0_56 = arith.constant 0 : index
    %c0_57 = arith.constant 0 : index
    %c0_58 = arith.constant 0 : index
    %175 = vector.load %arg7[%c0_56, %c0_57, %c0_58] : memref<2x128x64xbf16, #tpu.memory_space<vmem>>, vector<1x128x64xbf16>
    %176 = vector.shape_cast %175 : vector<1x128x64xbf16> to vector<128x64xbf16>
    %cst_59 = arith.constant dense<0.000000e+00> : vector<9x64xf32>
    %177 = tpu.matmul %174, %176, %cst_59 {dimension_numbers = #tpu.dot_dimension_numbers<[1], [0], [0], [1], [0, 0, 1, 1], [], []>} : vector<9x128xbf16>, vector<128x64xbf16>, vector<9x64xf32> -> vector<9x64xf32>
    %178 = vector.extract_strided_slice %9 {offsets = [7, 0], sizes = [1, 64], strides = [1, 1]} : vector<8x192xf32> to vector<1x64xf32>
    %179 = vector.broadcast %178 : vector<1x64xf32> to vector<9x64xf32>
    %180 = arith.addf %177, %179 : vector<9x64xf32>
    %181 = arith.addf %131, %180 : vector<9x64xf32>
    %c1 = arith.constant 1 : index
    %c0_60 = arith.constant 0 : index
    %c0_61 = arith.constant 0 : index
    %182 = vector.load %arg8[%c1, %c0_60, %c0_61] : memref<2x8x192xf32, #tpu.memory_space<vmem>>, vector<1x8x192xf32>
    %183 = vector.shape_cast %182 : vector<1x8x192xf32> to vector<8x192xf32>
    %184 = vector.extract_strided_slice %183 {offsets = [0, 0], sizes = [1, 64], strides = [1, 1]} : vector<8x192xf32> to vector<1x64xf32>
    %185 = vector.extract_strided_slice %183 {offsets = [1, 0], sizes = [1, 64], strides = [1, 1]} : vector<8x192xf32> to vector<1x64xf32>
    %cst_62 = arith.constant dense<0.000000e+00> : vector<9xf32>
    %186 = vector.multi_reduction <add>, %181, %cst_62 [1] : vector<9x64xf32> to vector<9xf32>
    %187 = vector.shape_cast %186 : vector<9xf32> to vector<9x1xf32>
    %cst_63 = arith.constant 6.400000e+01 : f32
    %188 = vector.broadcast %cst_63 : f32 to vector<9x1xf32>
    %189 = arith.divf %187, %188 : vector<9x1xf32>
    %190 = vector.broadcast %189 : vector<9x1xf32> to vector<9x64xf32>
    %191 = arith.subf %181, %190 : vector<9x64xf32>
    %192 = arith.mulf %191, %191 : vector<9x64xf32>
    %cst_64 = arith.constant dense<0.000000e+00> : vector<9xf32>
    %193 = vector.multi_reduction <add>, %192, %cst_64 [1] : vector<9x64xf32> to vector<9xf32>
    %194 = vector.shape_cast %193 : vector<9xf32> to vector<9x1xf32>
    %cst_65 = arith.constant 6.400000e+01 : f32
    %195 = vector.broadcast %cst_65 : f32 to vector<9x1xf32>
    %196 = arith.divf %194, %195 : vector<9x1xf32>
    %cst_66 = arith.constant 9.99999974E-6 : f32
    %197 = vector.broadcast %cst_66 : f32 to vector<9x1xf32>
    %198 = arith.addf %196, %197 : vector<9x1xf32>
    %199 = math.rsqrt %198 : vector<9x1xf32>
    %200 = vector.broadcast %199 : vector<9x1xf32> to vector<9x64xf32>
    %201 = arith.mulf %191, %200 : vector<9x64xf32>
    %202 = vector.broadcast %184 : vector<1x64xf32> to vector<9x64xf32>
    %203 = arith.mulf %201, %202 : vector<9x64xf32>
    %204 = vector.broadcast %185 : vector<1x64xf32> to vector<9x64xf32>
    %205 = arith.addf %203, %204 : vector<9x64xf32>
    %206 = arith.truncf %205 : vector<9x64xf32> to vector<9x64xbf16>
    %c1_67 = arith.constant 1 : index
    %c0_68 = arith.constant 0 : index
    %c0_69 = arith.constant 0 : index
    %207 = vector.load %arg4[%c1_67, %c0_68, %c0_69] : memref<2x64x192xbf16, #tpu.memory_space<vmem>>, vector<1x64x192xbf16>
    %208 = vector.shape_cast %207 : vector<1x64x192xbf16> to vector<64x192xbf16>
    %cst_70 = arith.constant dense<0.000000e+00> : vector<9x192xf32>
    %209 = tpu.matmul %206, %208, %cst_70 {dimension_numbers = #tpu.dot_dimension_numbers<[1], [0], [0], [1], [0, 0, 1, 1], [], []>} : vector<9x64xbf16>, vector<64x192xbf16>, vector<9x192xf32> -> vector<9x192xf32>
    %210 = vector.extract_strided_slice %183 {offsets = [4, 0], sizes = [1, 192], strides = [1, 1]} : vector<8x192xf32> to vector<1x192xf32>
    %211 = vector.broadcast %210 : vector<1x192xf32> to vector<9x192xf32>
    %212 = arith.addf %209, %211 : vector<9x192xf32>
    %213 = vector.extract_strided_slice %212 {offsets = [0, 0], sizes = [9, 16], strides = [1, 1]} : vector<9x192xf32> to vector<9x16xf32>
    %214 = vector.extract_strided_slice %212 {offsets = [0, 64], sizes = [9, 16], strides = [1, 1]} : vector<9x192xf32> to vector<9x16xf32>
    %215 = vector.extract_strided_slice %212 {offsets = [0, 128], sizes = [9, 16], strides = [1, 1]} : vector<9x192xf32> to vector<9x16xf32>
    %216 = arith.truncf %213 : vector<9x16xf32> to vector<9x16xbf16>
    %217 = arith.truncf %214 : vector<9x16xf32> to vector<9x16xbf16>
    %cst_71 = arith.constant dense<0.000000e+00> : vector<9x9xf32>
    %218 = tpu.matmul %216, %217, %cst_71 {dimension_numbers = #tpu.dot_dimension_numbers<[1], [1], [0], [0], [0, 0, 1, 0], [], []>} : vector<9x16xbf16>, vector<9x16xbf16>, vector<9x9xf32> -> vector<9x9xf32>
    %cst_72 = arith.constant 2.500000e-01 : f32
    %219 = vector.broadcast %cst_72 : f32 to vector<9x9xf32>
    %220 = arith.mulf %218, %219 : vector<9x9xf32>
    %cst_73 = arith.constant dense<0xFF800000> : vector<9xf32>
    %221 = vector.multi_reduction <maximumf>, %220, %cst_73 [1] : vector<9x9xf32> to vector<9xf32>
    %222 = vector.shape_cast %221 : vector<9xf32> to vector<9x1xf32>
    %223 = vector.broadcast %222 : vector<9x1xf32> to vector<9x9xf32>
    %224 = arith.subf %220, %223 : vector<9x9xf32>
    %225 = math.exp %224 : vector<9x9xf32>
    %cst_74 = arith.constant dense<0.000000e+00> : vector<9xf32>
    %226 = vector.multi_reduction <add>, %225, %cst_74 [1] : vector<9x9xf32> to vector<9xf32>
    %227 = vector.shape_cast %226 : vector<9xf32> to vector<9x1xf32>
    %228 = tpu.reciprocal %227 {approx = true} : vector<9x1xf32> -> vector<9x1xf32>
    %229 = vector.broadcast %228 : vector<9x1xf32> to vector<9x9xf32>
    %230 = arith.mulf %225, %229 : vector<9x9xf32>
    %231 = arith.truncf %230 : vector<9x9xf32> to vector<9x9xbf16>
    %232 = arith.truncf %215 : vector<9x16xf32> to vector<9x16xbf16>
    %cst_75 = arith.constant dense<0.000000e+00> : vector<9x16xf32>
    %233 = tpu.matmul %231, %232, %cst_75 {dimension_numbers = #tpu.dot_dimension_numbers<[1], [0], [0], [1], [0, 0, 1, 1], [], []>} : vector<9x9xbf16>, vector<9x16xbf16>, vector<9x16xf32> -> vector<9x16xf32>
    %234 = vector.extract_strided_slice %212 {offsets = [0, 16], sizes = [9, 16], strides = [1, 1]} : vector<9x192xf32> to vector<9x16xf32>
    %235 = vector.extract_strided_slice %212 {offsets = [0, 80], sizes = [9, 16], strides = [1, 1]} : vector<9x192xf32> to vector<9x16xf32>
    %236 = vector.extract_strided_slice %212 {offsets = [0, 144], sizes = [9, 16], strides = [1, 1]} : vector<9x192xf32> to vector<9x16xf32>
    %237 = arith.truncf %234 : vector<9x16xf32> to vector<9x16xbf16>
    %238 = arith.truncf %235 : vector<9x16xf32> to vector<9x16xbf16>
    %cst_76 = arith.constant dense<0.000000e+00> : vector<9x9xf32>
    %239 = tpu.matmul %237, %238, %cst_76 {dimension_numbers = #tpu.dot_dimension_numbers<[1], [1], [0], [0], [0, 0, 1, 0], [], []>} : vector<9x16xbf16>, vector<9x16xbf16>, vector<9x9xf32> -> vector<9x9xf32>
    %cst_77 = arith.constant 2.500000e-01 : f32
    %240 = vector.broadcast %cst_77 : f32 to vector<9x9xf32>
    %241 = arith.mulf %239, %240 : vector<9x9xf32>
    %cst_78 = arith.constant dense<0xFF800000> : vector<9xf32>
    %242 = vector.multi_reduction <maximumf>, %241, %cst_78 [1] : vector<9x9xf32> to vector<9xf32>
    %243 = vector.shape_cast %242 : vector<9xf32> to vector<9x1xf32>
    %244 = vector.broadcast %243 : vector<9x1xf32> to vector<9x9xf32>
    %245 = arith.subf %241, %244 : vector<9x9xf32>
    %246 = math.exp %245 : vector<9x9xf32>
    %cst_79 = arith.constant dense<0.000000e+00> : vector<9xf32>
    %247 = vector.multi_reduction <add>, %246, %cst_79 [1] : vector<9x9xf32> to vector<9xf32>
    %248 = vector.shape_cast %247 : vector<9xf32> to vector<9x1xf32>
    %249 = tpu.reciprocal %248 {approx = true} : vector<9x1xf32> -> vector<9x1xf32>
    %250 = vector.broadcast %249 : vector<9x1xf32> to vector<9x9xf32>
    %251 = arith.mulf %246, %250 : vector<9x9xf32>
    %252 = arith.truncf %251 : vector<9x9xf32> to vector<9x9xbf16>
    %253 = arith.truncf %236 : vector<9x16xf32> to vector<9x16xbf16>
    %cst_80 = arith.constant dense<0.000000e+00> : vector<9x16xf32>
    %254 = tpu.matmul %252, %253, %cst_80 {dimension_numbers = #tpu.dot_dimension_numbers<[1], [0], [0], [1], [0, 0, 1, 1], [], []>} : vector<9x9xbf16>, vector<9x16xbf16>, vector<9x16xf32> -> vector<9x16xf32>
    %255 = vector.extract_strided_slice %212 {offsets = [0, 32], sizes = [9, 16], strides = [1, 1]} : vector<9x192xf32> to vector<9x16xf32>
    %256 = vector.extract_strided_slice %212 {offsets = [0, 96], sizes = [9, 16], strides = [1, 1]} : vector<9x192xf32> to vector<9x16xf32>
    %257 = vector.extract_strided_slice %212 {offsets = [0, 160], sizes = [9, 16], strides = [1, 1]} : vector<9x192xf32> to vector<9x16xf32>
    %258 = arith.truncf %255 : vector<9x16xf32> to vector<9x16xbf16>
    %259 = arith.truncf %256 : vector<9x16xf32> to vector<9x16xbf16>
    %cst_81 = arith.constant dense<0.000000e+00> : vector<9x9xf32>
    %260 = tpu.matmul %258, %259, %cst_81 {dimension_numbers = #tpu.dot_dimension_numbers<[1], [1], [0], [0], [0, 0, 1, 0], [], []>} : vector<9x16xbf16>, vector<9x16xbf16>, vector<9x9xf32> -> vector<9x9xf32>
    %cst_82 = arith.constant 2.500000e-01 : f32
    %261 = vector.broadcast %cst_82 : f32 to vector<9x9xf32>
    %262 = arith.mulf %260, %261 : vector<9x9xf32>
    %cst_83 = arith.constant dense<0xFF800000> : vector<9xf32>
    %263 = vector.multi_reduction <maximumf>, %262, %cst_83 [1] : vector<9x9xf32> to vector<9xf32>
    %264 = vector.shape_cast %263 : vector<9xf32> to vector<9x1xf32>
    %265 = vector.broadcast %264 : vector<9x1xf32> to vector<9x9xf32>
    %266 = arith.subf %262, %265 : vector<9x9xf32>
    %267 = math.exp %266 : vector<9x9xf32>
    %cst_84 = arith.constant dense<0.000000e+00> : vector<9xf32>
    %268 = vector.multi_reduction <add>, %267, %cst_84 [1] : vector<9x9xf32> to vector<9xf32>
    %269 = vector.shape_cast %268 : vector<9xf32> to vector<9x1xf32>
    %270 = tpu.reciprocal %269 {approx = true} : vector<9x1xf32> -> vector<9x1xf32>
    %271 = vector.broadcast %270 : vector<9x1xf32> to vector<9x9xf32>
    %272 = arith.mulf %267, %271 : vector<9x9xf32>
    %273 = arith.truncf %272 : vector<9x9xf32> to vector<9x9xbf16>
    %274 = arith.truncf %257 : vector<9x16xf32> to vector<9x16xbf16>
    %cst_85 = arith.constant dense<0.000000e+00> : vector<9x16xf32>
    %275 = tpu.matmul %273, %274, %cst_85 {dimension_numbers = #tpu.dot_dimension_numbers<[1], [0], [0], [1], [0, 0, 1, 1], [], []>} : vector<9x9xbf16>, vector<9x16xbf16>, vector<9x16xf32> -> vector<9x16xf32>
    %276 = vector.extract_strided_slice %212 {offsets = [0, 48], sizes = [9, 16], strides = [1, 1]} : vector<9x192xf32> to vector<9x16xf32>
    %277 = vector.extract_strided_slice %212 {offsets = [0, 112], sizes = [9, 16], strides = [1, 1]} : vector<9x192xf32> to vector<9x16xf32>
    %278 = vector.extract_strided_slice %212 {offsets = [0, 176], sizes = [9, 16], strides = [1, 1]} : vector<9x192xf32> to vector<9x16xf32>
    %279 = arith.truncf %276 : vector<9x16xf32> to vector<9x16xbf16>
    %280 = arith.truncf %277 : vector<9x16xf32> to vector<9x16xbf16>
    %cst_86 = arith.constant dense<0.000000e+00> : vector<9x9xf32>
    %281 = tpu.matmul %279, %280, %cst_86 {dimension_numbers = #tpu.dot_dimension_numbers<[1], [1], [0], [0], [0, 0, 1, 0], [], []>} : vector<9x16xbf16>, vector<9x16xbf16>, vector<9x9xf32> -> vector<9x9xf32>
    %cst_87 = arith.constant 2.500000e-01 : f32
    %282 = vector.broadcast %cst_87 : f32 to vector<9x9xf32>
    %283 = arith.mulf %281, %282 : vector<9x9xf32>
    %cst_88 = arith.constant dense<0xFF800000> : vector<9xf32>
    %284 = vector.multi_reduction <maximumf>, %283, %cst_88 [1] : vector<9x9xf32> to vector<9xf32>
    %285 = vector.shape_cast %284 : vector<9xf32> to vector<9x1xf32>
    %286 = vector.broadcast %285 : vector<9x1xf32> to vector<9x9xf32>
    %287 = arith.subf %283, %286 : vector<9x9xf32>
    %288 = math.exp %287 : vector<9x9xf32>
    %cst_89 = arith.constant dense<0.000000e+00> : vector<9xf32>
    %289 = vector.multi_reduction <add>, %288, %cst_89 [1] : vector<9x9xf32> to vector<9xf32>
    %290 = vector.shape_cast %289 : vector<9xf32> to vector<9x1xf32>
    %291 = tpu.reciprocal %290 {approx = true} : vector<9x1xf32> -> vector<9x1xf32>
    %292 = vector.broadcast %291 : vector<9x1xf32> to vector<9x9xf32>
    %293 = arith.mulf %288, %292 : vector<9x9xf32>
    %294 = arith.truncf %293 : vector<9x9xf32> to vector<9x9xbf16>
    %295 = arith.truncf %278 : vector<9x16xf32> to vector<9x16xbf16>
    %cst_90 = arith.constant dense<0.000000e+00> : vector<9x16xf32>
    %296 = tpu.matmul %294, %295, %cst_90 {dimension_numbers = #tpu.dot_dimension_numbers<[1], [0], [0], [1], [0, 0, 1, 1], [], []>} : vector<9x9xbf16>, vector<9x16xbf16>, vector<9x16xf32> -> vector<9x16xf32>
    %297 = tpu.concatenate %233, %254, %275, %296 in 1 : vector<9x16xf32>, vector<9x16xf32>, vector<9x16xf32>, vector<9x16xf32> -> vector<9x64xf32>
    %298 = arith.truncf %297 : vector<9x64xf32> to vector<9x64xbf16>
    %c1_91 = arith.constant 1 : index
    %c0_92 = arith.constant 0 : index
    %c0_93 = arith.constant 0 : index
    %299 = vector.load %arg5[%c1_91, %c0_92, %c0_93] : memref<2x64x64xbf16, #tpu.memory_space<vmem>>, vector<1x64x64xbf16>
    %300 = vector.shape_cast %299 : vector<1x64x64xbf16> to vector<64x64xbf16>
    %cst_94 = arith.constant dense<0.000000e+00> : vector<9x64xf32>
    %301 = tpu.matmul %298, %300, %cst_94 {dimension_numbers = #tpu.dot_dimension_numbers<[1], [0], [0], [1], [0, 0, 1, 1], [], []>} : vector<9x64xbf16>, vector<64x64xbf16>, vector<9x64xf32> -> vector<9x64xf32>
    %302 = vector.extract_strided_slice %183 {offsets = [5, 0], sizes = [1, 64], strides = [1, 1]} : vector<8x192xf32> to vector<1x64xf32>
    %303 = vector.broadcast %302 : vector<1x64xf32> to vector<9x64xf32>
    %304 = arith.addf %301, %303 : vector<9x64xf32>
    %305 = arith.addf %181, %304 : vector<9x64xf32>
    %306 = vector.extract_strided_slice %183 {offsets = [2, 0], sizes = [1, 64], strides = [1, 1]} : vector<8x192xf32> to vector<1x64xf32>
    %307 = vector.extract_strided_slice %183 {offsets = [3, 0], sizes = [1, 64], strides = [1, 1]} : vector<8x192xf32> to vector<1x64xf32>
    %cst_95 = arith.constant dense<0.000000e+00> : vector<9xf32>
    %308 = vector.multi_reduction <add>, %305, %cst_95 [1] : vector<9x64xf32> to vector<9xf32>
    %309 = vector.shape_cast %308 : vector<9xf32> to vector<9x1xf32>
    %cst_96 = arith.constant 6.400000e+01 : f32
    %310 = vector.broadcast %cst_96 : f32 to vector<9x1xf32>
    %311 = arith.divf %309, %310 : vector<9x1xf32>
    %312 = vector.broadcast %311 : vector<9x1xf32> to vector<9x64xf32>
    %313 = arith.subf %305, %312 : vector<9x64xf32>
    %314 = arith.mulf %313, %313 : vector<9x64xf32>
    %cst_97 = arith.constant dense<0.000000e+00> : vector<9xf32>
    %315 = vector.multi_reduction <add>, %314, %cst_97 [1] : vector<9x64xf32> to vector<9xf32>
    %316 = vector.shape_cast %315 : vector<9xf32> to vector<9x1xf32>
    %cst_98 = arith.constant 6.400000e+01 : f32
    %317 = vector.broadcast %cst_98 : f32 to vector<9x1xf32>
    %318 = arith.divf %316, %317 : vector<9x1xf32>
    %cst_99 = arith.constant 9.99999974E-6 : f32
    %319 = vector.broadcast %cst_99 : f32 to vector<9x1xf32>
    %320 = arith.addf %318, %319 : vector<9x1xf32>
    %321 = math.rsqrt %320 : vector<9x1xf32>
    %322 = vector.broadcast %321 : vector<9x1xf32> to vector<9x64xf32>
    %323 = arith.mulf %313, %322 : vector<9x64xf32>
    %324 = vector.broadcast %306 : vector<1x64xf32> to vector<9x64xf32>
    %325 = arith.mulf %323, %324 : vector<9x64xf32>
    %326 = vector.broadcast %307 : vector<1x64xf32> to vector<9x64xf32>
    %327 = arith.addf %325, %326 : vector<9x64xf32>
    %328 = arith.truncf %327 : vector<9x64xf32> to vector<9x64xbf16>
    %c1_100 = arith.constant 1 : index
    %c0_101 = arith.constant 0 : index
    %c0_102 = arith.constant 0 : index
    %329 = vector.load %arg6[%c1_100, %c0_101, %c0_102] : memref<2x64x128xbf16, #tpu.memory_space<vmem>>, vector<1x64x128xbf16>
    %330 = vector.shape_cast %329 : vector<1x64x128xbf16> to vector<64x128xbf16>
    %cst_103 = arith.constant dense<0.000000e+00> : vector<9x128xf32>
    %331 = tpu.matmul %328, %330, %cst_103 {dimension_numbers = #tpu.dot_dimension_numbers<[1], [0], [0], [1], [0, 0, 1, 1], [], []>} : vector<9x64xbf16>, vector<64x128xbf16>, vector<9x128xf32> -> vector<9x128xf32>
    %332 = vector.extract_strided_slice %183 {offsets = [6, 0], sizes = [1, 128], strides = [1, 1]} : vector<8x192xf32> to vector<1x128xf32>
    %333 = vector.broadcast %332 : vector<1x128xf32> to vector<9x128xf32>
    %334 = arith.addf %331, %333 : vector<9x128xf32>
    %cst_104 = arith.constant 5.000000e-01 : f32
    %335 = vector.broadcast %cst_104 : f32 to vector<9x128xf32>
    %336 = arith.mulf %335, %334 : vector<9x128xf32>
    %cst_105 = arith.constant 4.471500e-02 : f32
    %337 = vector.broadcast %cst_105 : f32 to vector<9x128xf32>
    %338 = arith.mulf %337, %334 : vector<9x128xf32>
    %339 = arith.mulf %338, %334 : vector<9x128xf32>
    %340 = arith.mulf %339, %334 : vector<9x128xf32>
    %341 = arith.addf %334, %340 : vector<9x128xf32>
    %cst_106 = arith.constant 0.797884583 : f32
    %342 = vector.broadcast %cst_106 : f32 to vector<9x128xf32>
    %343 = arith.mulf %342, %341 : vector<9x128xf32>
    %344 = math.tanh %343 : vector<9x128xf32>
    %cst_107 = arith.constant 1.000000e+00 : f32
    %345 = vector.broadcast %cst_107 : f32 to vector<9x128xf32>
    %346 = arith.addf %345, %344 : vector<9x128xf32>
    %347 = arith.mulf %336, %346 : vector<9x128xf32>
    %348 = arith.truncf %347 : vector<9x128xf32> to vector<9x128xbf16>
    %c1_108 = arith.constant 1 : index
    %c0_109 = arith.constant 0 : index
    %c0_110 = arith.constant 0 : index
    %349 = vector.load %arg7[%c1_108, %c0_109, %c0_110] : memref<2x128x64xbf16, #tpu.memory_space<vmem>>, vector<1x128x64xbf16>
    %350 = vector.shape_cast %349 : vector<1x128x64xbf16> to vector<128x64xbf16>
    %cst_111 = arith.constant dense<0.000000e+00> : vector<9x64xf32>
    %351 = tpu.matmul %348, %350, %cst_111 {dimension_numbers = #tpu.dot_dimension_numbers<[1], [0], [0], [1], [0, 0, 1, 1], [], []>} : vector<9x128xbf16>, vector<128x64xbf16>, vector<9x64xf32> -> vector<9x64xf32>
    %352 = vector.extract_strided_slice %183 {offsets = [7, 0], sizes = [1, 64], strides = [1, 1]} : vector<8x192xf32> to vector<1x64xf32>
    %353 = vector.broadcast %352 : vector<1x64xf32> to vector<9x64xf32>
    %354 = arith.addf %351, %353 : vector<9x64xf32>
    %355 = arith.addf %305, %354 : vector<9x64xf32>
    %356 = vector.extract_strided_slice %355 {offsets = [0, 0], sizes = [1, 64], strides = [1, 1]} : vector<9x64xf32> to vector<1x64xf32>
    %c0_112 = arith.constant 0 : index
    %c0_113 = arith.constant 0 : index
    %357 = vector.load %arg9[%c0_112, %c0_113] : memref<4x64xf32, #tpu.memory_space<vmem>>, vector<1x64xf32>
    %c1_114 = arith.constant 1 : index
    %c0_115 = arith.constant 0 : index
    %358 = vector.load %arg9[%c1_114, %c0_115] : memref<4x64xf32, #tpu.memory_space<vmem>>, vector<1x64xf32>
    %cst_116 = arith.constant dense<0.000000e+00> : vector<1xf32>
    %359 = vector.multi_reduction <add>, %356, %cst_116 [1] : vector<1x64xf32> to vector<1xf32>
    %360 = vector.shape_cast %359 : vector<1xf32> to vector<1x1xf32>
    %cst_117 = arith.constant 6.400000e+01 : f32
    %361 = vector.broadcast %cst_117 : f32 to vector<1x1xf32>
    %362 = arith.divf %360, %361 : vector<1x1xf32>
    %363 = vector.broadcast %362 : vector<1x1xf32> to vector<1x64xf32>
    %364 = arith.subf %356, %363 : vector<1x64xf32>
    %365 = arith.mulf %364, %364 : vector<1x64xf32>
    %cst_118 = arith.constant dense<0.000000e+00> : vector<1xf32>
    %366 = vector.multi_reduction <add>, %365, %cst_118 [1] : vector<1x64xf32> to vector<1xf32>
    %367 = vector.shape_cast %366 : vector<1xf32> to vector<1x1xf32>
    %cst_119 = arith.constant 6.400000e+01 : f32
    %368 = vector.broadcast %cst_119 : f32 to vector<1x1xf32>
    %369 = arith.divf %367, %368 : vector<1x1xf32>
    %cst_120 = arith.constant 9.99999974E-6 : f32
    %370 = vector.broadcast %cst_120 : f32 to vector<1x1xf32>
    %371 = arith.addf %369, %370 : vector<1x1xf32>
    %372 = math.rsqrt %371 : vector<1x1xf32>
    %373 = vector.broadcast %372 : vector<1x1xf32> to vector<1x64xf32>
    %374 = arith.mulf %364, %373 : vector<1x64xf32>
    %375 = arith.mulf %374, %357 : vector<1x64xf32>
    %376 = arith.addf %375, %358 : vector<1x64xf32>
    %c0_121 = arith.constant 0 : index
    %c0_122 = arith.constant 0 : index
    %377 = vector.load %arg10[%c0_121, %c0_122] : memref<64x1xf32, #tpu.memory_space<vmem>>, vector<64x1xf32>
    %cst_123 = arith.constant dense<0.000000e+00> : vector<1x1xf32>
    %378 = tpu.matmul %376, %377, %cst_123 {dimension_numbers = #tpu.dot_dimension_numbers<[1], [0], [0], [1], [0, 0, 1, 1], [], []>} : vector<1x64xf32>, vector<64x1xf32>, vector<1x1xf32> -> vector<1x1xf32>
    %c2 = arith.constant 2 : index
    %c0_124 = arith.constant 0 : index
    %379 = vector.load %arg9[%c2, %c0_124] : memref<4x64xf32, #tpu.memory_space<vmem>>, vector<1x1xf32>
    %380 = arith.addf %378, %379 : vector<1x1xf32>
    %c0_125 = arith.constant 0 : index
    %c0_126 = arith.constant 0 : index
    %c0_127 = arith.constant 0 : index
    %381 = vector.load %arg11[%c0_125, %c0_126, %c0_127] : memref<1x1x1xf32, #tpu.memory_space<vmem>>, vector<1x1x1xf32>
    %382 = vector.shape_cast %381 : vector<1x1x1xf32> to vector<1x1xf32>
    %383 = vector.shape_cast %380 : vector<1x1xf32> to vector<1x1x1xf32>
    tpu.vector_store %arg11[%c0_125, %c0_126, %c0_127], %383 {strides = array<i32>} : memref<1x1x1xf32, #tpu.memory_space<vmem>>, vector<1x1x1xf32>,
    return
  }
  func.func @transform_0(%arg0: i32) -> (i32, i32, i32) {
    %c0_i32 = arith.constant 0 : i32
    %c0_i32_0 = arith.constant 0 : i32
    %c0_i32_1 = arith.constant 0 : i32
    return %arg0, %c0_i32, %c0_i32_0 : i32, i32, i32
  }
  func.func @transform_1(%arg0: i32) -> (i32, i32) {
    %c0_i32 = arith.constant 0 : i32
    %c0_i32_0 = arith.constant 0 : i32
    %c0_i32_1 = arith.constant 0 : i32
    return %c0_i32, %c0_i32_0 : i32, i32
  }
  func.func @transform_2(%arg0: i32) -> (i32, i32) {
    %c0_i32 = arith.constant 0 : i32
    %c0_i32_0 = arith.constant 0 : i32
    %c0_i32_1 = arith.constant 0 : i32
    return %c0_i32, %c0_i32_0 : i32, i32
  }
  func.func @transform_3(%arg0: i32) -> (i32, i32, i32) {
    %c0_i32 = arith.constant 0 : i32
    %c0_i32_0 = arith.constant 0 : i32
    %c0_i32_1 = arith.constant 0 : i32
    %c0_i32_2 = arith.constant 0 : i32
    return %c0_i32, %c0_i32_0, %c0_i32_1 : i32, i32, i32
  }
  func.func @transform_4(%arg0: i32) -> (i32, i32, i32) {
    %c0_i32 = arith.constant 0 : i32
    %c0_i32_0 = arith.constant 0 : i32
    %c0_i32_1 = arith.constant 0 : i32
    %c0_i32_2 = arith.constant 0 : i32
    return %c0_i32, %c0_i32_0, %c0_i32_1 : i32, i32, i32
  }
  func.func @transform_5(%arg0: i32) -> (i32, i32, i32) {
    %c0_i32 = arith.constant 0 : i32
    %c0_i32_0 = arith.constant 0 : i32
    %c0_i32_1 = arith.constant 0 : i32
    %c0_i32_2 = arith.constant 0 : i32
    return %c0_i32, %c0_i32_0, %c0_i32_1 : i32, i32, i32
  }
  func.func @transform_6(%arg0: i32) -> (i32, i32, i32) {
    %c0_i32 = arith.constant 0 : i32
    %c0_i32_0 = arith.constant 0 : i32
    %c0_i32_1 = arith.constant 0 : i32
    %c0_i32_2 = arith.constant 0 : i32
    return %c0_i32, %c0_i32_0, %c0_i32_1 : i32, i32, i32
  }
  func.func @transform_7(%arg0: i32) -> (i32, i32, i32) {
    %c0_i32 = arith.constant 0 : i32
    %c0_i32_0 = arith.constant 0 : i32
    %c0_i32_1 = arith.constant 0 : i32
    %c0_i32_2 = arith.constant 0 : i32
    return %c0_i32, %c0_i32_0, %c0_i32_1 : i32, i32, i32
  }
  func.func @transform_8(%arg0: i32) -> (i32, i32) {
    %c0_i32 = arith.constant 0 : i32
    %c0_i32_0 = arith.constant 0 : i32
    %c0_i32_1 = arith.constant 0 : i32
    return %c0_i32, %c0_i32_0 : i32, i32
  }
  func.func @transform_9(%arg0: i32) -> (i32, i32) {
    %c0_i32 = arith.constant 0 : i32
    %c0_i32_0 = arith.constant 0 : i32
    %c0_i32_1 = arith.constant 0 : i32
    return %c0_i32, %c0_i32_0 : i32, i32
  }
  func.func @transform_10(%arg0: i32) -> (i32, i32, i32) {
    %c0_i32 = arith.constant 0 : i32
    %c0_i32_0 = arith.constant 0 : i32
    %c0_i32_1 = arith.constant 0 : i32
    return %arg0, %c0_i32, %c0_i32_0 : i32, i32, i32
  }
}

</mosaic_0001>

<llo_original>
// kernel: reward_model_forward.1
$region0: #{reward_model_forward.1}
  #allocation0 [shape = 'u32[]', space=smem, size = 0x4, offset = 0x4, fixed_abs, tag = 'smem constant byte address 0x4 - core index']
  #allocation1 [shape = 'u32[144,128]{1,0:T(1,128)}', space=vmem, size = 0x12000, scoped, tag = 'internal scratch']
  %s0 = inlined_call_operand.vmem [shape: bf16[2,8,3072], index: 0, kind: input, shape index: {}]
  %s1 = inlined_call_operand.vmem [shape: bf16[3072,64], index: 1, kind: input, shape index: {}]
  %s2 = inlined_call_operand.vmem [shape: f32[9,64], index: 2, kind: input, shape index: {}]
  %s3 = inlined_call_operand.vmem [shape: bf16[2,64,192], index: 3, kind: input, shape index: {}]
  %s4 = inlined_call_operand.vmem [shape: bf16[2,64,64], index: 4, kind: input, shape index: {}]
  %s5 = inlined_call_operand.vmem [shape: bf16[2,64,128], index: 5, kind: input, shape index: {}]
  %s6 = inlined_call_operand.vmem [shape: bf16[2,128,64], index: 6, kind: input, shape index: {}]
  %s7 = inlined_call_operand.vmem [shape: f32[2,8,192], index: 7, kind: input, shape index: {}]
  %s8 = inlined_call_operand.vmem [shape: f32[4,64], index: 8, kind: input, shape index: {}]
  %s9 = inlined_call_operand.vmem [shape: f32[64,1], index: 9, kind: input, shape index: {}]
  %s10 = inlined_call_operand.vmem [shape: f32[2,1,1], index: 10, kind: output, shape index: {}]
  %s11 = sld [smem:[#allocation0]]
  $region73: #{reward_model_forward.1} parent=0
    _
  %s13 = ssub.s32 1, %s11
  %s14 = scalar_select 0, %s13, %s11
  loop: start=0, step=1, limit=4
  $region2: #{reward_model_forward.1} parent=0 // loop_pre_header
    _
  $region3: #{reward_model_forward.1} parent=0 // loop_header
    %s16 = sphi 0, %s20
    %p17 = scmp.ge.s32.totalorder %s16, 4
    %s26 = sphi 0, %s28
    %s29 = sphi 0, %s26
    %s30 = sphi 0, %s29
    %s46 = sphi 0, %s30
    %s50 = sphi 0, %s50
    %s52 = sphi 0, %s50
    %s53 = sphi 0, %s52
    %s67 = sphi 0, %s53
    %s71 = sphi 0, %s71
    %s73 = sphi 0, %s71
    %s74 = sphi 0, %s73
    %s88 = sphi 0, %s74
    %s92 = sphi 0, %s92
    %s94 = sphi 0, %s92
    %s95 = sphi 0, %s94
    %s109 = sphi 0, %s95
    %s113 = sphi 0, %s113
    %s115 = sphi 0, %s113
    %s116 = sphi 0, %s115
    %s130 = sphi 0, %s116
    %s134 = sphi 0, %s134
    %s136 = sphi 0, %s134
    %s137 = sphi 0, %s136
    %s151 = sphi 0, %s137
    %s155 = sphi 0, %s155
    %s157 = sphi 0, %s155
    %s158 = sphi 0, %s157
    %s172 = sphi 0, %s158
    %s176 = sphi 0, %s176
    %s178 = sphi 0, %s176
    %s179 = sphi 0, %s178
    %s193 = sphi 0, %s179
    %s197 = sphi 0, %s197
    %s199 = sphi 0, %s197
    %s200 = sphi 0, %s199
    %s214 = sphi 0, %s200
    %s218 = sphi 0, %s218
    %s220 = sphi 0, %s218
    %s221 = sphi 0, %s220
    %s235 = sphi 0, %s221
    %s241 = sphi 0, %s243
    %s244 = sphi 0, %s241
    %s245 = sphi 0, %s244
    %s261 = sphi 0, %s245
  $region4: #{reward_model_forward.1} parent=0 // loop_header_branch
    %19 = sbr.rel (%p17) target = $region8
  $region5: #{reward_model_forward.1} parent=0 // loop_body
    %s21 = ssub.s32 %s16, 1
    %s22 = ssub.s32 %s16, 2
    %s23 = sadd.s32 %s16, 1
    %s24 = ssub.s32 %s16, %s23
    %p25 = scmp.eq.s32.totalorder %s24, 0
    %s27 = sadd.s32 %s26, 1
    %s28 = scalar_select %p25, %s26, %s27
    %p31 = pneg %p25
    %p32 = scmp.eq.s32.totalorder %s16, 1
    %p33 = por %p31, %p32
    %p34 = scmp.ne.s32.totalorder %s26, %s29
    %p35 = scmp.eq.s32.totalorder %s16, 0
    %p36 = por %p34, %p35
    %p37 = scmp.ne.s32.totalorder %s26, %s29
    %p38 = scmp.eq.s32.totalorder %s21, 1
    %p39 = por %p37, %p38
    %p40 = scmp.ne.s32.totalorder %s29, %s30
    %p41 = scmp.eq.s32.totalorder %s21, 0
    %p42 = por %p40, %p41
    %p43 = scmp.ne.s32.totalorder %s29, %s30
    %p44 = scmp.eq.s32.totalorder %s22, 1
    %p45 = por %p43, %p44
    %p47 = scmp.ne.s32.totalorder %s30, %s46
    %p48 = scmp.eq.s32.totalorder %s22, 0
    %p49 = por %p47, %p48
    %s51 = sadd.s32 %s50, 1
    %p54 = scmp.eq.s32.totalorder %s16, 1
    %p55 = scmp.ne.s32.totalorder %s50, %s52
    %p56 = scmp.eq.s32.totalorder %s16, 0
    %p57 = por %p55, %p56
    %p58 = scmp.ne.s32.totalorder %s50, %s52
    %p59 = scmp.eq.s32.totalorder %s21, 1
    %p60 = por %p58, %p59
    %p61 = scmp.ne.s32.totalorder %s52, %s53
    %p62 = scmp.eq.s32.totalorder %s21, 0
    %p63 = por %p61, %p62
    %p64 = scmp.ne.s32.totalorder %s52, %s53
    %p65 = scmp.eq.s32.totalorder %s22, 1
    %p66 = por %p64, %p65
    %p68 = scmp.ne.s32.totalorder %s53, %s67
    %p69 = scmp.eq.s32.totalorder %s22, 0
    %p70 = por %p68, %p69
    %s72 = sadd.s32 %s71, 1
    %p75 = scmp.eq.s32.totalorder %s16, 1
    %p76 = scmp.ne.s32.totalorder %s71, %s73
    %p77 = scmp.eq.s32.totalorder %s16, 0
    %p78 = por %p76, %p77
    %p79 = scmp.ne.s32.totalorder %s71, %s73
    %p80 = scmp.eq.s32.totalorder %s21, 1
    %p81 = por %p79, %p80
    %p82 = scmp.ne.s32.totalorder %s73, %s74
    %p83 = scmp.eq.s32.totalorder %s21, 0
    %p84 = por %p82, %p83
    %p85 = scmp.ne.s32.totalorder %s73, %s74
    %p86 = scmp.eq.s32.totalorder %s22, 1
    %p87 = por %p85, %p86
    %p89 = scmp.ne.s32.totalorder %s74, %s88
    %p90 = scmp.eq.s32.totalorder %s22, 0
    %p91 = por %p89, %p90
    %s93 = sadd.s32 %s92, 1
    %p96 = scmp.eq.s32.totalorder %s16, 1
    %p97 = scmp.ne.s32.totalorder %s92, %s94
    %p98 = scmp.eq.s32.totalorder %s16, 0
    %p99 = por %p97, %p98
    %p100 = scmp.ne.s32.totalorder %s92, %s94
    %p101 = scmp.eq.s32.totalorder %s21, 1
    %p102 = por %p100, %p101
    %p103 = scmp.ne.s32.totalorder %s94, %s95
    %p104 = scmp.eq.s32.totalorder %s21, 0
    %p105 = por %p103, %p104
    %p106 = scmp.ne.s32.totalorder %s94, %s95
    %p107 = scmp.eq.s32.totalorder %s22, 1
    %p108 = por %p106, %p107
    %p110 = scmp.ne.s32.totalorder %s95, %s109
    %p111 = scmp.eq.s32.totalorder %s22, 0
    %p112 = por %p110, %p111
    %s114 = sadd.s32 %s113, 1
    %p117 = scmp.eq.s32.totalorder %s16, 1
    %p118 = scmp.ne.s32.totalorder %s113, %s115
    %p119 = scmp.eq.s32.totalorder %s16, 0
    %p120 = por %p118, %p119
    %p121 = scmp.ne.s32.totalorder %s113, %s115
    %p122 = scmp.eq.s32.totalorder %s21, 1
    %p123 = por %p121, %p122
    %p124 = scmp.ne.s32.totalorder %s115, %s116
    %p125 = scmp.eq.s32.totalorder %s21, 0
    %p126 = por %p124, %p125
    %p127 = scmp.ne.s32.totalorder %s115, %s116
    %p128 = scmp.eq.s32.totalorder %s22, 1
    %p129 = por %p127, %p128
    %p131 = scmp.ne.s32.totalorder %s116, %s130
    %p132 = scmp.eq.s32.totalorder %s22, 0
    %p133 = por %p131, %p132
    %s135 = sadd.s32 %s134, 1
    %p138 = scmp.eq.s32.totalorder %s16, 1
    %p139 = scmp.ne.s32.totalorder %s134, %s136
    %p140 = scmp.eq.s32.totalorder %s16, 0
    %p141 = por %p139, %p140
    %p142 = scmp.ne.s32.totalorder %s134, %s136
    %p143 = scmp.eq.s32.totalorder %s21, 1
    %p144 = por %p142, %p143
    %p145 = scmp.ne.s32.totalorder %s136, %s137
    %p146 = scmp.eq.s32.totalorder %s21, 0
    %p147 = por %p145, %p146
    %p148 = scmp.ne.s32.totalorder %s136, %s137
    %p149 = scmp.eq.s32.totalorder %s22, 1
    %p150 = por %p148, %p149
    %p152 = scmp.ne.s32.totalorder %s137, %s151
    %p153 = scmp.eq.s32.totalorder %s22, 0
    %p154 = por %p152, %p153
    %s156 = sadd.s32 %s155, 1
    %p159 = scmp.eq.s32.totalorder %s16, 1
    %p160 = scmp.ne.s32.totalorder %s155, %s157
    %p161 = scmp.eq.s32.totalorder %s16, 0
    %p162 = por %p160, %p161
    %p163 = scmp.ne.s32.totalorder %s155, %s157
    %p164 = scmp.eq.s32.totalorder %s21, 1
    %p165 = por %p163, %p164
    %p166 = scmp.ne.s32.totalorder %s157, %s158
    %p167 = scmp.eq.s32.totalorder %s21, 0
    %p168 = por %p166, %p167
    %p169 = scmp.ne.s32.totalorder %s157, %s158
    %p170 = scmp.eq.s32.totalorder %s22, 1
    %p171 = por %p169, %p170
    %p173 = scmp.ne.s32.totalorder %s158, %s172
    %p174 = scmp.eq.s32.totalorder %s22, 0
    %p175 = por %p173, %p174
    %s177 = sadd.s32 %s176, 1
    %p180 = scmp.eq.s32.totalorder %s16, 1
    %p181 = scmp.ne.s32.totalorder %s176, %s178
    %p182 = scmp.eq.s32.totalorder %s16, 0
    %p183 = por %p181, %p182
    %p184 = scmp.ne.s32.totalorder %s176, %s178
    %p185 = scmp.eq.s32.totalorder %s21, 1
    %p186 = por %p184, %p185
    %p187 = scmp.ne.s32.totalorder %s178, %s179
    %p188 = scmp.eq.s32.totalorder %s21, 0
    %p189 = por %p187, %p188
    %p190 = scmp.ne.s32.totalorder %s178, %s179
    %p191 = scmp.eq.s32.totalorder %s22, 1
    %p192 = por %p190, %p191
    %p194 = scmp.ne.s32.totalorder %s179, %s193
    %p195 = scmp.eq.s32.totalorder %s22, 0
    %p196 = por %p194, %p195
    %s198 = sadd.s32 %s197, 1
    %p201 = scmp.eq.s32.totalorder %s16, 1
    %p202 = scmp.ne.s32.totalorder %s197, %s199
    %p203 = scmp.eq.s32.totalorder %s16, 0
    %p204 = por %p202, %p203
    %p205 = scmp.ne.s32.totalorder %s197, %s199
    %p206 = scmp.eq.s32.totalorder %s21, 1
    %p207 = por %p205, %p206
    %p208 = scmp.ne.s32.totalorder %s199, %s200
    %p209 = scmp.eq.s32.totalorder %s21, 0
    %p210 = por %p208, %p209
    %p211 = scmp.ne.s32.totalorder %s199, %s200
    %p212 = scmp.eq.s32.totalorder %s22, 1
    %p213 = por %p211, %p212
    %p215 = scmp.ne.s32.totalorder %s200, %s214
    %p216 = scmp.eq.s32.totalorder %s22, 0
    %p217 = por %p215, %p216
    %s219 = sadd.s32 %s218, 1
    %p222 = scmp.eq.s32.totalorder %s16, 1
    %p223 = scmp.ne.s32.totalorder %s218, %s220
    %p224 = scmp.eq.s32.totalorder %s16, 0
    %p225 = por %p223, %p224
    %p226 = scmp.ne.s32.totalorder %s218, %s220
    %p227 = scmp.eq.s32.totalorder %s21, 1
    %p228 = por %p226, %p227
    %p229 = scmp.ne.s32.totalorder %s220, %s221
    %p230 = scmp.eq.s32.totalorder %s21, 0
    %p231 = por %p229, %p230
    %p232 = scmp.ne.s32.totalorder %s220, %s221
    %p233 = scmp.eq.s32.totalorder %s22, 1
    %p234 = por %p232, %p233
    %p236 = scmp.ne.s32.totalorder %s221, %s235
    %p237 = scmp.eq.s32.totalorder %s22, 0
    %p238 = por %p236, %p237
    %s239 = ssub.s32 %s16, %s23
    %p240 = scmp.eq.s32.totalorder %s239, 0
    %s242 = sadd.s32 %s241, 1
    %s243 = scalar_select %p240, %s241, %s242
    %p246 = pneg %p240
    %p247 = scmp.eq.s32.totalorder %s16, 1
    %p248 = por %p246, %p247
    %p249 = scmp.ne.s32.totalorder %s241, %s244
    %p250 = scmp.eq.s32.totalorder %s16, 0
    %p251 = por %p249, %p250
    %p252 = scmp.ne.s32.totalorder %s241, %s244
    %p253 = scmp.eq.s32.totalorder %s21, 1
    %p254 = por %p252, %p253
    %p255 = scmp.ne.s32.totalorder %s244, %s245
    %p256 = scmp.eq.s32.totalorder %s21, 0
    %p257 = por %p255, %p256
    %p258 = scmp.ne.s32.totalorder %s244, %s245
    %p259 = scmp.eq.s32.totalorder %s22, 1
    %p260 = por %p258, %p259
    %p262 = scmp.ne.s32.totalorder %s245, %s261
    %p263 = scmp.eq.s32.totalorder %s22, 0
    %p264 = por %p262, %p263
    %p265 = scmp.le.s32.totalorder 1, %s16
    %p266 = scmp.lt.s32.totalorder %s16, 3
    %p267 = pnand %p265, %p266
    %p268 = pneg %p267
    // Predicated region
    $region9: #{reward_model_forward.1} parent=5 // pred_check
      _
    $region10: #{reward_model_forward.1} parent=5 // pred_check_branch
      %270 = sbr.rel (%p267) target = $region12
    $region11: #{reward_model_forward.1} parent=5 // pred_region
      %s271 = ssub.s32 %s16, 1
      // Predicated region
      $region13: #{reward_model_forward.1} parent=11 // pred_check
        %p272 = pneg %p63
      $region14: #{reward_model_forward.1} parent=11 // pred_check_branch
        %274 = sbr.rel (%p272) target = $region16
      $region15: #{reward_model_forward.1} parent=11 // pred_region
        _
      $region16: #{reward_model_forward.1} parent=11 // pred_fallthru
        _
      // Predicated region
      $region17: #{reward_model_forward.1} parent=11 // pred_check
        %p275 = pneg %p84
      $region18: #{reward_model_forward.1} parent=11 // pred_check_branch
        %277 = sbr.rel (%p275) target = $region20
      $region19: #{reward_model_forward.1} parent=11 // pred_region
        _
      $region20: #{reward_model_forward.1} parent=11 // pred_fallthru
        _
      // Predicated region
      $region21: #{reward_model_forward.1} parent=11 // pred_check
        %p278 = pneg %p105
      $region22: #{reward_model_forward.1} parent=11 // pred_check_branch
        %280 = sbr.rel (%p278) target = $region24
      $region23: #{reward_model_forward.1} parent=11 // pred_region
        _
      $region24: #{reward_model_forward.1} parent=11 // pred_fallthru
        _
      // Predicated region
      $region25: #{reward_model_forward.1} parent=11 // pred_check
        %p281 = pneg %p126
      $region26: #{reward_model_forward.1} parent=11 // pred_check_branch
        %283 = sbr.rel (%p281) target = $region28
      $region27: #{reward_model_forward.1} parent=11 // pred_region
        _
      $region28: #{reward_model_forward.1} parent=11 // pred_fallthru
        _
      // Predicated region
      $region29: #{reward_model_forward.1} parent=11 // pred_check
        %p284 = pneg %p147
      $region30: #{reward_model_forward.1} parent=11 // pred_check_branch
        %286 = sbr.rel (%p284) target = $region32
      $region31: #{reward_model_forward.1} parent=11 // pred_region
        _
      $region32: #{reward_model_forward.1} parent=11 // pred_fallthru
        _
      // Predicated region
      $region33: #{reward_model_forward.1} parent=11 // pred_check
        %p287 = pneg %p168
      $region34: #{reward_model_forward.1} parent=11 // pred_check_branch
        %289 = sbr.rel (%p287) target = $region36
      $region35: #{reward_model_forward.1} parent=11 // pred_region
        _
      $region36: #{reward_model_forward.1} parent=11 // pred_fallthru
        _
      // Predicated region
      $region37: #{reward_model_forward.1} parent=11 // pred_check
        %p290 = pneg %p189
      $region38: #{reward_model_forward.1} parent=11 // pred_check_branch
        %292 = sbr.rel (%p290) target = $region40
      $region39: #{reward_model_forward.1} parent=11 // pred_region
        _
      $region40: #{reward_model_forward.1} parent=11 // pred_fallthru
        _
      // Predicated region
      $region41: #{reward_model_forward.1} parent=11 // pred_check
        %p293 = pneg %p210
      $region42: #{reward_model_forward.1} parent=11 // pred_check_branch
        %295 = sbr.rel (%p293) target = $region44
      $region43: #{reward_model_forward.1} parent=11 // pred_region
        _
      $region44: #{reward_model_forward.1} parent=11 // pred_fallthru
        _
      // Predicated region
      $region45: #{reward_model_forward.1} parent=11 // pred_check
        %p296 = pneg %p231
      $region46: #{reward_model_forward.1} parent=11 // pred_check_branch
        %298 = sbr.rel (%p296) target = $region48
      $region47: #{reward_model_forward.1} parent=11 // pred_region
        _
      $region48: #{reward_model_forward.1} parent=11 // pred_fallthru
        _
    $region12: #{reward_model_forward.1} parent=5 // pred_fallthru
      _
    %p299 = scmp.lt.s32.totalorder %s16, 2
    // Predicated region
    $region49: #{reward_model_forward.1} parent=5 // pred_check
      %p300 = pneg %p299
    $region50: #{reward_model_forward.1} parent=5 // pred_check_branch
      %302 = sbr.rel (%p300) target = $region52
    $region51: #{reward_model_forward.1} parent=5 // pred_region
      // Predicated region
      $region53: #{reward_model_forward.1} parent=51 // pred_check
        %p303 = pneg %p36
      $region54: #{reward_model_forward.1} parent=51 // pred_check_branch
        %305 = sbr.rel (%p303) target = $region56
      $region55: #{reward_model_forward.1} parent=51 // pred_region
        %p306 = scmp.lt.s32.totalorder %s16, 1
        %s307 = scalar_select %p306, %s16, 1
        %s308 = smul.addr %s307, 24
        %s309 = smul.addr %s308, 4
        %s310 = scalar_lea.vmem %s0, %s309
      $region56: #{reward_model_forward.1} parent=51 // pred_fallthru
        _
    $region52: #{reward_model_forward.1} parent=5 // pred_fallthru
      _
    %p311 = scmp.le.s32.totalorder 1, %s16
    %p312 = scmp.lt.s32.totalorder %s16, 3
    %p313 = pnand %p311, %p312
    %p314 = pneg %p313
    // Predicated region
    $region57: #{reward_model_forward.1} parent=5 // pred_check
      _
    $region58: #{reward_model_forward.1} parent=5 // pred_check_branch
      %316 = sbr.rel (%p313) target = $region60
    $region59: #{reward_model_forward.1} parent=5 // pred_region
      %s317 = ssub.s32 %s16, 1
      %p318 = scmp.lt.s32.totalorder %s21, 1
      %s319 = scalar_select %p318, %s21, 1
      %s320 = smul.addr %s319, 24
      %s321 = smul.addr %s320, 4
      %s322 = scalar_lea.vmem %s0, %s321
      %p323 = pneg %p42
      %p324 = pneg %p39
      %p325 = pneg %p63
      %p326 = pneg %p60
      %p327 = pneg %p84
      %p328 = pneg %p81
      %p329 = pneg %p105
      %p330 = pneg %p102
      %p331 = pneg %p126
      %p332 = pneg %p123
      %p333 = pneg %p147
      %p334 = pneg %p144
      %p335 = pneg %p168
      %p336 = pneg %p165
      %p337 = pneg %p189
      %p338 = pneg %p186
      %p339 = pneg %p210
      %p340 = pneg %p207
      %p341 = pneg %p231
      %p342 = pneg %p228
      %p343 = pneg %p257
      %p344 = pneg %p254
      %p345 = scmp.lt.s32.totalorder %s21, 1
      %s346 = scalar_select %p345, %s21, 1
      %s347 = scalar_lea.vmem %s10, %s346
      %p348 = scmp.lt.s32.totalorder %s21, 1
      %s349 = scalar_select %p348, %s21, 1
      %s350 = smul.addr %s349, 24
      %s351 = smul.addr %s350, 4
      %s352 = scalar_lea.vmem %s0, %s351
      %p353 = scmp.lt.s32.totalorder %s21, 1
      %s354 = scalar_select %p353, %s21, 1
      %s355 = scalar_lea.vmem %s10, %s354
      %v357 = vld [vmem:[%s352] sm:$0xff]
      %v358 = vld [vmem:[%s352 + $0x8] sm:$0xff]
      %v359 = vld [vmem:[%s352 + $0x10] sm:$0xff]
      %v360 = vld [vmem:[%s352 + $0x18] sm:$0xff]
      %v361 = vld [vmem:[%s352 + $0x20] sm:$0xff]
      %v362 = vld [vmem:[%s352 + $0x28] sm:$0xff]
      %v363 = vld [vmem:[%s352 + $0x30] sm:$0xff]
      %v364 = vld [vmem:[%s352 + $0x38] sm:$0xff]
      %v365 = vld [vmem:[%s352 + $0x40] sm:$0xff]
      %v366 = vld [vmem:[%s352 + $0x48] sm:$0xff]
      %v367 = vld [vmem:[%s352 + $0x50] sm:$0xff]
      %v368 = vld [vmem:[%s352 + $0x58] sm:$0xff]
      %v369 = vld [vmem:[%s1] sm:$0xf]
      %v370 = vld [vmem:[%s1 + $0x4] sm:$0xf]
      %v371 = vld [vmem:[%s1 + $0x8] sm:$0xf]
      %v372 = vld [vmem:[%s1 + $0xc] sm:$0xf]
      %v373 = vld [vmem:[%s1 + $0x10] sm:$0xf]
      %v374 = vld [vmem:[%s1 + $0x14] sm:$0xf]
      %v375 = vld [vmem:[%s1 + $0x18] sm:$0xf]
      %v376 = vld [vmem:[%s1 + $0x1c] sm:$0xf]
      %v377 = vld [vmem:[%s1 + $0x20] sm:$0xf]
      %v378 = vld [vmem:[%s1 + $0x24] sm:$0xf]
      %v379 = vld [vmem:[%s1 + $0x28] sm:$0xf]
      %v380 = vld [vmem:[%s1 + $0x2c] sm:$0xf]
      %v381 = vld [vmem:[%s1 + $0x30] sm:$0xf]
      %v382 = vld [vmem:[%s1 + $0x34] sm:$0xf]
      %v383 = vld [vmem:[%s1 + $0x38] sm:$0xf]
      %v384 = vld [vmem:[%s1 + $0x3c] sm:$0xf]
      %v385 = vld [vmem:[%s1 + $0x40] sm:$0xf]
      %v386 = vld [vmem:[%s1 + $0x44] sm:$0xf]
      %v387 = vld [vmem:[%s1 + $0x48] sm:$0xf]
      %v388 = vld [vmem:[%s1 + $0x4c] sm:$0xf]
      %v389 = vld [vmem:[%s1 + $0x50] sm:$0xf]
      %v390 = vld [vmem:[%s1 + $0x54] sm:$0xf]
      %v391 = vld [vmem:[%s1 + $0x58] sm:$0xf]
      %v392 = vld [vmem:[%s1 + $0x5c] sm:$0xf]
      %v393 = vld [vmem:[%s1 + $0x60] sm:$0xf]
      %v394 = vld [vmem:[%s1 + $0x64] sm:$0xf]
      %v395 = vld [vmem:[%s1 + $0x68] sm:$0xf]
      %v396 = vld [vmem:[%s1 + $0x6c] sm:$0xf]
      %v397 = vld [vmem:[%s1 + $0x70] sm:$0xf]
      %v398 = vld [vmem:[%s1 + $0x74] sm:$0xf]
      %v399 = vld [vmem:[%s1 + $0x78] sm:$0xf]
      %v400 = vld [vmem:[%s1 + $0x7c] sm:$0xf]
      %v401 = vld [vmem:[%s1 + $0x80] sm:$0xf]
      %v402 = vld [vmem:[%s1 + $0x84] sm:$0xf]
      %v403 = vld [vmem:[%s1 + $0x88] sm:$0xf]
      %v404 = vld [vmem:[%s1 + $0x8c] sm:$0xf]
      %v405 = vld [vmem:[%s1 + $0x90] sm:$0xf]
      %v406 = vld [vmem:[%s1 + $0x94] sm:$0xf]
      %v407 = vld [vmem:[%s1 + $0x98] sm:$0xf]
      %v408 = vld [vmem:[%s1 + $0x9c] sm:$0xf]
      %v409 = vld [vmem:[%s1 + $0xa0] sm:$0xf]
      %v410 = vld [vmem:[%s1 + $0xa4] sm:$0xf]
      %v411 = vld [vmem:[%s1 + $0xa8] sm:$0xf]
      %v412 = vld [vmem:[%s1 + $0xac] sm:$0xf]
      %v413 = vld [vmem:[%s1 + $0xb0] sm:$0xf]
      %v414 = vld [vmem:[%s1 + $0xb4] sm:$0xf]
      %v415 = vld [vmem:[%s1 + $0xb8] sm:$0xf]
      %v416 = vld [vmem:[%s1 + $0xbc] sm:$0xf]
      %v417 = vld [vmem:[%s1 + $0xc0] sm:$0xf]
      %v418 = vld [vmem:[%s1 + $0xc4] sm:$0xf]
      %v419 = vld [vmem:[%s1 + $0xc8] sm:$0xf]
      %v420 = vld [vmem:[%s1 + $0xcc] sm:$0xf]
      %v421 = vld [vmem:[%s1 + $0xd0] sm:$0xf]
      %v422 = vld [vmem:[%s1 + $0xd4] sm:$0xf]
      %v423 = vld [vmem:[%s1 + $0xd8] sm:$0xf]
      %v424 = vld [vmem:[%s1 + $0xdc] sm:$0xf]
      %v425 = vld [vmem:[%s1 + $0xe0] sm:$0xf]
      %v426 = vld [vmem:[%s1 + $0xe4] sm:$0xf]
      %v427 = vld [vmem:[%s1 + $0xe8] sm:$0xf]
      %v428 = vld [vmem:[%s1 + $0xec] sm:$0xf]
      %v429 = vld [vmem:[%s1 + $0xf0] sm:$0xf]
      %v430 = vld [vmem:[%s1 + $0xf4] sm:$0xf]
      %v431 = vld [vmem:[%s1 + $0xf8] sm:$0xf]
      %v432 = vld [vmem:[%s1 + $0xfc] sm:$0xf]
      %v433 = vld [vmem:[%s1 + $0x100] sm:$0xf]
      %v434 = vld [vmem:[%s1 + $0x104] sm:$0xf]
      %v435 = vld [vmem:[%s1 + $0x108] sm:$0xf]
      %v436 = vld [vmem:[%s1 + $0x10c] sm:$0xf]
      %v437 = vld [vmem:[%s1 + $0x110] sm:$0xf]
      %v438 = vld [vmem:[%s1 + $0x114] sm:$0xf]
      %v439 = vld [vmem:[%s1 + $0x118] sm:$0xf]
      %v440 = vld [vmem:[%s1 + $0x11c] sm:$0xf]
      %v441 = vld [vmem:[%s1 + $0x120] sm:$0xf]
      %v442 = vld [vmem:[%s1 + $0x124] sm:$0xf]
      %v443 = vld [vmem:[%s1 + $0x128] sm:$0xf]
      %v444 = vld [vmem:[%s1 + $0x12c] sm:$0xf]
      %v445 = vld [vmem:[%s1 + $0x130] sm:$0xf]
      %v446 = vld [vmem:[%s1 + $0x134] sm:$0xf]
      %v447 = vld [vmem:[%s1 + $0x138] sm:$0xf]
      %v448 = vld [vmem:[%s1 + $0x13c] sm:$0xf]
      %v449 = vld [vmem:[%s1 + $0x140] sm:$0xf]
      %v450 = vld [vmem:[%s1 + $0x144] sm:$0xf]
      %v451 = vld [vmem:[%s1 + $0x148] sm:$0xf]
      %v452 = vld [vmem:[%s1 + $0x14c] sm:$0xf]
      %v453 = vld [vmem:[%s1 + $0x150] sm:$0xf]
      %v454 = vld [vmem:[%s1 + $0x154] sm:$0xf]
      %v455 = vld [vmem:[%s1 + $0x158] sm:$0xf]
      %v456 = vld [vmem:[%s1 + $0x15c] sm:$0xf]
      %v457 = vld [vmem:[%s1 + $0x160] sm:$0xf]
      %v458 = vld [vmem:[%s1 + $0x164] sm:$0xf]
      %v459 = vld [vmem:[%s1 + $0x168] sm:$0xf]
      %v460 = vld [vmem:[%s1 + $0x16c] sm:$0xf]
      %v461 = vld [vmem:[%s1 + $0x170] sm:$0xf]
      %v462 = vld [vmem:[%s1 + $0x174] sm:$0xf]
      %v463 = vld [vmem:[%s1 + $0x178] sm:$0xf]
      %v464 = vld [vmem:[%s1 + $0x17c] sm:$0xf]
      %v465 = vld [vmem:[%s1 + $0x180] sm:$0xf]
      %v466 = vld [vmem:[%s1 + $0x184] sm:$0xf]
      %v467 = vld [vmem:[%s1 + $0x188] sm:$0xf]
      %v468 = vld [vmem:[%s1 + $0x18c] sm:$0xf]
      %v469 = vld [vmem:[%s1 + $0x190] sm:$0xf]
      %v470 = vld [vmem:[%s1 + $0x194] sm:$0xf]
      %v471 = vld [vmem:[%s1 + $0x198] sm:$0xf]
      %v472 = vld [vmem:[%s1 + $0x19c] sm:$0xf]
      %v473 = vld [vmem:[%s1 + $0x1a0] sm:$0xf]
      %v474 = vld [vmem:[%s1 + $0x1a4] sm:$0xf]
      %v475 = vld [vmem:[%s1 + $0x1a8] sm:$0xf]
      %v476 = vld [vmem:[%s1 + $0x1ac] sm:$0xf]
      %v477 = vld [vmem:[%s1 + $0x1b0] sm:$0xf]
      %v478 = vld [vmem:[%s1 + $0x1b4] sm:$0xf]
      %v479 = vld [vmem:[%s1 + $0x1b8] sm:$0xf]
      %v480 = vld [vmem:[%s1 + $0x1bc] sm:$0xf]
      %v481 = vld [vmem:[%s1 + $0x1c0] sm:$0xf]
      %v482 = vld [vmem:[%s1 + $0x1c4] sm:$0xf]
      %v483 = vld [vmem:[%s1 + $0x1c8] sm:$0xf]
      %v484 = vld [vmem:[%s1 + $0x1cc] sm:$0xf]
      %v485 = vld [vmem:[%s1 + $0x1d0] sm:$0xf]
      %v486 = vld [vmem:[%s1 + $0x1d4] sm:$0xf]
      %v487 = vld [vmem:[%s1 + $0x1d8] sm:$0xf]
      %v488 = vld [vmem:[%s1 + $0x1dc] sm:$0xf]
      %v489 = vld [vmem:[%s1 + $0x1e0] sm:$0xf]
      %v490 = vld [vmem:[%s1 + $0x1e4] sm:$0xf]
      %v491 = vld [vmem:[%s1 + $0x1e8] sm:$0xf]
      %v492 = vld [vmem:[%s1 + $0x1ec] sm:$0xf]
      %v493 = vld [vmem:[%s1 + $0x1f0] sm:$0xf]
      %v494 = vld [vmem:[%s1 + $0x1f4] sm:$0xf]
      %v495 = vld [vmem:[%s1 + $0x1f8] sm:$0xf]
      %v496 = vld [vmem:[%s1 + $0x1fc] sm:$0xf]
      %v497 = vld [vmem:[%s1 + $0x200] sm:$0xf]
      %v498 = vld [vmem:[%s1 + $0x204] sm:$0xf]
      %v499 = vld [vmem:[%s1 + $0x208] sm:$0xf]
      %v500 = vld [vmem:[%s1 + $0x20c] sm:$0xf]
      %v501 = vld [vmem:[%s1 + $0x210] sm:$0xf]
      %v502 = vld [vmem:[%s1 + $0x214] sm:$0xf]
      %v503 = vld [vmem:[%s1 + $0x218] sm:$0xf]
      %v504 = vld [vmem:[%s1 + $0x21c] sm:$0xf]
      %v505 = vld [vmem:[%s1 + $0x220] sm:$0xf]
      %v506 = vld [vmem:[%s1 + $0x224] sm:$0xf]
      %v507 = vld [vmem:[%s1 + $0x228] sm:$0xf]
      %v508 = vld [vmem:[%s1 + $0x22c] sm:$0xf]
      %v509 = vld [vmem:[%s1 + $0x230] sm:$0xf]
      %v510 = vld [vmem:[%s1 + $0x234] sm:$0xf]
      %v511 = vld [vmem:[%s1 + $0x238] sm:$0xf]
      %v512 = vld [vmem:[%s1 + $0x23c] sm:$0xf]
      %v513 = vld [vmem:[%s1 + $0x240] sm:$0xf]
      %v514 = vld [vmem:[%s1 + $0x244] sm:$0xf]
      %v515 = vld [vmem:[%s1 + $0x248] sm:$0xf]
      %v516 = vld [vmem:[%s1 + $0x24c] sm:$0xf]
      %v517 = vld [vmem:[%s1 + $0x250] sm:$0xf]
      %v518 = vld [vmem:[%s1 + $0x254] sm:$0xf]
      %v519 = vld [vmem:[%s1 + $0x258] sm:$0xf]
      %v520 = vld [vmem:[%s1 + $0x25c] sm:$0xf]
      %v521 = vld [vmem:[%s1 + $0x260] sm:$0xf]
      %v522 = vld [vmem:[%s1 + $0x264] sm:$0xf]
      %v523 = vld [vmem:[%s1 + $0x268] sm:$0xf]
      %v524 = vld [vmem:[%s1 + $0x26c] sm:$0xf]
      %v525 = vld [vmem:[%s1 + $0x270] sm:$0xf]
      %v526 = vld [vmem:[%s1 + $0x274] sm:$0xf]
      %v527 = vld [vmem:[%s1 + $0x278] sm:$0xf]
      %v528 = vld [vmem:[%s1 + $0x27c] sm:$0xf]
      %v529 = vld [vmem:[%s1 + $0x280] sm:$0xf]
      %v530 = vld [vmem:[%s1 + $0x284] sm:$0xf]
      %v531 = vld [vmem:[%s1 + $0x288] sm:$0xf]
      %v532 = vld [vmem:[%s1 + $0x28c] sm:$0xf]
      %v533 = vld [vmem:[%s1 + $0x290] sm:$0xf]
      %v534 = vld [vmem:[%s1 + $0x294] sm:$0xf]
      %v535 = vld [vmem:[%s1 + $0x298] sm:$0xf]
      %v536 = vld [vmem:[%s1 + $0x29c] sm:$0xf]
      %v537 = vld [vmem:[%s1 + $0x2a0] sm:$0xf]
      %v538 = vld [vmem:[%s1 + $0x2a4] sm:$0xf]
      %v539 = vld [vmem:[%s1 + $0x2a8] sm:$0xf]
      %v540 = vld [vmem:[%s1 + $0x2ac] sm:$0xf]
      %v541 = vld [vmem:[%s1 + $0x2b0] sm:$0xf]
      %v542 = vld [vmem:[%s1 + $0x2b4] sm:$0xf]
      %v543 = vld [vmem:[%s1 + $0x2b8] sm:$0xf]
      %v544 = vld [vmem:[%s1 + $0x2bc] sm:$0xf]
      %v545 = vld [vmem:[%s1 + $0x2c0] sm:$0xf]
      %v546 = vld [vmem:[%s1 + $0x2c4] sm:$0xf]
      %v547 = vld [vmem:[%s1 + $0x2c8] sm:$0xf]
      %v548 = vld [vmem:[%s1 + $0x2cc] sm:$0xf]
      %v549 = vld [vmem:[%s1 + $0x2d0] sm:$0xf]
      %v550 = vld [vmem:[%s1 + $0x2d4] sm:$0xf]
      %v551 = vld [vmem:[%s1 + $0x2d8] sm:$0xf]
      %v552 = vld [vmem:[%s1 + $0x2dc] sm:$0xf]
      %v553 = vld [vmem:[%s1 + $0x2e0] sm:$0xf]
      %v554 = vld [vmem:[%s1 + $0x2e4] sm:$0xf]
      %v555 = vld [vmem:[%s1 + $0x2e8] sm:$0xf]
      %v556 = vld [vmem:[%s1 + $0x2ec] sm:$0xf]
      %v557 = vld [vmem:[%s1 + $0x2f0] sm:$0xf]
      %v558 = vld [vmem:[%s1 + $0x2f4] sm:$0xf]
      %v559 = vld [vmem:[%s1 + $0x2f8] sm:$0xf]
      %v560 = vld [vmem:[%s1 + $0x2fc] sm:$0xf]
      %v561 = vld [vmem:[%s1 + $0x300] sm:$0xf]
      %v562 = vld [vmem:[%s1 + $0x304] sm:$0xf]
      %v563 = vld [vmem:[%s1 + $0x308] sm:$0xf]
      %v564 = vld [vmem:[%s1 + $0x30c] sm:$0xf]
      %v565 = vld [vmem:[%s1 + $0x310] sm:$0xf]
      %v566 = vld [vmem:[%s1 + $0x314] sm:$0xf]
      %v567 = vld [vmem:[%s1 + $0x318] sm:$0xf]
      %v568 = vld [vmem:[%s1 + $0x31c] sm:$0xf]
      %v569 = vld [vmem:[%s1 + $0x320] sm:$0xf]
      %v570 = vld [vmem:[%s1 + $0x324] sm:$0xf]
      %v571 = vld [vmem:[%s1 + $0x328] sm:$0xf]
      %v572 = vld [vmem:[%s1 + $0x32c] sm:$0xf]
      %v573 = vld [vmem:[%s1 + $0x330] sm:$0xf]
      %v574 = vld [vmem:[%s1 + $0x334] sm:$0xf]
      %v575 = vld [vmem:[%s1 + $0x338] sm:$0xf]
      %v576 = vld [vmem:[%s1 + $0x33c] sm:$0xf]
      %v577 = vld [vmem:[%s1 + $0x340] sm:$0xf]
      %v578 = vld [vmem:[%s1 + $0x344] sm:$0xf]
      %v579 = vld [vmem:[%s1 + $0x348] sm:$0xf]
      %v580 = vld [vmem:[%s1 + $0x34c] sm:$0xf]
      %v581 = vld [vmem:[%s1 + $0x350] sm:$0xf]
      %v582 = vld [vmem:[%s1 + $0x354] sm:$0xf]
      %v583 = vld [vmem:[%s1 + $0x358] sm:$0xf]
      %v584 = vld [vmem:[%s1 + $0x35c] sm:$0xf]
      %v585 = vld [vmem:[%s1 + $0x360] sm:$0xf]
      %v586 = vld [vmem:[%s1 + $0x364] sm:$0xf]
      %v587 = vld [vmem:[%s1 + $0x368] sm:$0xf]
      %v588 = vld [vmem:[%s1 + $0x36c] sm:$0xf]
      %v589 = vld [vmem:[%s1 + $0x370] sm:$0xf]
      %v590 = vld [vmem:[%s1 + $0x374] sm:$0xf]
      %v591 = vld [vmem:[%s1 + $0x378] sm:$0xf]
      %v592 = vld [vmem:[%s1 + $0x37c] sm:$0xf]
      %v593 = vld [vmem:[%s1 + $0x380] sm:$0xf]
      %v594 = vld [vmem:[%s1 + $0x384] sm:$0xf]
      %v595 = vld [vmem:[%s1 + $0x388] sm:$0xf]
      %v596 = vld [vmem:[%s1 + $0x38c] sm:$0xf]
      %v597 = vld [vmem:[%s1 + $0x390] sm:$0xf]
      %v598 = vld [vmem:[%s1 + $0x394] sm:$0xf]
      %v599 = vld [vmem:[%s1 + $0x398] sm:$0xf]
      %v600 = vld [vmem:[%s1 + $0x39c] sm:$0xf]
      %v601 = vld [vmem:[%s1 + $0x3a0] sm:$0xf]
      %v602 = vld [vmem:[%s1 + $0x3a4] sm:$0xf]
      %v603 = vld [vmem:[%s1 + $0x3a8] sm:$0xf]
      %v604 = vld [vmem:[%s1 + $0x3ac] sm:$0xf]
      %v605 = vld [vmem:[%s1 + $0x3b0] sm:$0xf]
      %v606 = vld [vmem:[%s1 + $0x3b4] sm:$0xf]
      %v607 = vld [vmem:[%s1 + $0x3b8] sm:$0xf]
      %v608 = vld [vmem:[%s1 + $0x3bc] sm:$0xf]
      %v609 = vld [vmem:[%s1 + $0x3c0] sm:$0xf]
      %v610 = vld [vmem:[%s1 + $0x3c4] sm:$0xf]
      %v611 = vld [vmem:[%s1 + $0x3c8] sm:$0xf]
      %v612 = vld [vmem:[%s1 + $0x3cc] sm:$0xf]
      %v613 = vld [vmem:[%s1 + $0x3d0] sm:$0xf]
      %v614 = vld [vmem:[%s1 + $0x3d4] sm:$0xf]
      %v615 = vld [vmem:[%s1 + $0x3d8] sm:$0xf]
      %v616 = vld [vmem:[%s1 + $0x3dc] sm:$0xf]
      %v617 = vld [vmem:[%s1 + $0x3e0] sm:$0xf]
      %v618 = vld [vmem:[%s1 + $0x3e4] sm:$0xf]
      %v619 = vld [vmem:[%s1 + $0x3e8] sm:$0xf]
      %v620 = vld [vmem:[%s1 + $0x3ec] sm:$0xf]
      %v621 = vld [vmem:[%s1 + $0x3f0] sm:$0xf]
      %v622 = vld [vmem:[%s1 + $0x3f4] sm:$0xf]
      %v623 = vld [vmem:[%s1 + $0x3f8] sm:$0xf]
      %v624 = vld [vmem:[%s1 + $0x3fc] sm:$0xf]
      %v625 = vld [vmem:[%s1 + $0x400] sm:$0xf]
      %v626 = vld [vmem:[%s1 + $0x404] sm:$0xf]
      %v627 = vld [vmem:[%s1 + $0x408] sm:$0xf]
      %v628 = vld [vmem:[%s1 + $0x40c] sm:$0xf]
      %v629 = vld [vmem:[%s1 + $0x410] sm:$0xf]
      %v630 = vld [vmem:[%s1 + $0x414] sm:$0xf]
      %v631 = vld [vmem:[%s1 + $0x418] sm:$0xf]
      %v632 = vld [vmem:[%s1 + $0x41c] sm:$0xf]
      %v633 = vld [vmem:[%s1 + $0x420] sm:$0xf]
      %v634 = vld [vmem:[%s1 + $0x424] sm:$0xf]
      %v635 = vld [vmem:[%s1 + $0x428] sm:$0xf]
      %v636 = vld [vmem:[%s1 + $0x42c] sm:$0xf]
      %v637 = vld [vmem:[%s1 + $0x430] sm:$0xf]
      %v638 = vld [vmem:[%s1 + $0x434] sm:$0xf]
      %v639 = vld [vmem:[%s1 + $0x438] sm:$0xf]
      %v640 = vld [vmem:[%s1 + $0x43c] sm:$0xf]
      %v641 = vld [vmem:[%s1 + $0x440] sm:$0xf]
      %v642 = vld [vmem:[%s1 + $0x444] sm:$0xf]
      %v643 = vld [vmem:[%s1 + $0x448] sm:$0xf]
      %v644 = vld [vmem:[%s1 + $0x44c] sm:$0xf]
      %v645 = vld [vmem:[%s1 + $0x450] sm:$0xf]
      %v646 = vld [vmem:[%s1 + $0x454] sm:$0xf]
      %v647 = vld [vmem:[%s1 + $0x458] sm:$0xf]
      %v648 = vld [vmem:[%s1 + $0x45c] sm:$0xf]
      %v649 = vld [vmem:[%s1 + $0x460] sm:$0xf]
      %v650 = vld [vmem:[%s1 + $0x464] sm:$0xf]
      %v651 = vld [vmem:[%s1 + $0x468] sm:$0xf]
      %v652 = vld [vmem:[%s1 + $0x46c] sm:$0xf]
      %v653 = vld [vmem:[%s1 + $0x470] sm:$0xf]
      %v654 = vld [vmem:[%s1 + $0x474] sm:$0xf]
      %v655 = vld [vmem:[%s1 + $0x478] sm:$0xf]
      %v656 = vld [vmem:[%s1 + $0x47c] sm:$0xf]
      %v657 = vld [vmem:[%s1 + $0x480] sm:$0xf]
      %v658 = vld [vmem:[%s1 + $0x484] sm:$0xf]
      %v659 = vld [vmem:[%s1 + $0x488] sm:$0xf]
      %v660 = vld [vmem:[%s1 + $0x48c] sm:$0xf]
      %v661 = vld [vmem:[%s1 + $0x490] sm:$0xf]
      %v662 = vld [vmem:[%s1 + $0x494] sm:$0xf]
      %v663 = vld [vmem:[%s1 + $0x498] sm:$0xf]
      %v664 = vld [vmem:[%s1 + $0x49c] sm:$0xf]
      %v665 = vld [vmem:[%s1 + $0x4a0] sm:$0xf]
      %v666 = vld [vmem:[%s1 + $0x4a4] sm:$0xf]
      %v667 = vld [vmem:[%s1 + $0x4a8] sm:$0xf]
      %v668 = vld [vmem:[%s1 + $0x4ac] sm:$0xf]
      %v669 = vld [vmem:[%s1 + $0x4b0] sm:$0xf]
      %v670 = vld [vmem:[%s1 + $0x4b4] sm:$0xf]
      %v671 = vld [vmem:[%s1 + $0x4b8] sm:$0xf]
      %v672 = vld [vmem:[%s1 + $0x4bc] sm:$0xf]
      %v673 = vld [vmem:[%s1 + $0x4c0] sm:$0xf]
      %v674 = vld [vmem:[%s1 + $0x4c4] sm:$0xf]
      %v675 = vld [vmem:[%s1 + $0x4c8] sm:$0xf]
      %v676 = vld [vmem:[%s1 + $0x4cc] sm:$0xf]
      %v677 = vld [vmem:[%s1 + $0x4d0] sm:$0xf]
      %v678 = vld [vmem:[%s1 + $0x4d4] sm:$0xf]
      %v679 = vld [vmem:[%s1 + $0x4d8] sm:$0xf]
      %v680 = vld [vmem:[%s1 + $0x4dc] sm:$0xf]
      %v681 = vld [vmem:[%s1 + $0x4e0] sm:$0xf]
      %v682 = vld [vmem:[%s1 + $0x4e4] sm:$0xf]
      %v683 = vld [vmem:[%s1 + $0x4e8] sm:$0xf]
      %v684 = vld [vmem:[%s1 + $0x4ec] sm:$0xf]
      %v685 = vld [vmem:[%s1 + $0x4f0] sm:$0xf]
      %v686 = vld [vmem:[%s1 + $0x4f4] sm:$0xf]
      %v687 = vld [vmem:[%s1 + $0x4f8] sm:$0xf]
      %v688 = vld [vmem:[%s1 + $0x4fc] sm:$0xf]
      %v689 = vld [vmem:[%s1 + $0x500] sm:$0xf]
      %v690 = vld [vmem:[%s1 + $0x504] sm:$0xf]
      %v691 = vld [vmem:[%s1 + $0x508] sm:$0xf]
      %v692 = vld [vmem:[%s1 + $0x50c] sm:$0xf]
      %v693 = vld [vmem:[%s1 + $0x510] sm:$0xf]
      %v694 = vld [vmem:[%s1 + $0x514] sm:$0xf]
      %v695 = vld [vmem:[%s1 + $0x518] sm:$0xf]
      %v696 = vld [vmem:[%s1 + $0x51c] sm:$0xf]
      %v697 = vld [vmem:[%s1 + $0x520] sm:$0xf]
      %v698 = vld [vmem:[%s1 + $0x524] sm:$0xf]
      %v699 = vld [vmem:[%s1 + $0x528] sm:$0xf]
      %v700 = vld [vmem:[%s1 + $0x52c] sm:$0xf]
      %v701 = vld [vmem:[%s1 + $0x530] sm:$0xf]
      %v702 = vld [vmem:[%s1 + $0x534] sm:$0xf]
      %v703 = vld [vmem:[%s1 + $0x538] sm:$0xf]
      %v704 = vld [vmem:[%s1 + $0x53c] sm:$0xf]
      %v705 = vld [vmem:[%s1 + $0x540] sm:$0xf]
      %v706 = vld [vmem:[%s1 + $0x544] sm:$0xf]
      %v707 = vld [vmem:[%s1 + $0x548] sm:$0xf]
      %v708 = vld [vmem:[%s1 + $0x54c] sm:$0xf]
      %v709 = vld [vmem:[%s1 + $0x550] sm:$0xf]
      %v710 = vld [vmem:[%s1 + $0x554] sm:$0xf]
      %v711 = vld [vmem:[%s1 + $0x558] sm:$0xf]
      %v712 = vld [vmem:[%s1 + $0x55c] sm:$0xf]
      %v713 = vld [vmem:[%s1 + $0x560] sm:$0xf]
      %v714 = vld [vmem:[%s1 + $0x564] sm:$0xf]
      %v715 = vld [vmem:[%s1 + $0x568] sm:$0xf]
      %v716 = vld [vmem:[%s1 + $0x56c] sm:$0xf]
      %v717 = vld [vmem:[%s1 + $0x570] sm:$0xf]
      %v718 = vld [vmem:[%s1 + $0x574] sm:$0xf]
      %v719 = vld [vmem:[%s1 + $0x578] sm:$0xf]
      %v720 = vld [vmem:[%s1 + $0x57c] sm:$0xf]
      %v721 = vld [vmem:[%s1 + $0x580] sm:$0xf]
      %v722 = vld [vmem:[%s1 + $0x584] sm:$0xf]
      %v723 = vld [vmem:[%s1 + $0x588] sm:$0xf]
      %v724 = vld [vmem:[%s1 + $0x58c] sm:$0xf]
      %v725 = vld [vmem:[%s1 + $0x590] sm:$0xf]
      %v726 = vld [vmem:[%s1 + $0x594] sm:$0xf]
      %v727 = vld [vmem:[%s1 + $0x598] sm:$0xf]
      %v728 = vld [vmem:[%s1 + $0x59c] sm:$0xf]
      %v729 = vld [vmem:[%s1 + $0x5a0] sm:$0xf]
      %v730 = vld [vmem:[%s1 + $0x5a4] sm:$0xf]
      %v731 = vld [vmem:[%s1 + $0x5a8] sm:$0xf]
      %v732 = vld [vmem:[%s1 + $0x5ac] sm:$0xf]
      %v733 = vld [vmem:[%s1 + $0x5b0] sm:$0xf]
      %v734 = vld [vmem:[%s1 + $0x5b4] sm:$0xf]
      %v735 = vld [vmem:[%s1 + $0x5b8] sm:$0xf]
      %v736 = vld [vmem:[%s1 + $0x5bc] sm:$0xf]
      %v737 = vld [vmem:[%s1 + $0x5c0] sm:$0xf]
      %v738 = vld [vmem:[%s1 + $0x5c4] sm:$0xf]
      %v739 = vld [vmem:[%s1 + $0x5c8] sm:$0xf]
      %v740 = vld [vmem:[%s1 + $0x5cc] sm:$0xf]
      %v741 = vld [vmem:[%s1 + $0x5d0] sm:$0xf]
      %v742 = vld [vmem:[%s1 + $0x5d4] sm:$0xf]
      %v743 = vld [vmem:[%s1 + $0x5d8] sm:$0xf]
      %v744 = vld [vmem:[%s1 + $0x5dc] sm:$0xf]
      %v745 = vld [vmem:[%s1 + $0x5e0] sm:$0xf]
      %v746 = vld [vmem:[%s1 + $0x5e4] sm:$0xf]
      %v747 = vld [vmem:[%s1 + $0x5e8] sm:$0xf]
      %v748 = vld [vmem:[%s1 + $0x5ec] sm:$0xf]
      %v749 = vld [vmem:[%s1 + $0x5f0] sm:$0xf]
      %v750 = vld [vmem:[%s1 + $0x5f4] sm:$0xf]
      %v751 = vld [vmem:[%s1 + $0x5f8] sm:$0xf]
      %v752 = vld [vmem:[%s1 + $0x5fc] sm:$0xf]
      %v765 = vunpack.c.l.b16 %v357
      %v766 = vunpack.c.h.b16 %v357
      %v767 = vunpack.c.l.b16 %v358
      %v768 = vunpack.c.h.b16 %v358
      %v769 = vunpack.c.l.b16 %v359
      %v770 = vunpack.c.h.b16 %v359
      %v771 = vunpack.c.l.b16 %v360
      %v772 = vunpack.c.h.b16 %v360
      %v773 = vunpack.c.l.b16 %v361
      %v774 = vunpack.c.h.b16 %v361
      %v775 = vunpack.c.l.b16 %v362
      %v776 = vunpack.c.h.b16 %v362
      %v777 = vunpack.c.l.b16 %v363
      %v778 = vunpack.c.h.b16 %v363
      %v779 = vunpack.c.l.b16 %v364
      %v780 = vunpack.c.h.b16 %v364
      %v781 = vunpack.c.l.b16 %v365
      %v782 = vunpack.c.h.b16 %v365
      %v783 = vunpack.c.l.b16 %v366
      %v784 = vunpack.c.h.b16 %v366
      %v785 = vunpack.c.l.b16 %v367
      %v786 = vunpack.c.h.b16 %v367
      %v787 = vunpack.c.l.b16 %v368
      %v788 = vunpack.c.h.b16 %v368
      %v789 = vpack.c.b16 %v765, %v765
      %v790 = vpack.c.b16 %v766, %v766
      %v791 = vpack.c.b16 %v767, %v767
      %v792 = vpack.c.b16 %v768, %v768
      %v793 = vpack.c.b16 %v769, %v769
      %v794 = vpack.c.b16 %v770, %v770
      %v795 = vpack.c.b16 %v771, %v771
      %v796 = vpack.c.b16 %v772, %v772
      %v797 = vpack.c.b16 %v773, %v773
      %v798 = vpack.c.b16 %v774, %v774
      %v799 = vpack.c.b16 %v775, %v775
      %v800 = vpack.c.b16 %v776, %v776
      %v801 = vpack.c.b16 %v777, %v777
      %v802 = vpack.c.b16 %v778, %v778
      %v803 = vpack.c.b16 %v779, %v779
      %v804 = vpack.c.b16 %v780, %v780
      %v805 = vpack.c.b16 %v781, %v781
      %v806 = vpack.c.b16 %v782, %v782
      %v807 = vpack.c.b16 %v783, %v783
      %v808 = vpack.c.b16 %v784, %v784
      %v809 = vpack.c.b16 %v785, %v785
      %v810 = vpack.c.b16 %v786, %v786
      %v811 = vpack.c.b16 %v787, %v787
      %v812 = vpack.c.b16 %v788, %v788
      %v1221 = vunpack.c.l.b16 %v369
      %v1222 = vunpack.c.l.b16 %v370
      %v1223 = vunpack.c.l.b16 %v371
      %v1224 = vunpack.c.l.b16 %v372
      %v1225 = vunpack.c.l.b16 %v373
      %v1226 = vunpack.c.l.b16 %v374
      %v1227 = vunpack.c.l.b16 %v375
      %v1228 = vunpack.c.l.b16 %v376
      %v1229 = vunpack.c.l.b16 %v377
      %v1230 = vunpack.c.l.b16 %v378
      %v1231 = vunpack.c.l.b16 %v379
      %v1232 = vunpack.c.l.b16 %v380
      %v1233 = vunpack.c.l.b16 %v381
      %v1234 = vunpack.c.l.b16 %v382
      %v1235 = vunpack.c.l.b16 %v383
      %v1236 = vunpack.c.l.b16 %v384
      %v1237 = vunpack.c.l.b16 %v385
      %v1238 = vunpack.c.l.b16 %v386
      %v1239 = vunpack.c.l.b16 %v387
      %v1240 = vunpack.c.l.b16 %v388
      %v1241 = vunpack.c.l.b16 %v389
      %v1242 = vunpack.c.l.b16 %v390
      %v1243 = vunpack.c.l.b16 %v391
      %v1244 = vunpack.c.l.b16 %v392
      %v1245 = vunpack.c.l.b16 %v393
      %v1246 = vunpack.c.l.b16 %v394
      %v1247 = vunpack.c.l.b16 %v395
      %v1248 = vunpack.c.l.b16 %v396
      %v1249 = vunpack.c.l.b16 %v397
      %v1250 = vunpack.c.l.b16 %v398
      %v1251 = vunpack.c.l.b16 %v399
      %v1252 = vunpack.c.l.b16 %v400
      %v1253 = vunpack.c.l.b16 %v401
      %v1254 = vunpack.c.l.b16 %v402
      %v1255 = vunpack.c.l.b16 %v403
      %v1256 = vunpack.c.l.b16 %v404
      %v1257 = vunpack.c.l.b16 %v405
      %v1258 = vunpack.c.l.b16 %v406
      %v1259 = vunpack.c.l.b16 %v407
      %v1260 = vunpack.c.l.b16 %v408
      %v1261 = vunpack.c.l.b16 %v409
      %v1262 = vunpack.c.l.b16 %v410
      %v1263 = vunpack.c.l.b16 %v411
      %v1264 = vunpack.c.l.b16 %v412
      %v1265 = vunpack.c.l.b16 %v413
      %v1266 = vunpack.c.l.b16 %v414
      %v1267 = vunpack.c.l.b16 %v415
      %v1268 = vunpack.c.l.b16 %v416
      %v1269 = vunpack.c.l.b16 %v417
      %v1270 = vunpack.c.l.b16 %v418
      %v1271 = vunpack.c.l.b16 %v419
      %v1272 = vunpack.c.l.b16 %v420
      %v1273 = vunpack.c.l.b16 %v421
      %v1274 = vunpack.c.l.b16 %v422
      %v1275 = vunpack.c.l.b16 %v423
      %v1276 = vunpack.c.l.b16 %v424
      %v1277 = vunpack.c.l.b16 %v425
      %v1278 = vunpack.c.l.b16 %v426
      %v1279 = vunpack.c.l.b16 %v427
      %v1280 = vunpack.c.l.b16 %v428
      %v1281 = vunpack.c.l.b16 %v429
      %v1282 = vunpack.c.l.b16 %v430
      %v1283 = vunpack.c.l.b16 %v431
      %v1284 = vunpack.c.l.b16 %v432
      %v1285 = vunpack.c.l.b16 %v433
      %v1286 = vunpack.c.l.b16 %v434
      %v1287 = vunpack.c.l.b16 %v435
      %v1288 = vunpack.c.l.b16 %v436
      %v1289 = vunpack.c.l.b16 %v437
      %v1290 = vunpack.c.l.b16 %v438
      %v1291 = vunpack.c.l.b16 %v439
      %v1292 = vunpack.c.l.b16 %v440
      %v1293 = vunpack.c.l.b16 %v441
      %v1294 = vunpack.c.l.b16 %v442
      %v1295 = vunpack.c.l.b16 %v443
      %v1296 = vunpack.c.l.b16 %v444
      %v1297 = vunpack.c.l.b16 %v445
      %v1298 = vunpack.c.l.b16 %v446
      %v1299 = vunpack.c.l.b16 %v447
      %v1300 = vunpack.c.l.b16 %v448
      %v1301 = vunpack.c.l.b16 %v449
      %v1302 = vunpack.c.l.b16 %v450
      %v1303 = vunpack.c.l.b16 %v451
      %v1304 = vunpack.c.l.b16 %v452
      %v1305 = vunpack.c.l.b16 %v453
      %v1306 = vunpack.c.l.b16 %v454
      %v1307 = vunpack.c.l.b16 %v455
      %v1308 = vunpack.c.l.b16 %v456
      %v1309 = vunpack.c.l.b16 %v457
      %v1310 = vunpack.c.l.b16 %v458
      %v1311 = vunpack.c.l.b16 %v459
      %v1312 = vunpack.c.l.b16 %v460
      %v1313 = vunpack.c.l.b16 %v461
      %v1314 = vunpack.c.l.b16 %v462
      %v1315 = vunpack.c.l.b16 %v463
      %v1316 = vunpack.c.l.b16 %v464
      %v1317 = vunpack.c.l.b16 %v465
      %v1318 = vunpack.c.l.b16 %v466
      %v1319 = vunpack.c.l.b16 %v467
      %v1320 = vunpack.c.l.b16 %v468
      %v1321 = vunpack.c.l.b16 %v469
      %v1322 = vunpack.c.l.b16 %v470
      %v1323 = vunpack.c.l.b16 %v471
      %v1324 = vunpack.c.l.b16 %v472
      %v1325 = vunpack.c.l.b16 %v473
      %v1326 = vunpack.c.l.b16 %v474
      %v1327 = vunpack.c.l.b16 %v475
      %v1328 = vunpack.c.l.b16 %v476
      %v1329 = vunpack.c.l.b16 %v477
      %v1330 = vunpack.c.l.b16 %v478
      %v1331 = vunpack.c.l.b16 %v479
      %v1332 = vunpack.c.l.b16 %v480
      %v1333 = vunpack.c.l.b16 %v481
      %v1334 = vunpack.c.l.b16 %v482
      %v1335 = vunpack.c.l.b16 %v483
      %v1336 = vunpack.c.l.b16 %v484
      %v1337 = vunpack.c.l.b16 %v485
      %v1338 = vunpack.c.l.b16 %v486
      %v1339 = vunpack.c.l.b16 %v487
      %v1340 = vunpack.c.l.b16 %v488
      %v1341 = vunpack.c.l.b16 %v489
      %v1342 = vunpack.c.l.b16 %v490
      %v1343 = vunpack.c.l.b16 %v491
      %v1344 = vunpack.c.l.b16 %v492
      %v1345 = vunpack.c.l.b16 %v493
      %v1346 = vunpack.c.l.b16 %v494
      %v1347 = vunpack.c.l.b16 %v495
      %v1348 = vunpack.c.l.b16 %v496
      %v1349 = vunpack.c.l.b16 %v497
      %v1350 = vunpack.c.l.b16 %v498
      %v1351 = vunpack.c.l.b16 %v499
      %v1352 = vunpack.c.l.b16 %v500
      %v1353 = vunpack.c.l.b16 %v501
      %v1354 = vunpack.c.l.b16 %v502
      %v1355 = vunpack.c.l.b16 %v503
      %v1356 = vunpack.c.l.b16 %v504
      %v1357 = vunpack.c.l.b16 %v505
      %v1358 = vunpack.c.l.b16 %v506
      %v1359 = vunpack.c.l.b16 %v507
      %v1360 = vunpack.c.l.b16 %v508
      %v1361 = vunpack.c.l.b16 %v509
      %v1362 = vunpack.c.l.b16 %v510
      %v1363 = vunpack.c.l.b16 %v511
      %v1364 = vunpack.c.l.b16 %v512
      %v1365 = vunpack.c.l.b16 %v513
      %v1366 = vunpack.c.l.b16 %v514
      %v1367 = vunpack.c.l.b16 %v515
      %v1368 = vunpack.c.l.b16 %v516
      %v1369 = vunpack.c.l.b16 %v517
      %v1370 = vunpack.c.l.b16 %v518
      %v1371 = vunpack.c.l.b16 %v519
      %v1372 = vunpack.c.l.b16 %v520
      %v1373 = vunpack.c.l.b16 %v521
      %v1374 = vunpack.c.l.b16 %v522
      %v1375 = vunpack.c.l.b16 %v523
      %v1376 = vunpack.c.l.b16 %v524
      %v1377 = vunpack.c.l.b16 %v525
      %v1378 = vunpack.c.l.b16 %v526
      %v1379 = vunpack.c.l.b16 %v527
      %v1380 = vunpack.c.l.b16 %v528
      %v1381 = vunpack.c.l.b16 %v529
      %v1382 = vunpack.c.l.b16 %v530
      %v1383 = vunpack.c.l.b16 %v531
      %v1384 = vunpack.c.l.b16 %v532
      %v1385 = vunpack.c.l.b16 %v533
      %v1386 = vunpack.c.l.b16 %v534
      %v1387 = vunpack.c.l.b16 %v535
      %v1388 = vunpack.c.l.b16 %v536
      %v1389 = vunpack.c.l.b16 %v537
      %v1390 = vunpack.c.l.b16 %v538
      %v1391 = vunpack.c.l.b16 %v539
      %v1392 = vunpack.c.l.b16 %v540
      %v1393 = vunpack.c.l.b16 %v541
      %v1394 = vunpack.c.l.b16 %v542
      %v1395 = vunpack.c.l.b16 %v543
      %v1396 = vunpack.c.l.b16 %v544
      %v1397 = vunpack.c.l.b16 %v545
      %v1398 = vunpack.c.l.b16 %v546
      %v1399 = vunpack.c.l.b16 %v547
      %v1400 = vunpack.c.l.b16 %v548
      %v1401 = vunpack.c.l.b16 %v549
      %v1402 = vunpack.c.l.b16 %v550
      %v1403 = vunpack.c.l.b16 %v551
      %v1404 = vunpack.c.l.b16 %v552
      %v1405 = vunpack.c.l.b16 %v553
      %v1406 = vunpack.c.l.b16 %v554
      %v1407 = vunpack.c.l.b16 %v555
      %v1408 = vunpack.c.l.b16 %v556
      %v1409 = vunpack.c.l.b16 %v557
      %v1410 = vunpack.c.l.b16 %v558
      %v1411 = vunpack.c.l.b16 %v559
      %v1412 = vunpack.c.l.b16 %v560
      %v1413 = vunpack.c.l.b16 %v561
      %v1414 = vunpack.c.l.b16 %v562
      %v1415 = vunpack.c.l.b16 %v563
      %v1416 = vunpack.c.l.b16 %v564
      %v1417 = vunpack.c.l.b16 %v565
      %v1418 = vunpack.c.l.b16 %v566
      %v1419 = vunpack.c.l.b16 %v567
      %v1420 = vunpack.c.l.b16 %v568
      %v1421 = vunpack.c.l.b16 %v569
      %v1422 = vunpack.c.l.b16 %v570
      %v1423 = vunpack.c.l.b16 %v571
      %v1424 = vunpack.c.l.b16 %v572
      %v1425 = vunpack.c.l.b16 %v573
      %v1426 = vunpack.c.l.b16 %v574
      %v1427 = vunpack.c.l.b16 %v575
      %v1428 = vunpack.c.l.b16 %v576
      %v1429 = vunpack.c.l.b16 %v577
      %v1430 = vunpack.c.l.b16 %v578
      %v1431 = vunpack.c.l.b16 %v579
      %v1432 = vunpack.c.l.b16 %v580
      %v1433 = vunpack.c.l.b16 %v581
      %v1434 = vunpack.c.l.b16 %v582
      %v1435 = vunpack.c.l.b16 %v583
      %v1436 = vunpack.c.l.b16 %v584
      %v1437 = vunpack.c.l.b16 %v585
      %v1438 = vunpack.c.l.b16 %v586
      %v1439 = vunpack.c.l.b16 %v587
      %v1440 = vunpack.c.l.b16 %v588
      %v1441 = vunpack.c.l.b16 %v589
      %v1442 = vunpack.c.l.b16 %v590
      %v1443 = vunpack.c.l.b16 %v591
      %v1444 = vunpack.c.l.b16 %v592
      %v1445 = vunpack.c.l.b16 %v593
      %v1446 = vunpack.c.l.b16 %v594
      %v1447 = vunpack.c.l.b16 %v595
      %v1448 = vunpack.c.l.b16 %v596
      %v1449 = vunpack.c.l.b16 %v597
      %v1450 = vunpack.c.l.b16 %v598
      %v1451 = vunpack.c.l.b16 %v599
      %v1452 = vunpack.c.l.b16 %v600
      %v1453 = vunpack.c.l.b16 %v601
      %v1454 = vunpack.c.l.b16 %v602
      %v1455 = vunpack.c.l.b16 %v603
      %v1456 = vunpack.c.l.b16 %v604
      %v1457 = vunpack.c.l.b16 %v605
      %v1458 = vunpack.c.l.b16 %v606
      %v1459 = vunpack.c.l.b16 %v607
      %v1460 = vunpack.c.l.b16 %v608
      %v1461 = vunpack.c.l.b16 %v609
      %v1462 = vunpack.c.l.b16 %v610
      %v1463 = vunpack.c.l.b16 %v611
      %v1464 = vunpack.c.l.b16 %v612
      %v1465 = vunpack.c.l.b16 %v613
      %v1466 = vunpack.c.l.b16 %v614
      %v1467 = vunpack.c.l.b16 %v615
      %v1468 = vunpack.c.l.b16 %v616
      %v1469 = vunpack.c.l.b16 %v617
      %v1470 = vunpack.c.l.b16 %v618
      %v1471 = vunpack.c.l.b16 %v619
      %v1472 = vunpack.c.l.b16 %v620
      %v1473 = vunpack.c.l.b16 %v621
      %v1474 = vunpack.c.l.b16 %v622
      %v1475 = vunpack.c.l.b16 %v623
      %v1476 = vunpack.c.l.b16 %v624
      %v1477 = vunpack.c.l.b16 %v625
      %v1478 = vunpack.c.l.b16 %v626
      %v1479 = vunpack.c.l.b16 %v627
      %v1480 = vunpack.c.l.b16 %v628
      %v1481 = vunpack.c.l.b16 %v629
      %v1482 = vunpack.c.l.b16 %v630
      %v1483 = vunpack.c.l.b16 %v631
      %v1484 = vunpack.c.l.b16 %v632
      %v1485 = vunpack.c.l.b16 %v633
      %v1486 = vunpack.c.l.b16 %v634
      %v1487 = vunpack.c.l.b16 %v635
      %v1488 = vunpack.c.l.b16 %v636
      %v1489 = vunpack.c.l.b16 %v637
      %v1490 = vunpack.c.l.b16 %v638
      %v1491 = vunpack.c.l.b16 %v639
      %v1492 = vunpack.c.l.b16 %v640
      %v1493 = vunpack.c.l.b16 %v641
      %v1494 = vunpack.c.l.b16 %v642
      %v1495 = vunpack.c.l.b16 %v643
      %v1496 = vunpack.c.l.b16 %v644
      %v1497 = vunpack.c.l.b16 %v645
      %v1498 = vunpack.c.l.b16 %v646
      %v1499 = vunpack.c.l.b16 %v647
      %v1500 = vunpack.c.l.b16 %v648
      %v1501 = vunpack.c.l.b16 %v649
      %v1502 = vunpack.c.l.b16 %v650
      %v1503 = vunpack.c.l.b16 %v651
      %v1504 = vunpack.c.l.b16 %v652
      %v1505 = vunpack.c.l.b16 %v653
      %v1506 = vunpack.c.l.b16 %v654
      %v1507 = vunpack.c.l.b16 %v655
      %v1508 = vunpack.c.l.b16 %v656
      %v1509 = vunpack.c.l.b16 %v657
      %v1510 = vunpack.c.l.b16 %v658
      %v1511 = vunpack.c.l.b16 %v659
      %v1512 = vunpack.c.l.b16 %v660
      %v1513 = vunpack.c.l.b16 %v661
      %v1514 = vunpack.c.l.b16 %v662
      %v1515 = vunpack.c.l.b16 %v663
      %v1516 = vunpack.c.l.b16 %v664
      %v1517 = vunpack.c.l.b16 %v665
      %v1518 = vunpack.c.l.b16 %v666
      %v1519 = vunpack.c.l.b16 %v667
      %v1520 = vunpack.c.l.b16 %v668
      %v1521 = vunpack.c.l.b16 %v669
      %v1522 = vunpack.c.l.b16 %v670
      %v1523 = vunpack.c.l.b16 %v671
      %v1524 = vunpack.c.l.b16 %v672
      %v1525 = vunpack.c.l.b16 %v673
      %v1526 = vunpack.c.l.b16 %v674
      %v1527 = vunpack.c.l.b16 %v675
      %v1528 = vunpack.c.l.b16 %v676
      %v1529 = vunpack.c.l.b16 %v677
      %v1530 = vunpack.c.l.b16 %v678
      %v1531 = vunpack.c.l.b16 %v679
      %v1532 = vunpack.c.l.b16 %v680
      %v1533 = vunpack.c.l.b16 %v681
      %v1534 = vunpack.c.l.b16 %v682
      %v1535 = vunpack.c.l.b16 %v683
      %v1536 = vunpack.c.l.b16 %v684
      %v1537 = vunpack.c.l.b16 %v685
      %v1538 = vunpack.c.l.b16 %v686
      %v1539 = vunpack.c.l.b16 %v687
      %v1540 = vunpack.c.l.b16 %v688
      %v1541 = vunpack.c.l.b16 %v689
      %v1542 = vunpack.c.l.b16 %v690
      %v1543 = vunpack.c.l.b16 %v691
      %v1544 = vunpack.c.l.b16 %v692
      %v1545 = vunpack.c.l.b16 %v693
      %v1546 = vunpack.c.l.b16 %v694
      %v1547 = vunpack.c.l.b16 %v695
      %v1548 = vunpack.c.l.b16 %v696
      %v1549 = vunpack.c.l.b16 %v697
      %v1550 = vunpack.c.l.b16 %v698
      %v1551 = vunpack.c.l.b16 %v699
      %v1552 = vunpack.c.l.b16 %v700
      %v1553 = vunpack.c.l.b16 %v701
      %v1554 = vunpack.c.l.b16 %v702
      %v1555 = vunpack.c.l.b16 %v703
      %v1556 = vunpack.c.l.b16 %v704
      %v1557 = vunpack.c.l.b16 %v705
      %v1558 = vunpack.c.l.b16 %v706
      %v1559 = vunpack.c.l.b16 %v707
      %v1560 = vunpack.c.l.b16 %v708
      %v1561 = vunpack.c.l.b16 %v709
      %v1562 = vunpack.c.l.b16 %v710
      %v1563 = vunpack.c.l.b16 %v711
      %v1564 = vunpack.c.l.b16 %v712
      %v1565 = vunpack.c.l.b16 %v713
      %v1566 = vunpack.c.l.b16 %v714
      %v1567 = vunpack.c.l.b16 %v715
      %v1568 = vunpack.c.l.b16 %v716
      %v1569 = vunpack.c.l.b16 %v717
      %v1570 = vunpack.c.l.b16 %v718
      %v1571 = vunpack.c.l.b16 %v719
      %v1572 = vunpack.c.l.b16 %v720
      %v1573 = vunpack.c.l.b16 %v721
      %v1574 = vunpack.c.l.b16 %v722
      %v1575 = vunpack.c.l.b16 %v723
      %v1576 = vunpack.c.l.b16 %v724
      %v1577 = vunpack.c.l.b16 %v725
      %v1578 = vunpack.c.l.b16 %v726
      %v1579 = vunpack.c.l.b16 %v727
      %v1580 = vunpack.c.l.b16 %v728
      %v1581 = vunpack.c.l.b16 %v729
      %v1582 = vunpack.c.l.b16 %v730
      %v1583 = vunpack.c.l.b16 %v731
      %v1584 = vunpack.c.l.b16 %v732
      %v1585 = vunpack.c.l.b16 %v733
      %v1586 = vunpack.c.l.b16 %v734
      %v1587 = vunpack.c.l.b16 %v735
      %v1588 = vunpack.c.l.b16 %v736
      %v1589 = vunpack.c.l.b16 %v737
      %v1590 = vunpack.c.l.b16 %v738
      %v1591 = vunpack.c.l.b16 %v739
      %v1592 = vunpack.c.l.b16 %v740
      %v1593 = vunpack.c.l.b16 %v741
      %v1594 = vunpack.c.l.b16 %v742
      %v1595 = vunpack.c.l.b16 %v743
      %v1596 = vunpack.c.l.b16 %v744
      %v1597 = vunpack.c.l.b16 %v745
      %v1598 = vunpack.c.l.b16 %v746
      %v1599 = vunpack.c.l.b16 %v747
      %v1600 = vunpack.c.l.b16 %v748
      %v1601 = vunpack.c.l.b16 %v749
      %v1602 = vunpack.c.l.b16 %v750
      %v1603 = vunpack.c.l.b16 %v751
      %v1604 = vunpack.c.l.b16 %v752
      %v1605 = vpack.c.b16 %v1222, %v1221
      %v1606 = vpack.c.b16 %v1224, %v1223
      %v1607 = vpack.c.b16 %v1226, %v1225
      %v1608 = vpack.c.b16 %v1228, %v1227
      %v1609 = vpack.c.b16 %v1230, %v1229
      %v1610 = vpack.c.b16 %v1232, %v1231
      %v1611 = vpack.c.b16 %v1234, %v1233
      %v1612 = vpack.c.b16 %v1236, %v1235
      %v1613 = vpack.c.b16 %v1238, %v1237
      %v1614 = vpack.c.b16 %v1240, %v1239
      %v1615 = vpack.c.b16 %v1242, %v1241
      %v1616 = vpack.c.b16 %v1244, %v1243
      %v1617 = vpack.c.b16 %v1246, %v1245
      %v1618 = vpack.c.b16 %v1248, %v1247
      %v1619 = vpack.c.b16 %v1250, %v1249
      %v1620 = vpack.c.b16 %v1252, %v1251
      %v1621 = vpack.c.b16 %v1254, %v1253
      %v1622 = vpack.c.b16 %v1256, %v1255
      %v1623 = vpack.c.b16 %v1258, %v1257
      %v1624 = vpack.c.b16 %v1260, %v1259
      %v1625 = vpack.c.b16 %v1262, %v1261
      %v1626 = vpack.c.b16 %v1264, %v1263
      %v1627 = vpack.c.b16 %v1266, %v1265
      %v1628 = vpack.c.b16 %v1268, %v1267
      %v1629 = vpack.c.b16 %v1270, %v1269
      %v1630 = vpack.c.b16 %v1272, %v1271
      %v1631 = vpack.c.b16 %v1274, %v1273
      %v1632 = vpack.c.b16 %v1276, %v1275
      %v1633 = vpack.c.b16 %v1278, %v1277
      %v1634 = vpack.c.b16 %v1280, %v1279
      %v1635 = vpack.c.b16 %v1282, %v1281
      %v1636 = vpack.c.b16 %v1284, %v1283
      %v1637 = vpack.c.b16 %v1286, %v1285
      %v1638 = vpack.c.b16 %v1288, %v1287
      %v1639 = vpack.c.b16 %v1290, %v1289
      %v1640 = vpack.c.b16 %v1292, %v1291
      %v1641 = vpack.c.b16 %v1294, %v1293
      %v1642 = vpack.c.b16 %v1296, %v1295
      %v1643 = vpack.c.b16 %v1298, %v1297
      %v1644 = vpack.c.b16 %v1300, %v1299
      %v1645 = vpack.c.b16 %v1302, %v1301
      %v1646 = vpack.c.b16 %v1304, %v1303
      %v1647 = vpack.c.b16 %v1306, %v1305
      %v1648 = vpack.c.b16 %v1308, %v1307
      %v1649 = vpack.c.b16 %v1310, %v1309
      %v1650 = vpack.c.b16 %v1312, %v1311
      %v1651 = vpack.c.b16 %v1314, %v1313
      %v1652 = vpack.c.b16 %v1316, %v1315
      %v1653 = vpack.c.b16 %v1318, %v1317
      %v1654 = vpack.c.b16 %v1320, %v1319
      %v1655 = vpack.c.b16 %v1322, %v1321
      %v1656 = vpack.c.b16 %v1324, %v1323
      %v1657 = vpack.c.b16 %v1326, %v1325
      %v1658 = vpack.c.b16 %v1328, %v1327
      %v1659 = vpack.c.b16 %v1330, %v1329
      %v1660 = vpack.c.b16 %v1332, %v1331
      %v1661 = vpack.c.b16 %v1334, %v1333
      %v1662 = vpack.c.b16 %v1336, %v1335
      %v1663 = vpack.c.b16 %v1338, %v1337
      %v1664 = vpack.c.b16 %v1340, %v1339
      %v1665 = vpack.c.b16 %v1342, %v1341
      %v1666 = vpack.c.b16 %v1344, %v1343
      %v1667 = vpack.c.b16 %v1346, %v1345
      %v1668 = vpack.c.b16 %v1348, %v1347
      %v1669 = vpack.c.b16 %v1350, %v1349
      %v1670 = vpack.c.b16 %v1352, %v1351
      %v1671 = vpack.c.b16 %v1354, %v1353
      %v1672 = vpack.c.b16 %v1356, %v1355
      %v1673 = vpack.c.b16 %v1358, %v1357
      %v1674 = vpack.c.b16 %v1360, %v1359
      %v1675 = vpack.c.b16 %v1362, %v1361
      %v1676 = vpack.c.b16 %v1364, %v1363
      %v1677 = vpack.c.b16 %v1366, %v1365
      %v1678 = vpack.c.b16 %v1368, %v1367
      %v1679 = vpack.c.b16 %v1370, %v1369
      %v1680 = vpack.c.b16 %v1372, %v1371
      %v1681 = vpack.c.b16 %v1374, %v1373
      %v1682 = vpack.c.b16 %v1376, %v1375
      %v1683 = vpack.c.b16 %v1378, %v1377
      %v1684 = vpack.c.b16 %v1380, %v1379
      %v1685 = vpack.c.b16 %v1382, %v1381
      %v1686 = vpack.c.b16 %v1384, %v1383
      %v1687 = vpack.c.b16 %v1386, %v1385
      %v1688 = vpack.c.b16 %v1388, %v1387
      %v1689 = vpack.c.b16 %v1390, %v1389
      %v1690 = vpack.c.b16 %v1392, %v1391
      %v1691 = vpack.c.b16 %v1394, %v1393
      %v1692 = vpack.c.b16 %v1396, %v1395
      %v1693 = vpack.c.b16 %v1398, %v1397
      %v1694 = vpack.c.b16 %v1400, %v1399
      %v1695 = vpack.c.b16 %v1402, %v1401
      %v1696 = vpack.c.b16 %v1404, %v1403
      %v1697 = vpack.c.b16 %v1406, %v1405
      %v1698 = vpack.c.b16 %v1408, %v1407
      %v1699 = vpack.c.b16 %v1410, %v1409
      %v1700 = vpack.c.b16 %v1412, %v1411
      %v1701 = vpack.c.b16 %v1414, %v1413
      %v1702 = vpack.c.b16 %v1416, %v1415
      %v1703 = vpack.c.b16 %v1418, %v1417
      %v1704 = vpack.c.b16 %v1420, %v1419
      %v1705 = vpack.c.b16 %v1422, %v1421
      %v1706 = vpack.c.b16 %v1424, %v1423
      %v1707 = vpack.c.b16 %v1426, %v1425
      %v1708 = vpack.c.b16 %v1428, %v1427
      %v1709 = vpack.c.b16 %v1430, %v1429
      %v1710 = vpack.c.b16 %v1432, %v1431
      %v1711 = vpack.c.b16 %v1434, %v1433
      %v1712 = vpack.c.b16 %v1436, %v1435
      %v1713 = vpack.c.b16 %v1438, %v1437
      %v1714 = vpack.c.b16 %v1440, %v1439
      %v1715 = vpack.c.b16 %v1442, %v1441
      %v1716 = vpack.c.b16 %v1444, %v1443
      %v1717 = vpack.c.b16 %v1446, %v1445
      %v1718 = vpack.c.b16 %v1448, %v1447
      %v1719 = vpack.c.b16 %v1450, %v1449
      %v1720 = vpack.c.b16 %v1452, %v1451
      %v1721 = vpack.c.b16 %v1454, %v1453
      %v1722 = vpack.c.b16 %v1456, %v1455
      %v1723 = vpack.c.b16 %v1458, %v1457
      %v1724 = vpack.c.b16 %v1460, %v1459
      %v1725 = vpack.c.b16 %v1462, %v1461
      %v1726 = vpack.c.b16 %v1464, %v1463
      %v1727 = vpack.c.b16 %v1466, %v1465
      %v1728 = vpack.c.b16 %v1468, %v1467
      %v1729 = vpack.c.b16 %v1470, %v1469
      %v1730 = vpack.c.b16 %v1472, %v1471
      %v1731 = vpack.c.b16 %v1474, %v1473
      %v1732 = vpack.c.b16 %v1476, %v1475
      %v1733 = vpack.c.b16 %v1478, %v1477
      %v1734 = vpack.c.b16 %v1480, %v1479
      %v1735 = vpack.c.b16 %v1482, %v1481
      %v1736 = vpack.c.b16 %v1484, %v1483
      %v1737 = vpack.c.b16 %v1486, %v1485
      %v1738 = vpack.c.b16 %v1488, %v1487
      %v1739 = vpack.c.b16 %v1490, %v1489
      %v1740 = vpack.c.b16 %v1492, %v1491
      %v1741 = vpack.c.b16 %v1494, %v1493
      %v1742 = vpack.c.b16 %v1496, %v1495
      %v1743 = vpack.c.b16 %v1498, %v1497
      %v1744 = vpack.c.b16 %v1500, %v1499
      %v1745 = vpack.c.b16 %v1502, %v1501
      %v1746 = vpack.c.b16 %v1504, %v1503
      %v1747 = vpack.c.b16 %v1506, %v1505
      %v1748 = vpack.c.b16 %v1508, %v1507
      %v1749 = vpack.c.b16 %v1510, %v1509
      %v1750 = vpack.c.b16 %v1512, %v1511
      %v1751 = vpack.c.b16 %v1514, %v1513
      %v1752 = vpack.c.b16 %v1516, %v1515
      %v1753 = vpack.c.b16 %v1518, %v1517
      %v1754 = vpack.c.b16 %v1520, %v1519
      %v1755 = vpack.c.b16 %v1522, %v1521
      %v1756 = vpack.c.b16 %v1524, %v1523
      %v1757 = vpack.c.b16 %v1526, %v1525
      %v1758 = vpack.c.b16 %v1528, %v1527
      %v1759 = vpack.c.b16 %v1530, %v1529
      %v1760 = vpack.c.b16 %v1532, %v1531
      %v1761 = vpack.c.b16 %v1534, %v1533
      %v1762 = vpack.c.b16 %v1536, %v1535
      %v1763 = vpack.c.b16 %v1538, %v1537
      %v1764 = vpack.c.b16 %v1540, %v1539
      %v1765 = vpack.c.b16 %v1542, %v1541
      %v1766 = vpack.c.b16 %v1544, %v1543
      %v1767 = vpack.c.b16 %v1546, %v1545
      %v1768 = vpack.c.b16 %v1548, %v1547
      %v1769 = vpack.c.b16 %v1550, %v1549
      %v1770 = vpack.c.b16 %v1552, %v1551
      %v1771 = vpack.c.b16 %v1554, %v1553
      %v1772 = vpack.c.b16 %v1556, %v1555
      %v1773 = vpack.c.b16 %v1558, %v1557
      %v1774 = vpack.c.b16 %v1560, %v1559
      %v1775 = vpack.c.b16 %v1562, %v1561
      %v1776 = vpack.c.b16 %v1564, %v1563
      %v1777 = vpack.c.b16 %v1566, %v1565
      %v1778 = vpack.c.b16 %v1568, %v1567
      %v1779 = vpack.c.b16 %v1570, %v1569
      %v1780 = vpack.c.b16 %v1572, %v1571
      %v1781 = vpack.c.b16 %v1574, %v1573
      %v1782 = vpack.c.b16 %v1576, %v1575
      %v1783 = vpack.c.b16 %v1578, %v1577
      %v1784 = vpack.c.b16 %v1580, %v1579
      %v1785 = vpack.c.b16 %v1582, %v1581
      %v1786 = vpack.c.b16 %v1584, %v1583
      %v1787 = vpack.c.b16 %v1586, %v1585
      %v1788 = vpack.c.b16 %v1588, %v1587
      %v1789 = vpack.c.b16 %v1590, %v1589
      %v1790 = vpack.c.b16 %v1592, %v1591
      %v1791 = vpack.c.b16 %v1594, %v1593
      %v1792 = vpack.c.b16 %v1596, %v1595
      %v1793 = vpack.c.b16 %v1598, %v1597
      %v1794 = vpack.c.b16 %v1600, %v1599
      %v1795 = vpack.c.b16 %v1602, %v1601
      %v1796 = vpack.c.b16 %v1604, %v1603
      %1989 = vmatprep.subr.bf16.mxu0 0
      %1990 = vmatpush1.bf16.msra.mxu0 %v1605
      %1991 = vmatprep.subr.bf16.mxu0 0
      %1992 = vmatpush1.bf16.msra.mxu0 %v1606
      %1993 = vmatprep.subr.bf16.mxu0 0
      %1994 = vmatpush1.bf16.msra.mxu0 %v1607
      %1995 = vmatprep.subr.bf16.mxu0 0
      %1996 = vmatpush1.bf16.msra.mxu0 %v1608
      %1997 = vmatprep.subr.bf16.mxu0 0
      %1998 = vmatpush1.bf16.msra.mxu0 %v1609
      %1999 = vmatprep.subr.bf16.mxu0 0
      %2000 = vmatpush1.bf16.msra.mxu0 %v1610
      %2001 = vmatprep.subr.bf16.mxu0 0
      %2002 = vmatpush1.bf16.msra.mxu0 %v1611
      %2003 = vmatprep.subr.bf16.mxu0 0
      %2004 = vmatpush1.bf16.msra.mxu0 %v1612
      %2005 = vmatprep.subr.bf16.mxu0 0
      %2006 = vmatpush1.bf16.msra.mxu0 %v1613
      %2007 = vmatprep.subr.bf16.mxu0 0
      %2008 = vmatpush1.bf16.msra.mxu0 %v1614
      %2009 = vmatprep.subr.bf16.mxu0 0
      %2010 = vmatpush1.bf16.msra.mxu0 %v1615
      %2011 = vmatprep.subr.bf16.mxu0 0
      %2012 = vmatpush1.bf16.msra.mxu0 %v1616
      %2013 = vmatprep.subr.bf16.mxu0 0
      %2014 = vmatpush1.bf16.msra.mxu0 %v1617
      %2015 = vmatprep.subr.bf16.mxu0 0
      %2016 = vmatpush1.bf16.msra.mxu0 %v1618
      %2017 = vmatprep.subr.bf16.mxu0 0
      %2018 = vmatpush1.bf16.msra.mxu0 %v1619
      %2019 = vmatprep.subr.bf16.mxu0 0
      %2020 = vmatpush1.bf16.msra.mxu0 %v1620
      %2021 = vmatprep.mubr.bf16.mxu0 %v790
      %2022 = vmatmul.mubr.bf16.gmra.mrb[0].mxu0 %v789
      %v2023 = vpop.f32.mrb[0].mxu0
      %v2024 = vadd.f32 0.0, %v2023
      %v2025 = vpop.f32.mrb[0].mxu0
      %v2026 = vpop.f32.mrb[0].mxu0
      %v2027 = vpop.f32.mrb[0].mxu0
      %2028 = vdwg.mxu0
      %2029 = vmatprep.subr.bf16.mxu0 0
      %2030 = vmatpush1.bf16.msra.mxu0 %v1621
      %2031 = vmatprep.subr.bf16.mxu0 0
      %2032 = vmatpush1.bf16.msra.mxu0 %v1622
      %2033 = vmatprep.subr.bf16.mxu0 0
      %2034 = vmatpush1.bf16.msra.mxu0 %v1623
      %2035 = vmatprep.subr.bf16.mxu0 0
      %2036 = vmatpush1.bf16.msra.mxu0 %v1624
      %2037 = vmatprep.subr.bf16.mxu0 0
      %2038 = vmatpush1.bf16.msra.mxu0 %v1625
      %2039 = vmatprep.subr.bf16.mxu0 0
      %2040 = vmatpush1.bf16.msra.mxu0 %v1626
      %2041 = vmatprep.subr.bf16.mxu0 0
      %2042 = vmatpush1.bf16.msra.mxu0 %v1627
      %2043 = vmatprep.subr.bf16.mxu0 0
      %2044 = vmatpush1.bf16.msra.mxu0 %v1628
      %2045 = vmatprep.subr.bf16.mxu0 0
      %2046 = vmatpush1.bf16.msra.mxu0 %v1629
      %2047 = vmatprep.subr.bf16.mxu0 0
      %2048 = vmatpush1.bf16.msra.mxu0 %v1630
      %2049 = vmatprep.subr.bf16.mxu0 0
      %2050 = vmatpush1.bf16.msra.mxu0 %v1631
      %2051 = vmatprep.subr.bf16.mxu0 0
      %2052 = vmatpush1.bf16.msra.mxu0 %v1632
      %2053 = vmatprep.subr.bf16.mxu0 0
      %2054 = vmatpush1.bf16.msra.mxu0 %v1633
      %2055 = vmatprep.subr.bf16.mxu0 0
      %2056 = vmatpush1.bf16.msra.mxu0 %v1634
      %2057 = vmatprep.subr.bf16.mxu0 0
      %2058 = vmatpush1.bf16.msra.mxu0 %v1635
      %2059 = vmatprep.subr.bf16.mxu0 0
      %2060 = vmatpush1.bf16.msra.mxu0 %v1636
      %2061 = vmatprep.mubr.bf16.mxu0 %v792
      %2062 = vmatmul.mubr.bf16.gmra.mrb[0].mxu0 %v791
      %v2063 = vpop.f32.mrb[0].mxu0
      %v2064 = vadd.f32 %v2024, %v2063
      %v2065 = vpop.f32.mrb[0].mxu0
      %v2066 = vpop.f32.mrb[0].mxu0
      %v2067 = vpop.f32.mrb[0].mxu0
      %2068 = vdwg.mxu0
      %2069 = vmatprep.subr.bf16.mxu0 0
      %2070 = vmatpush1.bf16.msra.mxu0 %v1637
      %2071 = vmatprep.subr.bf16.mxu0 0
      %2072 = vmatpush1.bf16.msra.mxu0 %v1638
      %2073 = vmatprep.subr.bf16.mxu0 0
      %2074 = vmatpush1.bf16.msra.mxu0 %v1639
      %2075 = vmatprep.subr.bf16.mxu0 0
      %2076 = vmatpush1.bf16.msra.mxu0 %v1640
      %2077 = vmatprep.subr.bf16.mxu0 0
      %2078 = vmatpush1.bf16.msra.mxu0 %v1641
      %2079 = vmatprep.subr.bf16.mxu0 0
      %2080 = vmatpush1.bf16.msra.mxu0 %v1642
      %2081 = vmatprep.subr.bf16.mxu0 0
      %2082 = vmatpush1.bf16.msra.mxu0 %v1643
      %2083 = vmatprep.subr.bf16.mxu0 0
      %2084 = vmatpush1.bf16.msra.mxu0 %v1644
      %2085 = vmatprep.subr.bf16.mxu0 0
      %2086 = vmatpush1.bf16.msra.mxu0 %v1645
      %2087 = vmatprep.subr.bf16.mxu0 0
      %2088 = vmatpush1.bf16.msra.mxu0 %v1646
      %2089 = vmatprep.subr.bf16.mxu0 0
      %2090 = vmatpush1.bf16.msra.mxu0 %v1647
      %2091 = vmatprep.subr.bf16.mxu0 0
      %2092 = vmatpush1.bf16.msra.mxu0 %v1648
      %2093 = vmatprep.subr.bf16.mxu0 0
      %2094 = vmatpush1.bf16.msra.mxu0 %v1649
      %2095 = vmatprep.subr.bf16.mxu0 0
      %2096 = vmatpush1.bf16.msra.mxu0 %v1650
      %2097 = vmatprep.subr.bf16.mxu0 0
      %2098 = vmatpush1.bf16.msra.mxu0 %v1651
      %2099 = vmatprep.subr.bf16.mxu0 0
      %2100 = vmatpush1.bf16.msra.mxu0 %v1652
      %2101 = vmatprep.mubr.bf16.mxu0 %v794
      %2102 = vmatmul.mubr.bf16.gmra.mrb[0].mxu0 %v793
      %v2103 = vpop.f32.mrb[0].mxu0
      %v2104 = vadd.f32 %v2064, %v2103
      %v2105 = vpop.f32.mrb[0].mxu0
      %v2106 = vpop.f32.mrb[0].mxu0
      %v2107 = vpop.f32.mrb[0].mxu0
      %2108 = vdwg.mxu0
      %2109 = vmatprep.subr.bf16.mxu0 0
      %2110 = vmatpush1.bf16.msra.mxu0 %v1653
      %2111 = vmatprep.subr.bf16.mxu0 0
      %2112 = vmatpush1.bf16.msra.mxu0 %v1654
      %2113 = vmatprep.subr.bf16.mxu0 0
      %2114 = vmatpush1.bf16.msra.mxu0 %v1655
      %2115 = vmatprep.subr.bf16.mxu0 0
      %2116 = vmatpush1.bf16.msra.mxu0 %v1656
      %2117 = vmatprep.subr.bf16.mxu0 0
      %2118 = vmatpush1.bf16.msra.mxu0 %v1657
      %2119 = vmatprep.subr.bf16.mxu0 0
      %2120 = vmatpush1.bf16.msra.mxu0 %v1658
      %2121 = vmatprep.subr.bf16.mxu0 0
      %2122 = vmatpush1.bf16.msra.mxu0 %v1659
      %2123 = vmatprep.subr.bf16.mxu0 0
      %2124 = vmatpush1.bf16.msra.mxu0 %v1660
      %2125 = vmatprep.subr.bf16.mxu0 0
      %2126 = vmatpush1.bf16.msra.mxu0 %v1661
      %2127 = vmatprep.subr.bf16.mxu0 0
      %2128 = vmatpush1.bf16.msra.mxu0 %v1662
      %2129 = vmatprep.subr.bf16.mxu0 0
      %2130 = vmatpush1.bf16.msra.mxu0 %v1663
      %2131 = vmatprep.subr.bf16.mxu0 0
      %2132 = vmatpush1.bf16.msra.mxu0 %v1664
      %2133 = vmatprep.subr.bf16.mxu0 0
      %2134 = vmatpush1.bf16.msra.mxu0 %v1665
      %2135 = vmatprep.subr.bf16.mxu0 0
      %2136 = vmatpush1.bf16.msra.mxu0 %v1666
      %2137 = vmatprep.subr.bf16.mxu0 0
      %2138 = vmatpush1.bf16.msra.mxu0 %v1667
      %2139 = vmatprep.subr.bf16.mxu0 0
      %2140 = vmatpush1.bf16.msra.mxu0 %v1668
      %2141 = vmatprep.mubr.bf16.mxu0 %v796
      %2142 = vmatmul.mubr.bf16.gmra.mrb[0].mxu0 %v795
      %v2143 = vpop.f32.mrb[0].mxu0
      %v2144 = vadd.f32 %v2104, %v2143
      %v2145 = vpop.f32.mrb[0].mxu0
      %v2146 = vpop.f32.mrb[0].mxu0
      %v2147 = vpop.f32.mrb[0].mxu0
      %2148 = vdwg.mxu0
      %2149 = vmatprep.subr.bf16.mxu0 0
      %2150 = vmatpush1.bf16.msra.mxu0 %v1669
      %2151 = vmatprep.subr.bf16.mxu0 0
      %2152 = vmatpush1.bf16.msra.mxu0 %v1670
      %2153 = vmatprep.subr.bf16.mxu0 0
      %2154 = vmatpush1.bf16.msra.mxu0 %v1671
      %2155 = vmatprep.subr.bf16.mxu0 0
      %2156 = vmatpush1.bf16.msra.mxu0 %v1672
      %2157 = vmatprep.subr.bf16.mxu0 0
      %2158 = vmatpush1.bf16.msra.mxu0 %v1673
      %2159 = vmatprep.subr.bf16.mxu0 0
      %2160 = vmatpush1.bf16.msra.mxu0 %v1674
      %2161 = vmatprep.subr.bf16.mxu0 0
      %2162 = vmatpush1.bf16.msra.mxu0 %v1675
      %2163 = vmatprep.subr.bf16.mxu0 0
      %2164 = vmatpush1.bf16.msra.mxu0 %v1676
      %2165 = vmatprep.subr.bf16.mxu0 0
      %2166 = vmatpush1.bf16.msra.mxu0 %v1677
      %2167 = vmatprep.subr.bf16.mxu0 0
      %2168 = vmatpush1.bf16.msra.mxu0 %v1678
      %2169 = vmatprep.subr.bf16.mxu0 0
      %2170 = vmatpush1.bf16.msra.mxu0 %v1679
      %2171 = vmatprep.subr.bf16.mxu0 0
      %2172 = vmatpush1.bf16.msra.mxu0 %v1680
      %2173 = vmatprep.subr.bf16.mxu0 0
      %2174 = vmatpush1.bf16.msra.mxu0 %v1681
      %2175 = vmatprep.subr.bf16.mxu0 0
      %2176 = vmatpush1.bf16.msra.mxu0 %v1682
      %2177 = vmatprep.subr.bf16.mxu0 0
      %2178 = vmatpush1.bf16.msra.mxu0 %v1683
      %2179 = vmatprep.subr.bf16.mxu0 0
      %2180 = vmatpush1.bf16.msra.mxu0 %v1684
      %2181 = vmatprep.mubr.bf16.mxu0 %v798
      %2182 = vmatmul.mubr.bf16.gmra.mrb[0].mxu0 %v797
      %v2183 = vpop.f32.mrb[0].mxu0
      %v2184 = vadd.f32 %v2144, %v2183
      %v2185 = vpop.f32.mrb[0].mxu0
      %v2186 = vpop.f32.mrb[0].mxu0
      %v2187 = vpop.f32.mrb[0].mxu0
      %2188 = vdwg.mxu0
      %2189 = vmatprep.subr.bf16.mxu0 0
      %2190 = vmatpush1.bf16.msra.mxu0 %v1685
      %2191 = vmatprep.subr.bf16.mxu0 0
      %2192 = vmatpush1.bf16.msra.mxu0 %v1686
      %2193 = vmatprep.subr.bf16.mxu0 0
      %2194 = vmatpush1.bf16.msra.mxu0 %v1687
      %2195 = vmatprep.subr.bf16.mxu0 0
      %2196 = vmatpush1.bf16.msra.mxu0 %v1688
      %2197 = vmatprep.subr.bf16.mxu0 0
      %2198 = vmatpush1.bf16.msra.mxu0 %v1689
      %2199 = vmatprep.subr.bf16.mxu0 0
      %2200 = vmatpush1.bf16.msra.mxu0 %v1690
      %2201 = vmatprep.subr.bf16.mxu0 0
      %2202 = vmatpush1.bf16.msra.mxu0 %v1691
      %2203 = vmatprep.subr.bf16.mxu0 0
      %2204 = vmatpush1.bf16.msra.mxu0 %v1692
      %2205 = vmatprep.subr.bf16.mxu0 0
      %2206 = vmatpush1.bf16.msra.mxu0 %v1693
      %2207 = vmatprep.subr.bf16.mxu0 0
      %2208 = vmatpush1.bf16.msra.mxu0 %v1694
      %2209 = vmatprep.subr.bf16.mxu0 0
      %2210 = vmatpush1.bf16.msra.mxu0 %v1695
      %2211 = vmatprep.subr.bf16.mxu0 0
      %2212 = vmatpush1.bf16.msra.mxu0 %v1696
      %2213 = vmatprep.subr.bf16.mxu0 0
      %2214 = vmatpush1.bf16.msra.mxu0 %v1697
      %2215 = vmatprep.subr.bf16.mxu0 0
      %2216 = vmatpush1.bf16.msra.mxu0 %v1698
      %2217 = vmatprep.subr.bf16.mxu0 0
      %2218 = vmatpush1.bf16.msra.mxu0 %v1699
      %2219 = vmatprep.subr.bf16.mxu0 0
      %2220 = vmatpush1.bf16.msra.mxu0 %v1700
      %2221 = vmatprep.mubr.bf16.mxu0 %v800
      %2222 = vmatmul.mubr.bf16.gmra.mrb[0].mxu0 %v799
      %v2223 = vpop.f32.mrb[0].mxu0
      %v2224 = vadd.f32 %v2184, %v2223
      %v2225 = vpop.f32.mrb[0].mxu0
      %v2226 = vpop.f32.mrb[0].mxu0
      %v2227 = vpop.f32.mrb[0].mxu0
      %2228 = vdwg.mxu0
      %2229 = vmatprep.subr.bf16.mxu0 0
      %2230 = vmatpush1.bf16.msra.mxu0 %v1701
      %2231 = vmatprep.subr.bf16.mxu0 0
      %2232 = vmatpush1.bf16.msra.mxu0 %v1702
      %2233 = vmatprep.subr.bf16.mxu0 0
      %2234 = vmatpush1.bf16.msra.mxu0 %v1703
      %2235 = vmatprep.subr.bf16.mxu0 0
      %2236 = vmatpush1.bf16.msra.mxu0 %v1704
      %2237 = vmatprep.subr.bf16.mxu0 0
      %2238 = vmatpush1.bf16.msra.mxu0 %v1705
      %2239 = vmatprep.subr.bf16.mxu0 0
      %2240 = vmatpush1.bf16.msra.mxu0 %v1706
      %2241 = vmatprep.subr.bf16.mxu0 0
      %2242 = vmatpush1.bf16.msra.mxu0 %v1707
      %2243 = vmatprep.subr.bf16.mxu0 0
      %2244 = vmatpush1.bf16.msra.mxu0 %v1708
      %2245 = vmatprep.subr.bf16.mxu0 0
      %2246 = vmatpush1.bf16.msra.mxu0 %v1709
      %2247 = vmatprep.subr.bf16.mxu0 0
      %2248 = vmatpush1.bf16.msra.mxu0 %v1710
      %2249 = vmatprep.subr.bf16.mxu0 0
      %2250 = vmatpush1.bf16.msra.mxu0 %v1711
      %2251 = vmatprep.subr.bf16.mxu0 0
      %2252 = vmatpush1.bf16.msra.mxu0 %v1712
      %2253 = vmatprep.subr.bf16.mxu0 0
      %2254 = vmatpush1.bf16.msra.mxu0 %v1713
      %2255 = vmatprep.subr.bf16.mxu0 0
      %2256 = vmatpush1.bf16.msra.mxu0 %v1714
      %2257 = vmatprep.subr.bf16.mxu0 0
      %2258 = vmatpush1.bf16.msra.mxu0 %v1715
      %2259 = vmatprep.subr.bf16.mxu0 0
      %2260 = vmatpush1.bf16.msra.mxu0 %v1716
      %2261 = vmatprep.mubr.bf16.mxu0 %v802
      %2262 = vmatmul.mubr.bf16.gmra.mrb[0].mxu0 %v801
      %v2263 = vpop.f32.mrb[0].mxu0
      %v2264 = vadd.f32 %v2224, %v2263
      %v2265 = vpop.f32.mrb[0].mxu0
      %v2266 = vpop.f32.mrb[0].mxu0
      %v2267 = vpop.f32.mrb[0].mxu0
      %2268 = vdwg.mxu0
      %2269 = vmatprep.subr.bf16.mxu0 0
      %2270 = vmatpush1.bf16.msra.mxu0 %v1717
      %2271 = vmatprep.subr.bf16.mxu0 0
      %2272 = vmatpush1.bf16.msra.mxu0 %v1718
      %2273 = vmatprep.subr.bf16.mxu0 0
      %2274 = vmatpush1.bf16.msra.mxu0 %v1719
      %2275 = vmatprep.subr.bf16.mxu0 0
      %2276 = vmatpush1.bf16.msra.mxu0 %v1720
      %2277 = vmatprep.subr.bf16.mxu0 0
      %2278 = vmatpush1.bf16.msra.mxu0 %v1721
      %2279 = vmatprep.subr.bf16.mxu0 0
      %2280 = vmatpush1.bf16.msra.mxu0 %v1722
      %2281 = vmatprep.subr.bf16.mxu0 0
      %2282 = vmatpush1.bf16.msra.mxu0 %v1723
      %2283 = vmatprep.subr.bf16.mxu0 0
      %2284 = vmatpush1.bf16.msra.mxu0 %v1724
      %2285 = vmatprep.subr.bf16.mxu0 0
      %2286 = vmatpush1.bf16.msra.mxu0 %v1725
      %2287 = vmatprep.subr.bf16.mxu0 0
      %2288 = vmatpush1.bf16.msra.mxu0 %v1726
      %2289 = vmatprep.subr.bf16.mxu0 0
      %2290 = vmatpush1.bf16.msra.mxu0 %v1727
      %2291 = vmatprep.subr.bf16.mxu0 0
      %2292 = vmatpush1.bf16.msra.mxu0 %v1728
      %2293 = vmatprep.subr.bf16.mxu0 0
      %2294 = vmatpush1.bf16.msra.mxu0 %v1729
      %2295 = vmatprep.subr.bf16.mxu0 0
      %2296 = vmatpush1.bf16.msra.mxu0 %v1730
      %2297 = vmatprep.subr.bf16.mxu0 0
      %2298 = vmatpush1.bf16.msra.mxu0 %v1731
      %2299 = vmatprep.subr.bf16.mxu0 0
      %2300 = vmatpush1.bf16.msra.mxu0 %v1732
      %2301 = vmatprep.mubr.bf16.mxu0 %v804
      %2302 = vmatmul.mubr.bf16.gmra.mrb[0].mxu0 %v803
      %v2303 = vpop.f32.mrb[0].mxu0
      %v2304 = vadd.f32 %v2264, %v2303
      %v2305 = vpop.f32.mrb[0].mxu0
      %v2306 = vpop.f32.mrb[0].mxu0
      %v2307 = vpop.f32.mrb[0].mxu0
      %2308 = vdwg.mxu0
      %2309 = vmatprep.subr.bf16.mxu0 0
      %2310 = vmatpush1.bf16.msra.mxu0 %v1733
      %2311 = vmatprep.subr.bf16.mxu0 0
      %2312 = vmatpush1.bf16.msra.mxu0 %v1734
      %2313 = vmatprep.subr.bf16.mxu0 0
      %2314 = vmatpush1.bf16.msra.mxu0 %v1735
      %2315 = vmatprep.subr.bf16.mxu0 0
      %2316 = vmatpush1.bf16.msra.mxu0 %v1736
      %2317 = vmatprep.subr.bf16.mxu0 0
      %2318 = vmatpush1.bf16.msra.mxu0 %v1737
      %2319 = vmatprep.subr.bf16.mxu0 0
      %2320 = vmatpush1.bf16.msra.mxu0 %v1738
      %2321 = vmatprep.subr.bf16.mxu0 0
      %2322 = vmatpush1.bf16.msra.mxu0 %v1739
      %2323 = vmatprep.subr.bf16.mxu0 0
      %2324 = vmatpush1.bf16.msra.mxu0 %v1740
      %2325 = vmatprep.subr.bf16.mxu0 0
      %2326 = vmatpush1.bf16.msra.mxu0 %v1741
      %2327 = vmatprep.subr.bf16.mxu0 0
      %2328 = vmatpush1.bf16.msra.mxu0 %v1742
      %2329 = vmatprep.subr.bf16.mxu0 0
      %2330 = vmatpush1.bf16.msra.mxu0 %v1743
      %2331 = vmatprep.subr.bf16.mxu0 0
      %2332 = vmatpush1.bf16.msra.mxu0 %v1744
      %2333 = vmatprep.subr.bf16.mxu0 0
      %2334 = vmatpush1.bf16.msra.mxu0 %v1745
      %2335 = vmatprep.subr.bf16.mxu0 0
      %2336 = vmatpush1.bf16.msra.mxu0 %v1746
      %2337 = vmatprep.subr.bf16.mxu0 0
      %2338 = vmatpush1.bf16.msra.mxu0 %v1747
      %2339 = vmatprep.subr.bf16.mxu0 0
      %2340 = vmatpush1.bf16.msra.mxu0 %v1748
      %2341 = vmatprep.mubr.bf16.mxu0 %v806
      %2342 = vmatmul.mubr.bf16.gmra.mrb[0].mxu0 %v805
      %v2343 = vpop.f32.mrb[0].mxu0
      %v2344 = vadd.f32 %v2304, %v2343
      %v2345 = vpop.f32.mrb[0].mxu0
      %v2346 = vpop.f32.mrb[0].mxu0
      %v2347 = vpop.f32.mrb[0].mxu0
      %2348 = vdwg.mxu0
      %2349 = vmatprep.subr.bf16.mxu0 0
      %2350 = vmatpush1.bf16.msra.mxu0 %v1749
      %2351 = vmatprep.subr.bf16.mxu0 0
      %2352 = vmatpush1.bf16.msra.mxu0 %v1750
      %2353 = vmatprep.subr.bf16.mxu0 0
      %2354 = vmatpush1.bf16.msra.mxu0 %v1751
      %2355 = vmatprep.subr.bf16.mxu0 0
      %2356 = vmatpush1.bf16.msra.mxu0 %v1752
      %2357 = vmatprep.subr.bf16.mxu0 0
      %2358 = vmatpush1.bf16.msra.mxu0 %v1753
      %2359 = vmatprep.subr.bf16.mxu0 0
      %2360 = vmatpush1.bf16.msra.mxu0 %v1754
      %2361 = vmatprep.subr.bf16.mxu0 0
      %2362 = vmatpush1.bf16.msra.mxu0 %v1755
      %2363 = vmatprep.subr.bf16.mxu0 0
      %2364 = vmatpush1.bf16.msra.mxu0 %v1756
      %2365 = vmatprep.subr.bf16.mxu0 0
      %2366 = vmatpush1.bf16.msra.mxu0 %v1757
      %2367 = vmatprep.subr.bf16.mxu0 0
      %2368 = vmatpush1.bf16.msra.mxu0 %v1758
      %2369 = vmatprep.subr.bf16.mxu0 0
      %2370 = vmatpush1.bf16.msra.mxu0 %v1759
      %2371 = vmatprep.subr.bf16.mxu0 0
      %2372 = vmatpush1.bf16.msra.mxu0 %v1760
      %2373 = vmatprep.subr.bf16.mxu0 0
      %2374 = vmatpush1.bf16.msra.mxu0 %v1761
      %2375 = vmatprep.subr.bf16.mxu0 0
      %2376 = vmatpush1.bf16.msra.mxu0 %v1762
      %2377 = vmatprep.subr.bf16.mxu0 0
      %2378 = vmatpush1.bf16.msra.mxu0 %v1763
      %2379 = vmatprep.subr.bf16.mxu0 0
      %2380 = vmatpush1.bf16.msra.mxu0 %v1764
      %2381 = vmatprep.mubr.bf16.mxu0 %v808
      %2382 = vmatmul.mubr.bf16.gmra.mrb[0].mxu0 %v807
      %v2383 = vpop.f32.mrb[0].mxu0
      %v2384 = vadd.f32 %v2344, %v2383
      %v2385 = vpop.f32.mrb[0].mxu0
      %v2386 = vpop.f32.mrb[0].mxu0
      %v2387 = vpop.f32.mrb[0].mxu0
      %2388 = vdwg.mxu0
      %2389 = vmatprep.subr.bf16.mxu0 0
      %2390 = vmatpush1.bf16.msra.mxu0 %v1765
      %2391 = vmatprep.subr.bf16.mxu0 0
      %2392 = vmatpush1.bf16.msra.mxu0 %v1766
      %2393 = vmatprep.subr.bf16.mxu0 0
      %2394 = vmatpush1.bf16.msra.mxu0 %v1767
      %2395 = vmatprep.subr.bf16.mxu0 0
      %2396 = vmatpush1.bf16.msra.mxu0 %v1768
      %2397 = vmatprep.subr.bf16.mxu0 0
      %2398 = vmatpush1.bf16.msra.mxu0 %v1769
      %2399 = vmatprep.subr.bf16.mxu0 0
      %2400 = vmatpush1.bf16.msra.mxu0 %v1770
      %2401 = vmatprep.subr.bf16.mxu0 0
      %2402 = vmatpush1.bf16.msra.mxu0 %v1771
      %2403 = vmatprep.subr.bf16.mxu0 0
      %2404 = vmatpush1.bf16.msra.mxu0 %v1772
      %2405 = vmatprep.subr.bf16.mxu0 0
      %2406 = vmatpush1.bf16.msra.mxu0 %v1773
      %2407 = vmatprep.subr.bf16.mxu0 0
      %2408 = vmatpush1.bf16.msra.mxu0 %v1774
      %2409 = vmatprep.subr.bf16.mxu0 0
      %2410 = vmatpush1.bf16.msra.mxu0 %v1775
      %2411 = vmatprep.subr.bf16.mxu0 0
      %2412 = vmatpush1.bf16.msra.mxu0 %v1776
      %2413 = vmatprep.subr.bf16.mxu0 0
      %2414 = vmatpush1.bf16.msra.mxu0 %v1777
      %2415 = vmatprep.subr.bf16.mxu0 0
      %2416 = vmatpush1.bf16.msra.mxu0 %v1778
      %2417 = vmatprep.subr.bf16.mxu0 0
      %2418 = vmatpush1.bf16.msra.mxu0 %v1779
      %2419 = vmatprep.subr.bf16.mxu0 0
      %2420 = vmatpush1.bf16.msra.mxu0 %v1780
      %2421 = vmatprep.mubr.bf16.mxu0 %v810
      %2422 = vmatmul.mubr.bf16.gmra.mrb[0].mxu0 %v809
      %v2423 = vpop.f32.mrb[0].mxu0
      %v2424 = vadd.f32 %v2384, %v2423
      %v2425 = vpop.f32.mrb[0].mxu0
      %v2426 = vpop.f32.mrb[0].mxu0
      %v2427 = vpop.f32.mrb[0].mxu0
      %2428 = vdwg.mxu0
      %2429 = vmatprep.subr.bf16.mxu0 0
      %2430 = vmatpush1.bf16.msra.mxu0 %v1781
      %2431 = vmatprep.subr.bf16.mxu0 0
      %2432 = vmatpush1.bf16.msra.mxu0 %v1782
      %2433 = vmatprep.subr.bf16.mxu0 0
      %2434 = vmatpush1.bf16.msra.mxu0 %v1783
      %2435 = vmatprep.subr.bf16.mxu0 0
      %2436 = vmatpush1.bf16.msra.mxu0 %v1784
      %2437 = vmatprep.subr.bf16.mxu0 0
      %2438 = vmatpush1.bf16.msra.mxu0 %v1785
      %2439 = vmatprep.subr.bf16.mxu0 0
      %2440 = vmatpush1.bf16.msra.mxu0 %v1786
      %2441 = vmatprep.subr.bf16.mxu0 0
      %2442 = vmatpush1.bf16.msra.mxu0 %v1787
      %2443 = vmatprep.subr.bf16.mxu0 0
      %2444 = vmatpush1.bf16.msra.mxu0 %v1788
      %2445 = vmatprep.subr.bf16.mxu0 0
      %2446 = vmatpush1.bf16.msra.mxu0 %v1789
      %2447 = vmatprep.subr.bf16.mxu0 0
      %2448 = vmatpush1.bf16.msra.mxu0 %v1790
      %2449 = vmatprep.subr.bf16.mxu0 0
      %2450 = vmatpush1.bf16.msra.mxu0 %v1791
      %2451 = vmatprep.subr.bf16.mxu0 0
      %2452 = vmatpush1.bf16.msra.mxu0 %v1792
      %2453 = vmatprep.subr.bf16.mxu0 0
      %2454 = vmatpush1.bf16.msra.mxu0 %v1793
      %2455 = vmatprep.subr.bf16.mxu0 0
      %2456 = vmatpush1.bf16.msra.mxu0 %v1794
      %2457 = vmatprep.subr.bf16.mxu0 0
      %2458 = vmatpush1.bf16.msra.mxu0 %v1795
      %2459 = vmatprep.subr.bf16.mxu0 0
      %2460 = vmatpush1.bf16.msra.mxu0 %v1796
      %2461 = vmatprep.mubr.bf16.mxu0 %v812
      %2462 = vmatmul.mubr.bf16.gmra.mrb[0].mxu0 %v811
      %v2463 = vpop.f32.mrb[0].mxu0
      %v2464 = vadd.f32 %v2424, %v2463
      %v2465 = vpop.f32.mrb[0].mxu0
      %v2466 = vpop.f32.mrb[0].mxu0
      %v2467 = vpop.f32.mrb[0].mxu0
      %2468 = vdwg.mxu0
      %v2470 = vrot.slane %v2464, 7
      %vm2472 = vcmask 1040384
      %v2473 = vsel %vm2472, 0.0, %v2470
      %v2474 = vld [vmem:[%s2] sm:$0xff]
      %v2475 = vld [vmem:[%s2 + $0x8] sm:$0x1]
      %v2476 = vadd.f32 %v2473, %v2474
      %v2477 = vadd.f32 %v2470, %v2475
      %v2478 = vld [vmem:[%s7] sm:$0xff]
      %v2479 = vld [vmem:[%s7 + $0x8] sm:$0xff]
      %vm2480 = vcmask 523264
      %v2481 = vsel %vm2480, %v2476, 0.0
      %2482 = vadd.xlane.f32.xlu0 %v2481
      %v2483 = vpop.xlane.xlu0 %2482
      %vm2484 = vcmask 516096
      %v2485 = vsel %vm2484, %v2477, 0.0
      %2486 = vadd.xlane.f32.xlu0 %v2485
      %v2487 = vpop.xlane.xlu0 %2486
      %v2488 = vrcp.pop 64.0
      %v2489 = vmul.f32 %v2483, %v2488
      %v2490 = vmul.f32 %v2487, %v2488
      %v2491 = vsub.f32 %v2476, %v2489
      %v2492 = vsub.f32 %v2477, %v2490
      %v2493 = vmul.f32 %v2491, %v2491
      %v2494 = vmul.f32 %v2492, %v2492
      %v2495 = vsel %vm2480, %v2493, 0.0
      %2496 = vadd.xlane.f32.xlu0 %v2495
      %v2497 = vpop.xlane.xlu0 %2496
      %v2498 = vsel %vm2484, %v2494, 0.0
      %2499 = vadd.xlane.f32.xlu0 %v2498
      %v2500 = vpop.xlane.xlu0 %2499
      %v2501 = vmul.f32 %v2497, %v2488
      %v2502 = vmul.f32 %v2500, %v2488
      %v2503 = vadd.f32 %v2501, 1e-05
      %v2504 = vadd.f32 %v2502, 1e-05
      %v2505 = vrsqrt.pop %v2503
      %v2506 = vrsqrt.pop %v2504
      %v2507 = vmul.f32 %v2491, %v2505
      %v2508 = vmul.f32 %v2492, %v2506
      %v2509 = vlaneseq
      %v2510 = vshrl.u32 %v2509, 7
      %v2511 = vsub.s32 0, %v2510
      %v2512 = vrot.slane %v2478, %v2511
      %v2513 = vmul.f32 %v2507, %v2512
      %v2514 = vmul.f32 %v2508, %v2512
      %v2515 = vlaneseq
      %v2516 = vshrl.u32 %v2515, 7
      %v2517 = vsub.s32 1, %v2516
      %v2518 = vrot.slane %v2478, %v2517
      %v2519 = vadd.f32 %v2513, %v2518
      %v2520 = vadd.f32 %v2514, %v2518
      %v2521 = vpack.c.bf16 %v2520, %v2519
      %v2522 = vld [vmem:[%s3] sm:$0xff]
      %v2523 = vld [vmem:[%s3 + $0x8] sm:$0xff]
      %v2524 = vld [vmem:[%s3 + $0x10] sm:$0xff]
      %v2525 = vld [vmem:[%s3 + $0x18] sm:$0xff]
      %v2526 = vld [vmem:[%s3 + $0x20] sm:$0xff]
      %v2527 = vld [vmem:[%s3 + $0x28] sm:$0xff]
      %v2528 = vld [vmem:[%s3 + $0x30] sm:$0xff]
      %v2529 = vld [vmem:[%s3 + $0x38] sm:$0xff]
      %v2530 = vlaneseq
      %v2531 = vshrl.u32 %v2530, 7
      %v2532 = vsub.s32 4, %v2531
      %v2533 = vrot.slane %v2478, %v2532
      %v2534 = vlaneseq
      %v2535 = vshrl.u32 %v2534, 7
      %v2536 = vsub.s32 4, %v2535
      %v2537 = vrot.slane %v2479, %v2536
      %v2546 = vunpack.c.l.b16 %v2522
      %v2547 = vunpack.c.h.b16 %v2522
      %v2548 = vunpack.c.l.b16 %v2523
      %v2549 = vunpack.c.h.b16 %v2523
      %v2550 = vunpack.c.l.b16 %v2524
      %v2551 = vunpack.c.h.b16 %v2524
      %v2552 = vunpack.c.l.b16 %v2525
      %v2553 = vunpack.c.h.b16 %v2525
      %v2554 = vunpack.c.l.b16 %v2526
      %v2555 = vunpack.c.h.b16 %v2526
      %v2556 = vunpack.c.l.b16 %v2527
      %v2557 = vunpack.c.h.b16 %v2527
      %v2558 = vunpack.c.l.b16 %v2528
      %v2559 = vunpack.c.h.b16 %v2528
      %v2560 = vunpack.c.l.b16 %v2529
      %v2561 = vunpack.c.h.b16 %v2529
      %v2562 = vpack.c.b16 %v2548, %v2546
      %v2563 = vpack.c.b16 %v2549, %v2547
      %v2564 = vpack.c.b16 %v2552, %v2550
      %v2565 = vpack.c.b16 %v2553, %v2551
      %v2566 = vpack.c.b16 %v2556, %v2554
      %v2567 = vpack.c.b16 %v2557, %v2555
      %v2568 = vpack.c.b16 %v2560, %v2558
      %v2569 = vpack.c.b16 %v2561, %v2559
      %v2579 = vsel %vm2480, %v2521, 0
      %2581 = vmatprep.subr.bf16.mxu0 %v2563
      %2582 = vmatpush1.bf16.msra.mxu0 %v2562
      %2583 = vmatprep.subr.bf16.mxu0 %v2565
      %2584 = vmatpush1.bf16.msra.mxu0 %v2564
      %2585 = vmatprep.subr.bf16.mxu0 %v2567
      %2586 = vmatpush1.bf16.msra.mxu0 %v2566
      %2587 = vmatprep.subr.bf16.mxu0 %v2569
      %2588 = vmatpush1.bf16.msra.mxu0 %v2568
      %2589 = vmatprep.subr.bf16.mxu0 0
      %2590 = vmatpush1.bf16.msra.mxu0 0
      %2591 = vmatprep.subr.bf16.mxu0 0
      %2592 = vmatpush1.bf16.msra.mxu0 0
      %2593 = vmatprep.subr.bf16.mxu0 0
      %2594 = vmatpush1.bf16.msra.mxu0 0
      %2595 = vmatprep.subr.bf16.mxu0 0
      %2596 = vmatpush1.bf16.msra.mxu0 0
      %2597 = vmatprep.subr.bf16.mxu0 0
      %2598 = vmatpush1.bf16.msra.mxu0 0
      %2599 = vmatprep.subr.bf16.mxu0 0
      %2600 = vmatpush1.bf16.msra.mxu0 0
      %2601 = vmatprep.subr.bf16.mxu0 0
      %2602 = vmatpush1.bf16.msra.mxu0 0
      %2603 = vmatprep.subr.bf16.mxu0 0
      %2604 = vmatpush1.bf16.msra.mxu0 0
      %2605 = vmatprep.subr.bf16.mxu0 0
      %2606 = vmatpush1.bf16.msra.mxu0 0
      %2607 = vmatprep.subr.bf16.mxu0 0
      %2608 = vmatpush1.bf16.msra.mxu0 0
      %2609 = vmatprep.subr.bf16.mxu0 0
      %2610 = vmatpush1.bf16.msra.mxu0 0
      %2611 = vmatprep.subr.bf16.mxu0 0
      %2612 = vmatpush1.bf16.msra.mxu0 0
      %2613 = vmatprep.mubr.bf16.mxu0 0
      %2614 = vmatmul.mubr.bf16.gmra.mrb[0].mxu0 %v2579
      %v2615 = vpop.f32.mrb[0].mxu0
      %v2616 = vadd.f32 %v2533, %v2615
      %v2617 = vpop.f32.mrb[0].mxu0
      %v2618 = vadd.f32 %v2537, %v2617
      %v2619 = vpop.f32.mrb[0].mxu0
      %v2620 = vadd.f32 %v2533, %v2619
      %v2621 = vpop.f32.mrb[0].mxu0
      %v2622 = vadd.f32 %v2537, %v2621
      %2623 = vdwg.mxu0
      %v2624 = vpack.c.bf16 %v2620, %v2616
      %2626 = vrot.lane.b32.xlu0 %v2624, 64
      %v2627 = vpop.permute.xlu0 %2626
      %vm2628 = vcmask 130048
      %v2630 = vsel %vm2628, %v2624, 0
      %v2633 = vsel %vm2628, %v2627, 0
      %2635 = vmatprep.subr.bf16.mxu0 0
      %2636 = vmatpush1.bf16.xpose.msra.mxu0 %v2633
      %2637 = vmatprep.subr.bf16.mxu0 0
      %2638 = vmatpush1.bf16.xpose.msra.mxu0 0
      %2639 = vmatprep.subr.bf16.mxu0 0
      %2640 = vmatpush1.bf16.xpose.msra.mxu0 0
      %2641 = vmatprep.subr.bf16.mxu0 0
      %2642 = vmatpush1.bf16.xpose.msra.mxu0 0
      %2643 = vmatprep.subr.bf16.mxu0 0
      %2644 = vmatpush1.bf16.xpose.msra.mxu0 0
      %2645 = vmatprep.subr.bf16.mxu0 0
      %2646 = vmatpush1.bf16.xpose.msra.mxu0 0
      %2647 = vmatprep.subr.bf16.mxu0 0
      %2648 = vmatpush1.bf16.xpose.msra.mxu0 0
      %2649 = vmatprep.subr.bf16.mxu0 0
      %2650 = vmatpush1.bf16.xpose.msra.mxu0 0
      %2651 = vmatprep.subr.bf16.mxu0 0
      %2652 = vmatpush1.bf16.xpose.msra.mxu0 0
      %2653 = vmatprep.subr.bf16.mxu0 0
      %2654 = vmatpush1.bf16.xpose.msra.mxu0 0
      %2655 = vmatprep.subr.bf16.mxu0 0
      %2656 = vmatpush1.bf16.xpose.msra.mxu0 0
      %2657 = vmatprep.subr.bf16.mxu0 0
      %2658 = vmatpush1.bf16.xpose.msra.mxu0 0
      %2659 = vmatprep.subr.bf16.mxu0 0
      %2660 = vmatpush1.bf16.xpose.msra.mxu0 0
      %2661 = vmatprep.subr.bf16.mxu0 0
      %2662 = vmatpush1.bf16.xpose.msra.mxu0 0
      %2663 = vmatprep.subr.bf16.mxu0 0
      %2664 = vmatpush1.bf16.xpose.msra.mxu0 0
      %2665 = vmatprep.subr.bf16.mxu0 0
      %2666 = vmatpush1.bf16.xpose.msra.mxu0 0
      %2667 = vmatprep.mubr.bf16.mxu0 0
      %2668 = vmatmul.mubr.bf16.gmra.mrb[0].mxu0 %v2630
      %v2669 = vpop.f32.mrb[0].mxu0
      %v2670 = vadd.f32 0.0, %v2669
      %v2671 = vpop.f32.mrb[0].mxu0
      %v2672 = vpop.f32.mrb[0].mxu0
      %v2673 = vadd.f32 0.0, %v2672
      %v2674 = vpop.f32.mrb[0].mxu0
      %2675 = vdwg.mxu0
      %v2676 = vmul.f32 %v2670, 0.25
      %v2677 = vmul.f32 %v2673, 0.25
      %vm2678 = vcmask 72704
      %v2679 = vsel %vm2678, %v2676, -inf
      %2680 = vmax.xlane.f32.xlu0 %v2679
      %v2681 = vpop.xlane.xlu0 %2680
      %vm2682 = vcmask 65536
      %v2683 = vsel %vm2682, %v2677, -inf
      %2684 = vmax.xlane.f32.xlu0 %v2683
      %v2685 = vpop.xlane.xlu0 %2684
      %v2686 = vsub.f32 %v2676, %v2681
      %v2687 = vsub.f32 %v2677, %v2685
      %v2688 = vmul.f32 %v2686, 1.442695
      %v2689 = vpow.pop %v2688
      %v2690 = vmul.f32 %v2687, 1.442695
      %v2691 = vpow.pop %v2690
      %v2692 = vsel %vm2678, %v2689, 0.0
      %2693 = vadd.xlane.f32.xlu0 %v2692
      %v2694 = vpop.xlane.xlu0 %2693
      %v2695 = vsel %vm2682, %v2691, 0.0
      %2696 = vadd.xlane.f32.xlu0 %v2695
      %v2697 = vpop.xlane.xlu0 %2696
      %v2698 = vrcp.pop %v2694
      %v2699 = vrcp.pop %v2697
      %v2700 = vmul.f32 %v2689, %v2698
      %v2701 = vmul.f32 %v2691, %v2699
      %v2702 = vpack.c.bf16 %v2701, %v2700
      %v2703 = vpack.c.bf16 %v2622, %v2618
      %v2705 = vsel %vm2678, %v2702, 0
      %vm2707 = vcmask 1043456
      %vm2708 = vcmask 1044480
      %v2709 = vsel %vm2707, 4294967295, 65535
      %v2710 = vsel %vm2708, %v2709, 0
      %v2712 = vand.u32 %v2703, %v2710
      %2714 = vmatprep.subr.bf16.mxu0 0
      %2715 = vmatpush1.bf16.msra.mxu0 %v2712
      %2716 = vmatprep.subr.bf16.mxu0 0
      %2717 = vmatpush1.bf16.msra.mxu0 0
      %2718 = vmatprep.subr.bf16.mxu0 0
      %2719 = vmatpush1.bf16.msra.mxu0 0
      %2720 = vmatprep.subr.bf16.mxu0 0
      %2721 = vmatpush1.bf16.msra.mxu0 0
      %2722 = vmatprep.subr.bf16.mxu0 0
      %2723 = vmatpush1.bf16.msra.mxu0 0
      %2724 = vmatprep.subr.bf16.mxu0 0
      %2725 = vmatpush1.bf16.msra.mxu0 0
      %2726 = vmatprep.subr.bf16.mxu0 0
      %2727 = vmatpush1.bf16.msra.mxu0 0
      %2728 = vmatprep.subr.bf16.mxu0 0
      %2729 = vmatpush1.bf16.msra.mxu0 0
      %2730 = vmatprep.subr.bf16.mxu0 0
      %2731 = vmatpush1.bf16.msra.mxu0 0
      %2732 = vmatprep.subr.bf16.mxu0 0
      %2733 = vmatpush1.bf16.msra.mxu0 0
      %2734 = vmatprep.subr.bf16.mxu0 0
      %2735 = vmatpush1.bf16.msra.mxu0 0
      %2736 = vmatprep.subr.bf16.mxu0 0
      %2737 = vmatpush1.bf16.msra.mxu0 0
      %2738 = vmatprep.subr.bf16.mxu0 0
      %2739 = vmatpush1.bf16.msra.mxu0 0
      %2740 = vmatprep.subr.bf16.mxu0 0
      %2741 = vmatpush1.bf16.msra.mxu0 0
      %2742 = vmatprep.subr.bf16.mxu0 0
      %2743 = vmatpush1.bf16.msra.mxu0 0
      %2744 = vmatprep.subr.bf16.mxu0 0
      %2745 = vmatpush1.bf16.msra.mxu0 0
      %2746 = vmatprep.mubr.bf16.mxu0 0
      %2747 = vmatmul.mubr.bf16.gmra.mrb[0].mxu0 %v2705
      %v2748 = vpop.f32.mrb[0].mxu0
      %v2749 = vadd.f32 0.0, %v2748
      %v2750 = vpop.f32.mrb[0].mxu0
      %v2751 = vpop.f32.mrb[0].mxu0
      %v2752 = vadd.f32 0.0, %v2751
      %v2753 = vpop.f32.mrb[0].mxu0
      %2754 = vdwg.mxu0
      %2755 = vrot.lane.b32.xlu0 %v2624, 112
      %v2756 = vpop.permute.xlu0 %2755
      %2757 = vrot.lane.b32.xlu0 %v2624, 48
      %v2758 = vpop.permute.xlu0 %2757
      %v2760 = vsel %vm2628, %v2756, 0
      %v2763 = vsel %vm2628, %v2758, 0
      %2765 = vmatprep.subr.bf16.mxu0 0
      %2766 = vmatpush1.bf16.xpose.msra.mxu0 %v2763
      %2767 = vmatprep.subr.bf16.mxu0 0
      %2768 = vmatpush1.bf16.xpose.msra.mxu0 0
      %2769 = vmatprep.subr.bf16.mxu0 0
      %2770 = vmatpush1.bf16.xpose.msra.mxu0 0
      %2771 = vmatprep.subr.bf16.mxu0 0
      %2772 = vmatpush1.bf16.xpose.msra.mxu0 0
      %2773 = vmatprep.subr.bf16.mxu0 0
      %2774 = vmatpush1.bf16.xpose.msra.mxu0 0
      %2775 = vmatprep.subr.bf16.mxu0 0
      %2776 = vmatpush1.bf16.xpose.msra.mxu0 0
      %2777 = vmatprep.subr.bf16.mxu0 0
      %2778 = vmatpush1.bf16.xpose.msra.mxu0 0
      %2779 = vmatprep.subr.bf16.mxu0 0
      %2780 = vmatpush1.bf16.xpose.msra.mxu0 0
      %2781 = vmatprep.subr.bf16.mxu0 0
      %2782 = vmatpush1.bf16.xpose.msra.mxu0 0
      %2783 = vmatprep.subr.bf16.mxu0 0
      %2784 = vmatpush1.bf16.xpose.msra.mxu0 0
      %2785 = vmatprep.subr.bf16.mxu0 0
      %2786 = vmatpush1.bf16.xpose.msra.mxu0 0
      %2787 = vmatprep.subr.bf16.mxu0 0
      %2788 = vmatpush1.bf16.xpose.msra.mxu0 0
      %2789 = vmatprep.subr.bf16.mxu0 0
      %2790 = vmatpush1.bf16.xpose.msra.mxu0 0
      %2791 = vmatprep.subr.bf16.mxu0 0
      %2792 = vmatpush1.bf16.xpose.msra.mxu0 0
      %2793 = vmatprep.subr.bf16.mxu0 0
      %2794 = vmatpush1.bf16.xpose.msra.mxu0 0
      %2795 = vmatprep.subr.bf16.mxu0 0
      %2796 = vmatpush1.bf16.xpose.msra.mxu0 0
      %2797 = vmatprep.mubr.bf16.mxu0 0
      %2798 = vmatmul.mubr.bf16.gmra.mrb[0].mxu0 %v2760
      %v2799 = vpop.f32.mrb[0].mxu0
      %v2800 = vadd.f32 0.0, %v2799
      %v2801 = vpop.f32.mrb[0].mxu0
      %v2802 = vpop.f32.mrb[0].mxu0
      %v2803 = vadd.f32 0.0, %v2802
      %v2804 = vpop.f32.mrb[0].mxu0
      %2805 = vdwg.mxu0
      %v2806 = vmul.f32 %v2800, 0.25
      %v2807 = vmul.f32 %v2803, 0.25
      %v2808 = vsel %vm2678, %v2806, -inf
      %2809 = vmax.xlane.f32.xlu0 %v2808
      %v2810 = vpop.xlane.xlu0 %2809
      %v2811 = vsel %vm2682, %v2807, -inf
      %2812 = vmax.xlane.f32.xlu0 %v2811
      %v2813 = vpop.xlane.xlu0 %2812
      %v2814 = vsub.f32 %v2806, %v2810
      %v2815 = vsub.f32 %v2807, %v2813
      %v2816 = vmul.f32 %v2814, 1.442695
      %v2817 = vpow.pop %v2816
      %v2818 = vmul.f32 %v2815, 1.442695
      %v2819 = vpow.pop %v2818
      %v2820 = vsel %vm2678, %v2817, 0.0
      %2821 = vadd.xlane.f32.xlu0 %v2820
      %v2822 = vpop.xlane.xlu0 %2821
      %v2823 = vsel %vm2682, %v2819, 0.0
      %2824 = vadd.xlane.f32.xlu0 %v2823
      %v2825 = vpop.xlane.xlu0 %2824
      %v2826 = vrcp.pop %v2822
      %v2827 = vrcp.pop %v2825
      %v2828 = vmul.f32 %v2817, %v2826
      %v2829 = vmul.f32 %v2819, %v2827
      %v2830 = vpack.c.bf16 %v2829, %v2828
      %2832 = vrot.lane.b32.xlu0 %v2703, 112
      %v2833 = vpop.permute.xlu0 %2832
      %v2835 = vsel %vm2678, %v2830, 0
      %v2838 = vand.u32 %v2833, %v2710
      %2840 = vmatprep.subr.bf16.mxu0 0
      %2841 = vmatpush1.bf16.msra.mxu0 %v2838
      %2842 = vmatprep.subr.bf16.mxu0 0
      %2843 = vmatpush1.bf16.msra.mxu0 0
      %2844 = vmatprep.subr.bf16.mxu0 0
      %2845 = vmatpush1.bf16.msra.mxu0 0
      %2846 = vmatprep.subr.bf16.mxu0 0
      %2847 = vmatpush1.bf16.msra.mxu0 0
      %2848 = vmatprep.subr.bf16.mxu0 0
      %2849 = vmatpush1.bf16.msra.mxu0 0
      %2850 = vmatprep.subr.bf16.mxu0 0
      %2851 = vmatpush1.bf16.msra.mxu0 0
      %2852 = vmatprep.subr.bf16.mxu0 0
      %2853 = vmatpush1.bf16.msra.mxu0 0
      %2854 = vmatprep.subr.bf16.mxu0 0
      %2855 = vmatpush1.bf16.msra.mxu0 0
      %2856 = vmatprep.subr.bf16.mxu0 0
      %2857 = vmatpush1.bf16.msra.mxu0 0
      %2858 = vmatprep.subr.bf16.mxu0 0
      %2859 = vmatpush1.bf16.msra.mxu0 0
      %2860 = vmatprep.subr.bf16.mxu0 0
      %2861 = vmatpush1.bf16.msra.mxu0 0
      %2862 = vmatprep.subr.bf16.mxu0 0
      %2863 = vmatpush1.bf16.msra.mxu0 0
      %2864 = vmatprep.subr.bf16.mxu0 0
      %2865 = vmatpush1.bf16.msra.mxu0 0
      %2866 = vmatprep.subr.bf16.mxu0 0
      %2867 = vmatpush1.bf16.msra.mxu0 0
      %2868 = vmatprep.subr.bf16.mxu0 0
      %2869 = vmatpush1.bf16.msra.mxu0 0
      %2870 = vmatprep.subr.bf16.mxu0 0
      %2871 = vmatpush1.bf16.msra.mxu0 0
      %2872 = vmatprep.mubr.bf16.mxu0 0
      %2873 = vmatmul.mubr.bf16.gmra.mrb[0].mxu0 %v2835
      %v2874 = vpop.f32.mrb[0].mxu0
      %v2875 = vadd.f32 0.0, %v2874
      %v2876 = vpop.f32.mrb[0].mxu0
      %v2877 = vpop.f32.mrb[0].mxu0
      %v2878 = vadd.f32 0.0, %v2877
      %v2879 = vpop.f32.mrb[0].mxu0
      %2880 = vdwg.mxu0
      %2881 = vrot.lane.b32.xlu0 %v2624, 96
      %v2882 = vpop.permute.xlu0 %2881
      %2883 = vrot.lane.b32.xlu0 %v2624, 32
      %v2884 = vpop.permute.xlu0 %2883
      %v2886 = vsel %vm2628, %v2882, 0
      %v2889 = vsel %vm2628, %v2884, 0
      %2891 = vmatprep.subr.bf16.mxu0 0
      %2892 = vmatpush1.bf16.xpose.msra.mxu0 %v2889
      %2893 = vmatprep.subr.bf16.mxu0 0
      %2894 = vmatpush1.bf16.xpose.msra.mxu0 0
      %2895 = vmatprep.subr.bf16.mxu0 0
      %2896 = vmatpush1.bf16.xpose.msra.mxu0 0
      %2897 = vmatprep.subr.bf16.mxu0 0
      %2898 = vmatpush1.bf16.xpose.msra.mxu0 0
      %2899 = vmatprep.subr.bf16.mxu0 0
      %2900 = vmatpush1.bf16.xpose.msra.mxu0 0
      %2901 = vmatprep.subr.bf16.mxu0 0
      %2902 = vmatpush1.bf16.xpose.msra.mxu0 0
      %2903 = vmatprep.subr.bf16.mxu0 0
      %2904 = vmatpush1.bf16.xpose.msra.mxu0 0
      %2905 = vmatprep.subr.bf16.mxu0 0
      %2906 = vmatpush1.bf16.xpose.msra.mxu0 0
      %2907 = vmatprep.subr.bf16.mxu0 0
      %2908 = vmatpush1.bf16.xpose.msra.mxu0 0
      %2909 = vmatprep.subr.bf16.mxu0 0
      %2910 = vmatpush1.bf16.xpose.msra.mxu0 0
      %2911 = vmatprep.subr.bf16.mxu0 0
      %2912 = vmatpush1.bf16.xpose.msra.mxu0 0
      %2913 = vmatprep.subr.bf16.mxu0 0
      %2914 = vmatpush1.bf16.xpose.msra.mxu0 0
      %2915 = vmatprep.subr.bf16.mxu0 0
      %2916 = vmatpush1.bf16.xpose.msra.mxu0 0
      %2917 = vmatprep.subr.bf16.mxu0 0
      %2918 = vmatpush1.bf16.xpose.msra.mxu0 0
      %2919 = vmatprep.subr.bf16.mxu0 0
      %2920 = vmatpush1.bf16.xpose.msra.mxu0 0
      %2921 = vmatprep.subr.bf16.mxu0 0
      %2922 = vmatpush1.bf16.xpose.msra.mxu0 0
      %2923 = vmatprep.mubr.bf16.mxu0 0
      %2924 = vmatmul.mubr.bf16.gmra.mrb[0].mxu0 %v2886
      %v2925 = vpop.f32.mrb[0].mxu0
      %v2926 = vadd.f32 0.0, %v2925
      %v2927 = vpop.f32.mrb[0].mxu0
      %v2928 = vpop.f32.mrb[0].mxu0
      %v2929 = vadd.f32 0.0, %v2928
      %v2930 = vpop.f32.mrb[0].mxu0
      %2931 = vdwg.mxu0
      %v2932 = vmul.f32 %v2926, 0.25
      %v2933 = vmul.f32 %v2929, 0.25
      %v2934 = vsel %vm2678, %v2932, -inf
      %2935 = vmax.xlane.f32.xlu0 %v2934
      %v2936 = vpop.xlane.xlu0 %2935
      %v2937 = vsel %vm2682, %v2933, -inf
      %2938 = vmax.xlane.f32.xlu0 %v2937
      %v2939 = vpop.xlane.xlu0 %2938
      %v2940 = vsub.f32 %v2932, %v2936
      %v2941 = vsub.f32 %v2933, %v2939
      %v2942 = vmul.f32 %v2940, 1.442695
      %v2943 = vpow.pop %v2942
      %v2944 = vmul.f32 %v2941, 1.442695
      %v2945 = vpow.pop %v2944
      %v2946 = vsel %vm2678, %v2943, 0.0
      %2947 = vadd.xlane.f32.xlu0 %v2946
      %v2948 = vpop.xlane.xlu0 %2947
      %v2949 = vsel %vm2682, %v2945, 0.0
      %2950 = vadd.xlane.f32.xlu0 %v2949
      %v2951 = vpop.xlane.xlu0 %2950
      %v2952 = vrcp.pop %v2948
      %v2953 = vrcp.pop %v2951
      %v2954 = vmul.f32 %v2943, %v2952
      %v2955 = vmul.f32 %v2945, %v2953
      %v2956 = vpack.c.bf16 %v2955, %v2954
      %2957 = vrot.lane.b32.xlu0 %v2703, 96
      %v2958 = vpop.permute.xlu0 %2957
      %v2960 = vsel %vm2678, %v2956, 0
      %v2963 = vand.u32 %v2958, %v2710
      %2965 = vmatprep.subr.bf16.mxu0 0
      %2966 = vmatpush1.bf16.msra.mxu0 %v2963
      %2967 = vmatprep.subr.bf16.mxu0 0
      %2968 = vmatpush1.bf16.msra.mxu0 0
      %2969 = vmatprep.subr.bf16.mxu0 0
      %2970 = vmatpush1.bf16.msra.mxu0 0
      %2971 = vmatprep.subr.bf16.mxu0 0
      %2972 = vmatpush1.bf16.msra.mxu0 0
      %2973 = vmatprep.subr.bf16.mxu0 0
      %2974 = vmatpush1.bf16.msra.mxu0 0
      %2975 = vmatprep.subr.bf16.mxu0 0
      %2976 = vmatpush1.bf16.msra.mxu0 0
      %2977 = vmatprep.subr.bf16.mxu0 0
      %2978 = vmatpush1.bf16.msra.mxu0 0
      %2979 = vmatprep.subr.bf16.mxu0 0
      %2980 = vmatpush1.bf16.msra.mxu0 0
      %2981 = vmatprep.subr.bf16.mxu0 0
      %2982 = vmatpush1.bf16.msra.mxu0 0
      %2983 = vmatprep.subr.bf16.mxu0 0
      %2984 = vmatpush1.bf16.msra.mxu0 0
      %2985 = vmatprep.subr.bf16.mxu0 0
      %2986 = vmatpush1.bf16.msra.mxu0 0
      %2987 = vmatprep.subr.bf16.mxu0 0
      %2988 = vmatpush1.bf16.msra.mxu0 0
      %2989 = vmatprep.subr.bf16.mxu0 0
      %2990 = vmatpush1.bf16.msra.mxu0 0
      %2991 = vmatprep.subr.bf16.mxu0 0
      %2992 = vmatpush1.bf16.msra.mxu0 0
      %2993 = vmatprep.subr.bf16.mxu0 0
      %2994 = vmatpush1.bf16.msra.mxu0 0
      %2995 = vmatprep.subr.bf16.mxu0 0
      %2996 = vmatpush1.bf16.msra.mxu0 0
      %2997 = vmatprep.mubr.bf16.mxu0 0
      %2998 = vmatmul.mubr.bf16.gmra.mrb[0].mxu0 %v2960
      %v2999 = vpop.f32.mrb[0].mxu0
      %v3000 = vadd.f32 0.0, %v2999
      %v3001 = vpop.f32.mrb[0].mxu0
      %v3002 = vpop.f32.mrb[0].mxu0
      %v3003 = vadd.f32 0.0, %v3002
      %v3004 = vpop.f32.mrb[0].mxu0
      %3005 = vdwg.mxu0
      %3006 = vrot.lane.b32.xlu0 %v2624, 80
      %v3007 = vpop.permute.xlu0 %3006
      %3008 = vrot.lane.b32.xlu0 %v2624, 16
      %v3009 = vpop.permute.xlu0 %3008
      %v3011 = vsel %vm2628, %v3007, 0
      %v3014 = vsel %vm2628, %v3009, 0
      %3016 = vmatprep.subr.bf16.mxu0 0
      %3017 = vmatpush1.bf16.xpose.msra.mxu0 %v3014
      %3018 = vmatprep.subr.bf16.mxu0 0
      %3019 = vmatpush1.bf16.xpose.msra.mxu0 0
      %3020 = vmatprep.subr.bf16.mxu0 0
      %3021 = vmatpush1.bf16.xpose.msra.mxu0 0
      %3022 = vmatprep.subr.bf16.mxu0 0
      %3023 = vmatpush1.bf16.xpose.msra.mxu0 0
      %3024 = vmatprep.subr.bf16.mxu0 0
      %3025 = vmatpush1.bf16.xpose.msra.mxu0 0
      %3026 = vmatprep.subr.bf16.mxu0 0
      %3027 = vmatpush1.bf16.xpose.msra.mxu0 0
      %3028 = vmatprep.subr.bf16.mxu0 0
      %3029 = vmatpush1.bf16.xpose.msra.mxu0 0
      %3030 = vmatprep.subr.bf16.mxu0 0
      %3031 = vmatpush1.bf16.xpose.msra.mxu0 0
      %3032 = vmatprep.subr.bf16.mxu0 0
      %3033 = vmatpush1.bf16.xpose.msra.mxu0 0
      %3034 = vmatprep.subr.bf16.mxu0 0
      %3035 = vmatpush1.bf16.xpose.msra.mxu0 0
      %3036 = vmatprep.subr.bf16.mxu0 0
      %3037 = vmatpush1.bf16.xpose.msra.mxu0 0
      %3038 = vmatprep.subr.bf16.mxu0 0
      %3039 = vmatpush1.bf16.xpose.msra.mxu0 0
      %3040 = vmatprep.subr.bf16.mxu0 0
      %3041 = vmatpush1.bf16.xpose.msra.mxu0 0
      %3042 = vmatprep.subr.bf16.mxu0 0
      %3043 = vmatpush1.bf16.xpose.msra.mxu0 0
      %3044 = vmatprep.subr.bf16.mxu0 0
      %3045 = vmatpush1.bf16.xpose.msra.mxu0 0
      %3046 = vmatprep.subr.bf16.mxu0 0
      %3047 = vmatpush1.bf16.xpose.msra.mxu0 0
      %3048 = vmatprep.mubr.bf16.mxu0 0
      %3049 = vmatmul.mubr.bf16.gmra.mrb[0].mxu0 %v3011
      %v3050 = vpop.f32.mrb[0].mxu0
      %v3051 = vadd.f32 0.0, %v3050
      %v3052 = vpop.f32.mrb[0].mxu0
      %v3053 = vpop.f32.mrb[0].mxu0
      %v3054 = vadd.f32 0.0, %v3053
      %v3055 = vpop.f32.mrb[0].mxu0
      %3056 = vdwg.mxu0
      %v3057 = vmul.f32 %v3051, 0.25
      %v3058 = vmul.f32 %v3054, 0.25
      %v3059 = vsel %vm2678, %v3057, -inf
      %3060 = vmax.xlane.f32.xlu0 %v3059
      %v3061 = vpop.xlane.xlu0 %3060
      %v3062 = vsel %vm2682, %v3058, -inf
      %3063 = vmax.xlane.f32.xlu0 %v3062
      %v3064 = vpop.xlane.xlu0 %3063
      %v3065 = vsub.f32 %v3057, %v3061
      %v3066 = vsub.f32 %v3058, %v3064
      %v3067 = vmul.f32 %v3065, 1.442695
      %v3068 = vpow.pop %v3067
      %v3069 = vmul.f32 %v3066, 1.442695
      %v3070 = vpow.pop %v3069
      %v3071 = vsel %vm2678, %v3068, 0.0
      %3072 = vadd.xlane.f32.xlu0 %v3071
      %v3073 = vpop.xlane.xlu0 %3072
      %v3074 = vsel %vm2682, %v3070, 0.0
      %3075 = vadd.xlane.f32.xlu0 %v3074
      %v3076 = vpop.xlane.xlu0 %3075
      %v3077 = vrcp.pop %v3073
      %v3078 = vrcp.pop %v3076
      %v3079 = vmul.f32 %v3068, %v3077
      %v3080 = vmul.f32 %v3070, %v3078
      %v3081 = vpack.c.bf16 %v3080, %v3079
      %3082 = vrot.lane.b32.xlu0 %v2703, 80
      %v3083 = vpop.permute.xlu0 %3082
      %v3085 = vsel %vm2678, %v3081, 0
      %v3088 = vand.u32 %v3083, %v2710
      %3090 = vmatprep.subr.bf16.mxu0 0
      %3091 = vmatpush1.bf16.msra.mxu0 %v3088
      %3092 = vmatprep.subr.bf16.mxu0 0
      %3093 = vmatpush1.bf16.msra.mxu0 0
      %3094 = vmatprep.subr.bf16.mxu0 0
      %3095 = vmatpush1.bf16.msra.mxu0 0
      %3096 = vmatprep.subr.bf16.mxu0 0
      %3097 = vmatpush1.bf16.msra.mxu0 0
      %3098 = vmatprep.subr.bf16.mxu0 0
      %3099 = vmatpush1.bf16.msra.mxu0 0
      %3100 = vmatprep.subr.bf16.mxu0 0
      %3101 = vmatpush1.bf16.msra.mxu0 0
      %3102 = vmatprep.subr.bf16.mxu0 0
      %3103 = vmatpush1.bf16.msra.mxu0 0
      %3104 = vmatprep.subr.bf16.mxu0 0
      %3105 = vmatpush1.bf16.msra.mxu0 0
      %3106 = vmatprep.subr.bf16.mxu0 0
      %3107 = vmatpush1.bf16.msra.mxu0 0
      %3108 = vmatprep.subr.bf16.mxu0 0
      %3109 = vmatpush1.bf16.msra.mxu0 0
      %3110 = vmatprep.subr.bf16.mxu0 0
      %3111 = vmatpush1.bf16.msra.mxu0 0
      %3112 = vmatprep.subr.bf16.mxu0 0
      %3113 = vmatpush1.bf16.msra.mxu0 0
      %3114 = vmatprep.subr.bf16.mxu0 0
      %3115 = vmatpush1.bf16.msra.mxu0 0
      %3116 = vmatprep.subr.bf16.mxu0 0
      %3117 = vmatpush1.bf16.msra.mxu0 0
      %3118 = vmatprep.subr.bf16.mxu0 0
      %3119 = vmatpush1.bf16.msra.mxu0 0
      %3120 = vmatprep.subr.bf16.mxu0 0
      %3121 = vmatpush1.bf16.msra.mxu0 0
      %3122 = vmatprep.mubr.bf16.mxu0 0
      %3123 = vmatmul.mubr.bf16.gmra.mrb[0].mxu0 %v3085
      %v3124 = vpop.f32.mrb[0].mxu0
      %v3125 = vadd.f32 0.0, %v3124
      %v3126 = vpop.f32.mrb[0].mxu0
      %v3127 = vpop.f32.mrb[0].mxu0
      %v3128 = vadd.f32 0.0, %v3127
      %v3129 = vpop.f32.mrb[0].mxu0
      %3130 = vdwg.mxu0
      %3133 = vrot.lane.b32.xlu0 %v2875, 16
      %v3134 = vpop.permute.xlu0 %3133
      %3135 = vrot.lane.b32.xlu0 %v2878, 16
      %v3136 = vpop.permute.xlu0 %3135
      %3141 = vrot.lane.b32.xlu0 %v3000, 32
      %v3142 = vpop.permute.xlu0 %3141
      %3143 = vrot.lane.b32.xlu0 %v3003, 32
      %v3144 = vpop.permute.xlu0 %3143
      %3149 = vrot.lane.b32.xlu0 %v3125, 48
      %v3150 = vpop.permute.xlu0 %3149
      %3151 = vrot.lane.b32.xlu0 %v3128, 48
      %v3152 = vpop.permute.xlu0 %3151
      %v3155 = vsel %vm2628, %v2749, %v3134
      %v3156 = vsel %vm2628, %v2752, %v3136
      %vm3157 = vcmask 261120
      %v3158 = vsel %vm3157, %v3155, %v3142
      %v3159 = vsel %vm3157, %v3156, %v3144
      %vm3160 = vcmask 392192
      %v3161 = vsel %vm3160, %v3158, %v3150
      %v3162 = vsel %vm3160, %v3159, %v3152
      %v3163 = vpack.c.bf16 %v3162, %v3161
      %v3164 = vld [vmem:[%s4] sm:$0xf]
      %v3165 = vld [vmem:[%s4 + $0x4] sm:$0xf]
      %v3166 = vld [vmem:[%s4 + $0x8] sm:$0xf]
      %v3167 = vld [vmem:[%s4 + $0xc] sm:$0xf]
      %v3168 = vld [vmem:[%s4 + $0x10] sm:$0xf]
      %v3169 = vld [vmem:[%s4 + $0x14] sm:$0xf]
      %v3170 = vld [vmem:[%s4 + $0x18] sm:$0xf]
      %v3171 = vld [vmem:[%s4 + $0x1c] sm:$0xf]
      %v3172 = vlaneseq
      %v3173 = vshrl.u32 %v3172, 7
      %v3174 = vsub.s32 5, %v3173
      %v3175 = vrot.slane %v2478, %v3174
      %v3184 = vunpack.c.l.b16 %v3164
      %v3185 = vunpack.c.l.b16 %v3165
      %v3186 = vunpack.c.l.b16 %v3166
      %v3187 = vunpack.c.l.b16 %v3167
      %v3188 = vunpack.c.l.b16 %v3168
      %v3189 = vunpack.c.l.b16 %v3169
      %v3190 = vunpack.c.l.b16 %v3170
      %v3191 = vunpack.c.l.b16 %v3171
      %v3192 = vpack.c.b16 %v3185, %v3184
      %v3193 = vpack.c.b16 %v3187, %v3186
      %v3194 = vpack.c.b16 %v3189, %v3188
      %v3195 = vpack.c.b16 %v3191, %v3190
      %v3201 = vsel %vm2480, %v3163, 0
      %3203 = vmatprep.subr.bf16.mxu0 0
      %3204 = vmatpush1.bf16.msra.mxu0 %v3192
      %3205 = vmatprep.subr.bf16.mxu0 0
      %3206 = vmatpush1.bf16.msra.mxu0 %v3193
      %3207 = vmatprep.subr.bf16.mxu0 0
      %3208 = vmatpush1.bf16.msra.mxu0 %v3194
      %3209 = vmatprep.subr.bf16.mxu0 0
      %3210 = vmatpush1.bf16.msra.mxu0 %v3195
      %3211 = vmatprep.subr.bf16.mxu0 0
      %3212 = vmatpush1.bf16.msra.mxu0 0
      %3213 = vmatprep.subr.bf16.mxu0 0
      %3214 = vmatpush1.bf16.msra.mxu0 0
      %3215 = vmatprep.subr.bf16.mxu0 0
      %3216 = vmatpush1.bf16.msra.mxu0 0
      %3217 = vmatprep.subr.bf16.mxu0 0
      %3218 = vmatpush1.bf16.msra.mxu0 0
      %3219 = vmatprep.subr.bf16.mxu0 0
      %3220 = vmatpush1.bf16.msra.mxu0 0
      %3221 = vmatprep.subr.bf16.mxu0 0
      %3222 = vmatpush1.bf16.msra.mxu0 0
      %3223 = vmatprep.subr.bf16.mxu0 0
      %3224 = vmatpush1.bf16.msra.mxu0 0
      %3225 = vmatprep.subr.bf16.mxu0 0
      %3226 = vmatpush1.bf16.msra.mxu0 0
      %3227 = vmatprep.subr.bf16.mxu0 0
      %3228 = vmatpush1.bf16.msra.mxu0 0
      %3229 = vmatprep.subr.bf16.mxu0 0
      %3230 = vmatpush1.bf16.msra.mxu0 0
      %3231 = vmatprep.subr.bf16.mxu0 0
      %3232 = vmatpush1.bf16.msra.mxu0 0
      %3233 = vmatprep.subr.bf16.mxu0 0
      %3234 = vmatpush1.bf16.msra.mxu0 0
      %3235 = vmatprep.mubr.bf16.mxu0 0
      %3236 = vmatmul.mubr.bf16.gmra.mrb[0].mxu0 %v3201
      %v3237 = vpop.f32.mrb[0].mxu0
      %v3238 = vadd.f32 %v3175, %v3237
      %v3239 = vpop.f32.mrb[0].mxu0
      %v3240 = vpop.f32.mrb[0].mxu0
      %v3241 = vadd.f32 %v3175, %v3240
      %v3242 = vpop.f32.mrb[0].mxu0
      %3243 = vdwg.mxu0
      %v3244 = vadd.f32 %v2476, %v3238
      %v3245 = vadd.f32 %v2477, %v3241
      %v3246 = vsel %vm2480, %v3244, 0.0
      %3247 = vadd.xlane.f32.xlu0 %v3246
      %v3248 = vpop.xlane.xlu0 %3247
      %v3249 = vsel %vm2484, %v3245, 0.0
      %3250 = vadd.xlane.f32.xlu0 %v3249
      %v3251 = vpop.xlane.xlu0 %3250
      %v3252 = vmul.f32 %v3248, %v2488
      %v3253 = vmul.f32 %v3251, %v2488
      %v3254 = vsub.f32 %v3244, %v3252
      %v3255 = vsub.f32 %v3245, %v3253
      %v3256 = vmul.f32 %v3254, %v3254
      %v3257 = vmul.f32 %v3255, %v3255
      %v3258 = vsel %vm2480, %v3256, 0.0
      %3259 = vadd.xlane.f32.xlu0 %v3258
      %v3260 = vpop.xlane.xlu0 %3259
      %v3261 = vsel %vm2484, %v3257, 0.0
      %3262 = vadd.xlane.f32.xlu0 %v3261
      %v3263 = vpop.xlane.xlu0 %3262
      %v3264 = vmul.f32 %v3260, %v2488
      %v3265 = vmul.f32 %v3263, %v2488
      %v3266 = vadd.f32 %v3264, 1e-05
      %v3267 = vadd.f32 %v3265, 1e-05
      %v3268 = vrsqrt.pop %v3266
      %v3269 = vrsqrt.pop %v3267
      %v3270 = vmul.f32 %v3254, %v3268
      %v3271 = vmul.f32 %v3255, %v3269
      %v3272 = vlaneseq
      %v3273 = vshrl.u32 %v3272, 7
      %v3274 = vsub.s32 2, %v3273
      %v3275 = vrot.slane %v2478, %v3274
      %v3276 = vmul.f32 %v3270, %v3275
      %v3277 = vmul.f32 %v3271, %v3275
      %v3278 = vlaneseq
      %v3279 = vshrl.u32 %v3278, 7
      %v3280 = vsub.s32 3, %v3279
      %v3281 = vrot.slane %v2478, %v3280
      %v3282 = vadd.f32 %v3276, %v3281
      %v3283 = vadd.f32 %v3277, %v3281
      %v3284 = vpack.c.bf16 %v3283, %v3282
      %v3285 = vld [vmem:[%s5] sm:$0xf]
      %v3286 = vld [vmem:[%s5 + $0x4] sm:$0xf]
      %v3287 = vld [vmem:[%s5 + $0x8] sm:$0xf]
      %v3288 = vld [vmem:[%s5 + $0xc] sm:$0xf]
      %v3289 = vld [vmem:[%s5 + $0x10] sm:$0xf]
      %v3290 = vld [vmem:[%s5 + $0x14] sm:$0xf]
      %v3291 = vld [vmem:[%s5 + $0x18] sm:$0xf]
      %v3292 = vld [vmem:[%s5 + $0x1c] sm:$0xf]
      %v3293 = vlaneseq
      %v3294 = vshrl.u32 %v3293, 7
      %v3295 = vsub.s32 6, %v3294
      %v3296 = vrot.slane %v2478, %v3295
      %v3305 = vunpack.c.l.b16 %v3285
      %v3306 = vunpack.c.l.b16 %v3286
      %v3307 = vunpack.c.l.b16 %v3287
      %v3308 = vunpack.c.l.b16 %v3288
      %v3309 = vunpack.c.l.b16 %v3289
      %v3310 = vunpack.c.l.b16 %v3290
      %v3311 = vunpack.c.l.b16 %v3291
      %v3312 = vunpack.c.l.b16 %v3292
      %v3313 = vpack.c.b16 %v3306, %v3305
      %v3314 = vpack.c.b16 %v3308, %v3307
      %v3315 = vpack.c.b16 %v3310, %v3309
      %v3316 = vpack.c.b16 %v3312, %v3311
      %v3322 = vsel %vm2480, %v3284, 0
      %3324 = vmatprep.subr.bf16.mxu0 0
      %3325 = vmatpush1.bf16.msra.mxu0 %v3313
      %3326 = vmatprep.subr.bf16.mxu0 0
      %3327 = vmatpush1.bf16.msra.mxu0 %v3314
      %3328 = vmatprep.subr.bf16.mxu0 0
      %3329 = vmatpush1.bf16.msra.mxu0 %v3315
      %3330 = vmatprep.subr.bf16.mxu0 0
      %3331 = vmatpush1.bf16.msra.mxu0 %v3316
      %3332 = vmatprep.subr.bf16.mxu0 0
      %3333 = vmatpush1.bf16.msra.mxu0 0
      %3334 = vmatprep.subr.bf16.mxu0 0
      %3335 = vmatpush1.bf16.msra.mxu0 0
      %3336 = vmatprep.subr.bf16.mxu0 0
      %3337 = vmatpush1.bf16.msra.mxu0 0
      %3338 = vmatprep.subr.bf16.mxu0 0
      %3339 = vmatpush1.bf16.msra.mxu0 0
      %3340 = vmatprep.subr.bf16.mxu0 0
      %3341 = vmatpush1.bf16.msra.mxu0 0
      %3342 = vmatprep.subr.bf16.mxu0 0
      %3343 = vmatpush1.bf16.msra.mxu0 0
      %3344 = vmatprep.subr.bf16.mxu0 0
      %3345 = vmatpush1.bf16.msra.mxu0 0
      %3346 = vmatprep.subr.bf16.mxu0 0
      %3347 = vmatpush1.bf16.msra.mxu0 0
      %3348 = vmatprep.subr.bf16.mxu0 0
      %3349 = vmatpush1.bf16.msra.mxu0 0
      %3350 = vmatprep.subr.bf16.mxu0 0
      %3351 = vmatpush1.bf16.msra.mxu0 0
      %3352 = vmatprep.subr.bf16.mxu0 0
      %3353 = vmatpush1.bf16.msra.mxu0 0
      %3354 = vmatprep.subr.bf16.mxu0 0
      %3355 = vmatpush1.bf16.msra.mxu0 0
      %3356 = vmatprep.mubr.bf16.mxu0 0
      %3357 = vmatmul.mubr.bf16.gmra.mrb[0].mxu0 %v3322
      %v3358 = vpop.f32.mrb[0].mxu0
      %v3359 = vadd.f32 %v3296, %v3358
      %v3360 = vpop.f32.mrb[0].mxu0
      %v3361 = vpop.f32.mrb[0].mxu0
      %v3362 = vadd.f32 %v3296, %v3361
      %v3363 = vpop.f32.mrb[0].mxu0
      %3364 = vdwg.mxu0
      %v3365 = vmul.f32 %v3359, 0.5
      %v3366 = vmul.f32 %v3362, 0.5
      %v3367 = vmul.f32 %v3359, 0.044715
      %v3368 = vmul.f32 %v3362, 0.044715
      %v3369 = vmul.f32 %v3367, %v3359
      %v3370 = vmul.f32 %v3368, %v3362
      %v3371 = vmul.f32 %v3369, %v3359
      %v3372 = vmul.f32 %v3370, %v3362
      %v3373 = vadd.f32 %v3359, %v3371
      %v3374 = vadd.f32 %v3362, %v3372
      %v3375 = vmul.f32 %v3373, 0.7978846
      %v3376 = vmul.f32 %v3374, 0.7978846
      %v3377 = vtanh.pop %v3375
      %v3378 = vtanh.pop %v3376
      %v3379 = vadd.f32 %v3377, 1.0
      %v3380 = vadd.f32 %v3378, 1.0
      %v3381 = vmul.f32 %v3365, %v3379
      %v3382 = vmul.f32 %v3366, %v3380
      %v3383 = vpack.c.bf16 %v3382, %v3381
      %v3384 = vld [vmem:[%s6] sm:$0xf]
      %v3385 = vld [vmem:[%s6 + $0x4] sm:$0xf]
      %v3386 = vld [vmem:[%s6 + $0x8] sm:$0xf]
      %v3387 = vld [vmem:[%s6 + $0xc] sm:$0xf]
      %v3388 = vld [vmem:[%s6 + $0x10] sm:$0xf]
      %v3389 = vld [vmem:[%s6 + $0x14] sm:$0xf]
      %v3390 = vld [vmem:[%s6 + $0x18] sm:$0xf]
      %v3391 = vld [vmem:[%s6 + $0x1c] sm:$0xf]
      %v3392 = vld [vmem:[%s6 + $0x20] sm:$0xf]
      %v3393 = vld [vmem:[%s6 + $0x24] sm:$0xf]
      %v3394 = vld [vmem:[%s6 + $0x28] sm:$0xf]
      %v3395 = vld [vmem:[%s6 + $0x2c] sm:$0xf]
      %v3396 = vld [vmem:[%s6 + $0x30] sm:$0xf]
      %v3397 = vld [vmem:[%s6 + $0x34] sm:$0xf]
      %v3398 = vld [vmem:[%s6 + $0x38] sm:$0xf]
      %v3399 = vld [vmem:[%s6 + $0x3c] sm:$0xf]
      %v3400 = vlaneseq
      %v3401 = vshrl.u32 %v3400, 7
      %v3402 = vsub.s32 7, %v3401
      %v3403 = vrot.slane %v2478, %v3402
      %v3420 = vunpack.c.l.b16 %v3384
      %v3421 = vunpack.c.l.b16 %v3385
      %v3422 = vunpack.c.l.b16 %v3386
      %v3423 = vunpack.c.l.b16 %v3387
      %v3424 = vunpack.c.l.b16 %v3388
      %v3425 = vunpack.c.l.b16 %v3389
      %v3426 = vunpack.c.l.b16 %v3390
      %v3427 = vunpack.c.l.b16 %v3391
      %v3428 = vunpack.c.l.b16 %v3392
      %v3429 = vunpack.c.l.b16 %v3393
      %v3430 = vunpack.c.l.b16 %v3394
      %v3431 = vunpack.c.l.b16 %v3395
      %v3432 = vunpack.c.l.b16 %v3396
      %v3433 = vunpack.c.l.b16 %v3397
      %v3434 = vunpack.c.l.b16 %v3398
      %v3435 = vunpack.c.l.b16 %v3399
      %v3436 = vpack.c.b16 %v3421, %v3420
      %v3437 = vpack.c.b16 %v3423, %v3422
      %v3438 = vpack.c.b16 %v3425, %v3424
      %v3439 = vpack.c.b16 %v3427, %v3426
      %v3440 = vpack.c.b16 %v3429, %v3428
      %v3441 = vpack.c.b16 %v3431, %v3430
      %v3442 = vpack.c.b16 %v3433, %v3432
      %v3443 = vpack.c.b16 %v3435, %v3434
      %3452 = vmatprep.subr.bf16.mxu0 0
      %3453 = vmatpush1.bf16.msra.mxu0 %v3436
      %3454 = vmatprep.subr.bf16.mxu0 0
      %3455 = vmatpush1.bf16.msra.mxu0 %v3437
      %3456 = vmatprep.subr.bf16.mxu0 0
      %3457 = vmatpush1.bf16.msra.mxu0 %v3438
      %3458 = vmatprep.subr.bf16.mxu0 0
      %3459 = vmatpush1.bf16.msra.mxu0 %v3439
      %3460 = vmatprep.subr.bf16.mxu0 0
      %3461 = vmatpush1.bf16.msra.mxu0 %v3440
      %3462 = vmatprep.subr.bf16.mxu0 0
      %3463 = vmatpush1.bf16.msra.mxu0 %v3441
      %3464 = vmatprep.subr.bf16.mxu0 0
      %3465 = vmatpush1.bf16.msra.mxu0 %v3442
      %3466 = vmatprep.subr.bf16.mxu0 0
      %3467 = vmatpush1.bf16.msra.mxu0 %v3443
      %3468 = vmatprep.subr.bf16.mxu0 0
      %3469 = vmatpush1.bf16.msra.mxu0 0
      %3470 = vmatprep.subr.bf16.mxu0 0
      %3471 = vmatpush1.bf16.msra.mxu0 0
      %3472 = vmatprep.subr.bf16.mxu0 0
      %3473 = vmatpush1.bf16.msra.mxu0 0
      %3474 = vmatprep.subr.bf16.mxu0 0
      %3475 = vmatpush1.bf16.msra.mxu0 0
      %3476 = vmatprep.subr.bf16.mxu0 0
      %3477 = vmatpush1.bf16.msra.mxu0 0
      %3478 = vmatprep.subr.bf16.mxu0 0
      %3479 = vmatpush1.bf16.msra.mxu0 0
      %3480 = vmatprep.subr.bf16.mxu0 0
      %3481 = vmatpush1.bf16.msra.mxu0 0
      %3482 = vmatprep.subr.bf16.mxu0 0
      %3483 = vmatpush1.bf16.msra.mxu0 0
      %3484 = vmatprep.mubr.bf16.mxu0 0
      %3485 = vmatmul.mubr.bf16.gmra.mrb[0].mxu0 %v3383
      %v3486 = vpop.f32.mrb[0].mxu0
      %v3487 = vadd.f32 %v3403, %v3486
      %v3488 = vpop.f32.mrb[0].mxu0
      %v3489 = vpop.f32.mrb[0].mxu0
      %v3490 = vadd.f32 %v3403, %v3489
      %v3491 = vpop.f32.mrb[0].mxu0
      %3492 = vdwg.mxu0
      %v3493 = vadd.f32 %v3244, %v3487
      %v3494 = vadd.f32 %v3245, %v3490
      %s3495 = scalar_lea.vmem %s7, 16
      %v3496 = vld [vmem:[%s3495] sm:$0xff]
      %v3497 = vld [vmem:[%s3495 + $0x8] sm:$0xff]
      %v3498 = vsel %vm2480, %v3493, 0.0
      %3499 = vadd.xlane.f32.xlu0 %v3498
      %v3500 = vpop.xlane.xlu0 %3499
      %v3501 = vsel %vm2484, %v3494, 0.0
      %3502 = vadd.xlane.f32.xlu0 %v3501
      %v3503 = vpop.xlane.xlu0 %3502
      %v3504 = vmul.f32 %v3500, %v2488
      %v3505 = vmul.f32 %v3503, %v2488
      %v3506 = vsub.f32 %v3493, %v3504
      %v3507 = vsub.f32 %v3494, %v3505
      %v3508 = vmul.f32 %v3506, %v3506
      %v3509 = vmul.f32 %v3507, %v3507
      %v3510 = vsel %vm2480, %v3508, 0.0
      %3511 = vadd.xlane.f32.xlu0 %v3510
      %v3512 = vpop.xlane.xlu0 %3511
      %v3513 = vsel %vm2484, %v3509, 0.0
      %3514 = vadd.xlane.f32.xlu0 %v3513
      %v3515 = vpop.xlane.xlu0 %3514
      %v3516 = vmul.f32 %v3512, %v2488
      %v3517 = vmul.f32 %v3515, %v2488
      %v3518 = vadd.f32 %v3516, 1e-05
      %v3519 = vadd.f32 %v3517, 1e-05
      %v3520 = vrsqrt.pop %v3518
      %v3521 = vrsqrt.pop %v3519
      %v3522 = vmul.f32 %v3506, %v3520
      %v3523 = vmul.f32 %v3507, %v3521
      %v3524 = vlaneseq
      %v3525 = vshrl.u32 %v3524, 7
      %v3526 = vsub.s32 0, %v3525
      %v3527 = vrot.slane %v3496, %v3526
      %v3528 = vmul.f32 %v3522, %v3527
      %v3529 = vmul.f32 %v3523, %v3527
      %v3530 = vlaneseq
      %v3531 = vshrl.u32 %v3530, 7
      %v3532 = vsub.s32 1, %v3531
      %v3533 = vrot.slane %v3496, %v3532
      %v3534 = vadd.f32 %v3528, %v3533
      %v3535 = vadd.f32 %v3529, %v3533
      %v3536 = vpack.c.bf16 %v3535, %v3534
      %s3537 = scalar_lea.vmem %s3, 64
      %v3538 = vld [vmem:[%s3537] sm:$0xff]
      %v3539 = vld [vmem:[%s3537 + $0x8] sm:$0xff]
      %v3540 = vld [vmem:[%s3537 + $0x10] sm:$0xff]
      %v3541 = vld [vmem:[%s3537 + $0x18] sm:$0xff]
      %v3542 = vld [vmem:[%s3537 + $0x20] sm:$0xff]
      %v3543 = vld [vmem:[%s3537 + $0x28] sm:$0xff]
      %v3544 = vld [vmem:[%s3537 + $0x30] sm:$0xff]
      %v3545 = vld [vmem:[%s3537 + $0x38] sm:$0xff]
      %v3546 = vlaneseq
      %v3547 = vshrl.u32 %v3546, 7
      %v3548 = vsub.s32 4, %v3547
      %v3549 = vrot.slane %v3496, %v3548
      %v3550 = vlaneseq
      %v3551 = vshrl.u32 %v3550, 7
      %v3552 = vsub.s32 4, %v3551
      %v3553 = vrot.slane %v3497, %v3552
      %v3562 = vunpack.c.l.b16 %v3538
      %v3563 = vunpack.c.h.b16 %v3538
      %v3564 = vunpack.c.l.b16 %v3539
      %v3565 = vunpack.c.h.b16 %v3539
      %v3566 = vunpack.c.l.b16 %v3540
      %v3567 = vunpack.c.h.b16 %v3540
      %v3568 = vunpack.c.l.b16 %v3541
      %v3569 = vunpack.c.h.b16 %v3541
      %v3570 = vunpack.c.l.b16 %v3542
      %v3571 = vunpack.c.h.b16 %v3542
      %v3572 = vunpack.c.l.b16 %v3543
      %v3573 = vunpack.c.h.b16 %v3543
      %v3574 = vunpack.c.l.b16 %v3544
      %v3575 = vunpack.c.h.b16 %v3544
      %v3576 = vunpack.c.l.b16 %v3545
      %v3577 = vunpack.c.h.b16 %v3545
      %v3578 = vpack.c.b16 %v3564, %v3562
      %v3579 = vpack.c.b16 %v3565, %v3563
      %v3580 = vpack.c.b16 %v3568, %v3566
      %v3581 = vpack.c.b16 %v3569, %v3567
      %v3582 = vpack.c.b16 %v3572, %v3570
      %v3583 = vpack.c.b16 %v3573, %v3571
      %v3584 = vpack.c.b16 %v3576, %v3574
      %v3585 = vpack.c.b16 %v3577, %v3575
      %v3595 = vsel %vm2480, %v3536, 0
      %3597 = vmatprep.subr.bf16.mxu0 %v3579
      %3598 = vmatpush1.bf16.msra.mxu0 %v3578
      %3599 = vmatprep.subr.bf16.mxu0 %v3581
      %3600 = vmatpush1.bf16.msra.mxu0 %v3580
      %3601 = vmatprep.subr.bf16.mxu0 %v3583
      %3602 = vmatpush1.bf16.msra.mxu0 %v3582
      %3603 = vmatprep.subr.bf16.mxu0 %v3585
      %3604 = vmatpush1.bf16.msra.mxu0 %v3584
      %3605 = vmatprep.subr.bf16.mxu0 0
      %3606 = vmatpush1.bf16.msra.mxu0 0
      %3607 = vmatprep.subr.bf16.mxu0 0
      %3608 = vmatpush1.bf16.msra.mxu0 0
      %3609 = vmatprep.subr.bf16.mxu0 0
      %3610 = vmatpush1.bf16.msra.mxu0 0
      %3611 = vmatprep.subr.bf16.mxu0 0
      %3612 = vmatpush1.bf16.msra.mxu0 0
      %3613 = vmatprep.subr.bf16.mxu0 0
      %3614 = vmatpush1.bf16.msra.mxu0 0
      %3615 = vmatprep.subr.bf16.mxu0 0
      %3616 = vmatpush1.bf16.msra.mxu0 0
      %3617 = vmatprep.subr.bf16.mxu0 0
      %3618 = vmatpush1.bf16.msra.mxu0 0
      %3619 = vmatprep.subr.bf16.mxu0 0
      %3620 = vmatpush1.bf16.msra.mxu0 0
      %3621 = vmatprep.subr.bf16.mxu0 0
      %3622 = vmatpush1.bf16.msra.mxu0 0
      %3623 = vmatprep.subr.bf16.mxu0 0
      %3624 = vmatpush1.bf16.msra.mxu0 0
      %3625 = vmatprep.subr.bf16.mxu0 0
      %3626 = vmatpush1.bf16.msra.mxu0 0
      %3627 = vmatprep.subr.bf16.mxu0 0
      %3628 = vmatpush1.bf16.msra.mxu0 0
      %3629 = vmatprep.mubr.bf16.mxu0 0
      %3630 = vmatmul.mubr.bf16.gmra.mrb[0].mxu0 %v3595
      %v3631 = vpop.f32.mrb[0].mxu0
      %v3632 = vadd.f32 %v3549, %v3631
      %v3633 = vpop.f32.mrb[0].mxu0
      %v3634 = vadd.f32 %v3553, %v3633
      %v3635 = vpop.f32.mrb[0].mxu0
      %v3636 = vadd.f32 %v3549, %v3635
      %v3637 = vpop.f32.mrb[0].mxu0
      %v3638 = vadd.f32 %v3553, %v3637
      %3639 = vdwg.mxu0
      %v3640 = vpack.c.bf16 %v3636, %v3632
      %3642 = vrot.lane.b32.xlu0 %v3640, 64
      %v3643 = vpop.permute.xlu0 %3642
      %v3645 = vsel %vm2628, %v3640, 0
      %v3648 = vsel %vm2628, %v3643, 0
      %3650 = vmatprep.subr.bf16.mxu0 0
      %3651 = vmatpush1.bf16.xpose.msra.mxu0 %v3648
      %3652 = vmatprep.subr.bf16.mxu0 0
      %3653 = vmatpush1.bf16.xpose.msra.mxu0 0
      %3654 = vmatprep.subr.bf16.mxu0 0
      %3655 = vmatpush1.bf16.xpose.msra.mxu0 0
      %3656 = vmatprep.subr.bf16.mxu0 0
      %3657 = vmatpush1.bf16.xpose.msra.mxu0 0
      %3658 = vmatprep.subr.bf16.mxu0 0
      %3659 = vmatpush1.bf16.xpose.msra.mxu0 0
      %3660 = vmatprep.subr.bf16.mxu0 0
      %3661 = vmatpush1.bf16.xpose.msra.mxu0 0
      %3662 = vmatprep.subr.bf16.mxu0 0
      %3663 = vmatpush1.bf16.xpose.msra.mxu0 0
      %3664 = vmatprep.subr.bf16.mxu0 0
      %3665 = vmatpush1.bf16.xpose.msra.mxu0 0
      %3666 = vmatprep.subr.bf16.mxu0 0
      %3667 = vmatpush1.bf16.xpose.msra.mxu0 0
      %3668 = vmatprep.subr.bf16.mxu0 0
      %3669 = vmatpush1.bf16.xpose.msra.mxu0 0
      %3670 = vmatprep.subr.bf16.mxu0 0
      %3671 = vmatpush1.bf16.xpose.msra.mxu0 0
      %3672 = vmatprep.subr.bf16.mxu0 0
      %3673 = vmatpush1.bf16.xpose.msra.mxu0 0
      %3674 = vmatprep.subr.bf16.mxu0 0
      %3675 = vmatpush1.bf16.xpose.msra.mxu0 0
      %3676 = vmatprep.subr.bf16.mxu0 0
      %3677 = vmatpush1.bf16.xpose.msra.mxu0 0
      %3678 = vmatprep.subr.bf16.mxu0 0
      %3679 = vmatpush1.bf16.xpose.msra.mxu0 0
      %3680 = vmatprep.subr.bf16.mxu0 0
      %3681 = vmatpush1.bf16.xpose.msra.mxu0 0
      %3682 = vmatprep.mubr.bf16.mxu0 0
      %3683 = vmatmul.mubr.bf16.gmra.mrb[0].mxu0 %v3645
      %v3684 = vpop.f32.mrb[0].mxu0
      %v3685 = vadd.f32 0.0, %v3684
      %v3686 = vpop.f32.mrb[0].mxu0
      %v3687 = vpop.f32.mrb[0].mxu0
      %v3688 = vadd.f32 0.0, %v3687
      %v3689 = vpop.f32.mrb[0].mxu0
      %3690 = vdwg.mxu0
      %v3691 = vmul.f32 %v3685, 0.25
      %v3692 = vmul.f32 %v3688, 0.25
      %v3693 = vsel %vm2678, %v3691, -inf
      %3694 = vmax.xlane.f32.xlu0 %v3693
      %v3695 = vpop.xlane.xlu0 %3694
      %v3696 = vsel %vm2682, %v3692, -inf
      %3697 = vmax.xlane.f32.xlu0 %v3696
      %v3698 = vpop.xlane.xlu0 %3697
      %v3699 = vsub.f32 %v3691, %v3695
      %v3700 = vsub.f32 %v3692, %v3698
      %v3701 = vmul.f32 %v3699, 1.442695
      %v3702 = vpow.pop %v3701
      %v3703 = vmul.f32 %v3700, 1.442695
      %v3704 = vpow.pop %v3703
      %v3705 = vsel %vm2678, %v3702, 0.0
      %3706 = vadd.xlane.f32.xlu0 %v3705
      %v3707 = vpop.xlane.xlu0 %3706
      %v3708 = vsel %vm2682, %v3704, 0.0
      %3709 = vadd.xlane.f32.xlu0 %v3708
      %v3710 = vpop.xlane.xlu0 %3709
      %v3711 = vrcp.pop %v3707
      %v3712 = vrcp.pop %v3710
      %v3713 = vmul.f32 %v3702, %v3711
      %v3714 = vmul.f32 %v3704, %v3712
      %v3715 = vpack.c.bf16 %v3714, %v3713
      %v3716 = vpack.c.bf16 %v3638, %v3634
      %v3718 = vsel %vm2678, %v3715, 0
      %v3721 = vand.u32 %v3716, %v2710
      %3723 = vmatprep.subr.bf16.mxu0 0
      %3724 = vmatpush1.bf16.msra.mxu0 %v3721
      %3725 = vmatprep.subr.bf16.mxu0 0
      %3726 = vmatpush1.bf16.msra.mxu0 0
      %3727 = vmatprep.subr.bf16.mxu0 0
      %3728 = vmatpush1.bf16.msra.mxu0 0
      %3729 = vmatprep.subr.bf16.mxu0 0
      %3730 = vmatpush1.bf16.msra.mxu0 0
      %3731 = vmatprep.subr.bf16.mxu0 0
      %3732 = vmatpush1.bf16.msra.mxu0 0
      %3733 = vmatprep.subr.bf16.mxu0 0
      %3734 = vmatpush1.bf16.msra.mxu0 0
      %3735 = vmatprep.subr.bf16.mxu0 0
      %3736 = vmatpush1.bf16.msra.mxu0 0
      %3737 = vmatprep.subr.bf16.mxu0 0
      %3738 = vmatpush1.bf16.msra.mxu0 0
      %3739 = vmatprep.subr.bf16.mxu0 0
      %3740 = vmatpush1.bf16.msra.mxu0 0
      %3741 = vmatprep.subr.bf16.mxu0 0
      %3742 = vmatpush1.bf16.msra.mxu0 0
      %3743 = vmatprep.subr.bf16.mxu0 0
      %3744 = vmatpush1.bf16.msra.mxu0 0
      %3745 = vmatprep.subr.bf16.mxu0 0
      %3746 = vmatpush1.bf16.msra.mxu0 0
      %3747 = vmatprep.subr.bf16.mxu0 0
      %3748 = vmatpush1.bf16.msra.mxu0 0
      %3749 = vmatprep.subr.bf16.mxu0 0
      %3750 = vmatpush1.bf16.msra.mxu0 0
      %3751 = vmatprep.subr.bf16.mxu0 0
      %3752 = vmatpush1.bf16.msra.mxu0 0
      %3753 = vmatprep.subr.bf16.mxu0 0
      %3754 = vmatpush1.bf16.msra.mxu0 0
      %3755 = vmatprep.mubr.bf16.mxu0 0
      %3756 = vmatmul.mubr.bf16.gmra.mrb[0].mxu0 %v3718
      %v3757 = vpop.f32.mrb[0].mxu0
      %v3758 = vadd.f32 0.0, %v3757
      %v3759 = vpop.f32.mrb[0].mxu0
      %v3760 = vpop.f32.mrb[0].mxu0
      %v3761 = vadd.f32 0.0, %v3760
      %v3762 = vpop.f32.mrb[0].mxu0
      %3763 = vdwg.mxu0
      %3764 = vrot.lane.b32.xlu0 %v3640, 112
      %v3765 = vpop.permute.xlu0 %3764
      %3766 = vrot.lane.b32.xlu0 %v3640, 48
      %v3767 = vpop.permute.xlu0 %3766
      %v3769 = vsel %vm2628, %v3765, 0
      %v3772 = vsel %vm2628, %v3767, 0
      %3774 = vmatprep.subr.bf16.mxu0 0
      %3775 = vmatpush1.bf16.xpose.msra.mxu0 %v3772
      %3776 = vmatprep.subr.bf16.mxu0 0
      %3777 = vmatpush1.bf16.xpose.msra.mxu0 0
      %3778 = vmatprep.subr.bf16.mxu0 0
      %3779 = vmatpush1.bf16.xpose.msra.mxu0 0
      %3780 = vmatprep.subr.bf16.mxu0 0
      %3781 = vmatpush1.bf16.xpose.msra.mxu0 0
      %3782 = vmatprep.subr.bf16.mxu0 0
      %3783 = vmatpush1.bf16.xpose.msra.mxu0 0
      %3784 = vmatprep.subr.bf16.mxu0 0
      %3785 = vmatpush1.bf16.xpose.msra.mxu0 0
      %3786 = vmatprep.subr.bf16.mxu0 0
      %3787 = vmatpush1.bf16.xpose.msra.mxu0 0
      %3788 = vmatprep.subr.bf16.mxu0 0
      %3789 = vmatpush1.bf16.xpose.msra.mxu0 0
      %3790 = vmatprep.subr.bf16.mxu0 0
      %3791 = vmatpush1.bf16.xpose.msra.mxu0 0
      %3792 = vmatprep.subr.bf16.mxu0 0
      %3793 = vmatpush1.bf16.xpose.msra.mxu0 0
      %3794 = vmatprep.subr.bf16.mxu0 0
      %3795 = vmatpush1.bf16.xpose.msra.mxu0 0
      %3796 = vmatprep.subr.bf16.mxu0 0
      %3797 = vmatpush1.bf16.xpose.msra.mxu0 0
      %3798 = vmatprep.subr.bf16.mxu0 0
      %3799 = vmatpush1.bf16.xpose.msra.mxu0 0
      %3800 = vmatprep.subr.bf16.mxu0 0
      %3801 = vmatpush1.bf16.xpose.msra.mxu0 0
      %3802 = vmatprep.subr.bf16.mxu0 0
      %3803 = vmatpush1.bf16.xpose.msra.mxu0 0
      %3804 = vmatprep.subr.bf16.mxu0 0
      %3805 = vmatpush1.bf16.xpose.msra.mxu0 0
      %3806 = vmatprep.mubr.bf16.mxu0 0
      %3807 = vmatmul.mubr.bf16.gmra.mrb[0].mxu0 %v3769
      %v3808 = vpop.f32.mrb[0].mxu0
      %v3809 = vadd.f32 0.0, %v3808
      %v3810 = vpop.f32.mrb[0].mxu0
      %v3811 = vpop.f32.mrb[0].mxu0
      %v3812 = vadd.f32 0.0, %v3811
      %v3813 = vpop.f32.mrb[0].mxu0
      %3814 = vdwg.mxu0
      %v3815 = vmul.f32 %v3809, 0.25
      %v3816 = vmul.f32 %v3812, 0.25
      %v3817 = vsel %vm2678, %v3815, -inf
      %3818 = vmax.xlane.f32.xlu0 %v3817
      %v3819 = vpop.xlane.xlu0 %3818
      %v3820 = vsel %vm2682, %v3816, -inf
      %3821 = vmax.xlane.f32.xlu0 %v3820
      %v3822 = vpop.xlane.xlu0 %3821
      %v3823 = vsub.f32 %v3815, %v3819
      %v3824 = vsub.f32 %v3816, %v3822
      %v3825 = vmul.f32 %v3823, 1.442695
      %v3826 = vpow.pop %v3825
      %v3827 = vmul.f32 %v3824, 1.442695
      %v3828 = vpow.pop %v3827
      %v3829 = vsel %vm2678, %v3826, 0.0
      %3830 = vadd.xlane.f32.xlu0 %v3829
      %v3831 = vpop.xlane.xlu0 %3830
      %v3832 = vsel %vm2682, %v3828, 0.0
      %3833 = vadd.xlane.f32.xlu0 %v3832
      %v3834 = vpop.xlane.xlu0 %3833
      %v3835 = vrcp.pop %v3831
      %v3836 = vrcp.pop %v3834
      %v3837 = vmul.f32 %v3826, %v3835
      %v3838 = vmul.f32 %v3828, %v3836
      %v3839 = vpack.c.bf16 %v3838, %v3837
      %3841 = vrot.lane.b32.xlu0 %v3716, 112
      %v3842 = vpop.permute.xlu0 %3841
      %v3844 = vsel %vm2678, %v3839, 0
      %v3847 = vand.u32 %v3842, %v2710
      %3849 = vmatprep.subr.bf16.mxu0 0
      %3850 = vmatpush1.bf16.msra.mxu0 %v3847
      %3851 = vmatprep.subr.bf16.mxu0 0
      %3852 = vmatpush1.bf16.msra.mxu0 0
      %3853 = vmatprep.subr.bf16.mxu0 0
      %3854 = vmatpush1.bf16.msra.mxu0 0
      %3855 = vmatprep.subr.bf16.mxu0 0
      %3856 = vmatpush1.bf16.msra.mxu0 0
      %3857 = vmatprep.subr.bf16.mxu0 0
      %3858 = vmatpush1.bf16.msra.mxu0 0
      %3859 = vmatprep.subr.bf16.mxu0 0
      %3860 = vmatpush1.bf16.msra.mxu0 0
      %3861 = vmatprep.subr.bf16.mxu0 0
      %3862 = vmatpush1.bf16.msra.mxu0 0
      %3863 = vmatprep.subr.bf16.mxu0 0
      %3864 = vmatpush1.bf16.msra.mxu0 0
      %3865 = vmatprep.subr.bf16.mxu0 0
      %3866 = vmatpush1.bf16.msra.mxu0 0
      %3867 = vmatprep.subr.bf16.mxu0 0
      %3868 = vmatpush1.bf16.msra.mxu0 0
      %3869 = vmatprep.subr.bf16.mxu0 0
      %3870 = vmatpush1.bf16.msra.mxu0 0
      %3871 = vmatprep.subr.bf16.mxu0 0
      %3872 = vmatpush1.bf16.msra.mxu0 0
      %3873 = vmatprep.subr.bf16.mxu0 0
      %3874 = vmatpush1.bf16.msra.mxu0 0
      %3875 = vmatprep.subr.bf16.mxu0 0
      %3876 = vmatpush1.bf16.msra.mxu0 0
      %3877 = vmatprep.subr.bf16.mxu0 0
      %3878 = vmatpush1.bf16.msra.mxu0 0
      %3879 = vmatprep.subr.bf16.mxu0 0
      %3880 = vmatpush1.bf16.msra.mxu0 0
      %3881 = vmatprep.mubr.bf16.mxu0 0
      %3882 = vmatmul.mubr.bf16.gmra.mrb[0].mxu0 %v3844
      %v3883 = vpop.f32.mrb[0].mxu0
      %v3884 = vadd.f32 0.0, %v3883
      %v3885 = vpop.f32.mrb[0].mxu0
      %v3886 = vpop.f32.mrb[0].mxu0
      %v3887 = vadd.f32 0.0, %v3886
      %v3888 = vpop.f32.mrb[0].mxu0
      %3889 = vdwg.mxu0
      %3890 = vrot.lane.b32.xlu0 %v3640, 96
      %v3891 = vpop.permute.xlu0 %3890
      %3892 = vrot.lane.b32.xlu0 %v3640, 32
      %v3893 = vpop.permute.xlu0 %3892
      %v3895 = vsel %vm2628, %v3891, 0
      %v3898 = vsel %vm2628, %v3893, 0
      %3900 = vmatprep.subr.bf16.mxu0 0
      %3901 = vmatpush1.bf16.xpose.msra.mxu0 %v3898
      %3902 = vmatprep.subr.bf16.mxu0 0
      %3903 = vmatpush1.bf16.xpose.msra.mxu0 0
      %3904 = vmatprep.subr.bf16.mxu0 0
      %3905 = vmatpush1.bf16.xpose.msra.mxu0 0
      %3906 = vmatprep.subr.bf16.mxu0 0
      %3907 = vmatpush1.bf16.xpose.msra.mxu0 0
      %3908 = vmatprep.subr.bf16.mxu0 0
      %3909 = vmatpush1.bf16.xpose.msra.mxu0 0
      %3910 = vmatprep.subr.bf16.mxu0 0
      %3911 = vmatpush1.bf16.xpose.msra.mxu0 0
      %3912 = vmatprep.subr.bf16.mxu0 0
      %3913 = vmatpush1.bf16.xpose.msra.mxu0 0
      %3914 = vmatprep.subr.bf16.mxu0 0
      %3915 = vmatpush1.bf16.xpose.msra.mxu0 0
      %3916 = vmatprep.subr.bf16.mxu0 0
      %3917 = vmatpush1.bf16.xpose.msra.mxu0 0
      %3918 = vmatprep.subr.bf16.mxu0 0
      %3919 = vmatpush1.bf16.xpose.msra.mxu0 0
      %3920 = vmatprep.subr.bf16.mxu0 0
      %3921 = vmatpush1.bf16.xpose.msra.mxu0 0
      %3922 = vmatprep.subr.bf16.mxu0 0
      %3923 = vmatpush1.bf16.xpose.msra.mxu0 0
      %3924 = vmatprep.subr.bf16.mxu0 0
      %3925 = vmatpush1.bf16.xpose.msra.mxu0 0
      %3926 = vmatprep.subr.bf16.mxu0 0
      %3927 = vmatpush1.bf16.xpose.msra.mxu0 0
      %3928 = vmatprep.subr.bf16.mxu0 0
      %3929 = vmatpush1.bf16.xpose.msra.mxu0 0
      %3930 = vmatprep.subr.bf16.mxu0 0
      %3931 = vmatpush1.bf16.xpose.msra.mxu0 0
      %3932 = vmatprep.mubr.bf16.mxu0 0
      %3933 = vmatmul.mubr.bf16.gmra.mrb[0].mxu0 %v3895
      %v3934 = vpop.f32.mrb[0].mxu0
      %v3935 = vadd.f32 0.0, %v3934
      %v3936 = vpop.f32.mrb[0].mxu0
      %v3937 = vpop.f32.mrb[0].mxu0
      %v3938 = vadd.f32 0.0, %v3937
      %v3939 = vpop.f32.mrb[0].mxu0
      %3940 = vdwg.mxu0
      %v3941 = vmul.f32 %v3935, 0.25
      %v3942 = vmul.f32 %v3938, 0.25
      %v3943 = vsel %vm2678, %v3941, -inf
      %3944 = vmax.xlane.f32.xlu0 %v3943
      %v3945 = vpop.xlane.xlu0 %3944
      %v3946 = vsel %vm2682, %v3942, -inf
      %3947 = vmax.xlane.f32.xlu0 %v3946
      %v3948 = vpop.xlane.xlu0 %3947
      %v3949 = vsub.f32 %v3941, %v3945
      %v3950 = vsub.f32 %v3942, %v3948
      %v3951 = vmul.f32 %v3949, 1.442695
      %v3952 = vpow.pop %v3951
      %v3953 = vmul.f32 %v3950, 1.442695
      %v3954 = vpow.pop %v3953
      %v3955 = vsel %vm2678, %v3952, 0.0
      %3956 = vadd.xlane.f32.xlu0 %v3955
      %v3957 = vpop.xlane.xlu0 %3956
      %v3958 = vsel %vm2682, %v3954, 0.0
      %3959 = vadd.xlane.f32.xlu0 %v3958
      %v3960 = vpop.xlane.xlu0 %3959
      %v3961 = vrcp.pop %v3957
      %v3962 = vrcp.pop %v3960
      %v3963 = vmul.f32 %v3952, %v3961
      %v3964 = vmul.f32 %v3954, %v3962
      %v3965 = vpack.c.bf16 %v3964, %v3963
      %3966 = vrot.lane.b32.xlu0 %v3716, 96
      %v3967 = vpop.permute.xlu0 %3966
      %v3969 = vsel %vm2678, %v3965, 0
      %v3972 = vand.u32 %v3967, %v2710
      %3974 = vmatprep.subr.bf16.mxu0 0
      %3975 = vmatpush1.bf16.msra.mxu0 %v3972
      %3976 = vmatprep.subr.bf16.mxu0 0
      %3977 = vmatpush1.bf16.msra.mxu0 0
      %3978 = vmatprep.subr.bf16.mxu0 0
      %3979 = vmatpush1.bf16.msra.mxu0 0
      %3980 = vmatprep.subr.bf16.mxu0 0
      %3981 = vmatpush1.bf16.msra.mxu0 0
      %3982 = vmatprep.subr.bf16.mxu0 0
      %3983 = vmatpush1.bf16.msra.mxu0 0
      %3984 = vmatprep.subr.bf16.mxu0 0
      %3985 = vmatpush1.bf16.msra.mxu0 0
      %3986 = vmatprep.subr.bf16.mxu0 0
      %3987 = vmatpush1.bf16.msra.mxu0 0
      %3988 = vmatprep.subr.bf16.mxu0 0
      %3989 = vmatpush1.bf16.msra.mxu0 0
      %3990 = vmatprep.subr.bf16.mxu0 0
      %3991 = vmatpush1.bf16.msra.mxu0 0
      %3992 = vmatprep.subr.bf16.mxu0 0
      %3993 = vmatpush1.bf16.msra.mxu0 0
      %3994 = vmatprep.subr.bf16.mxu0 0
      %3995 = vmatpush1.bf16.msra.mxu0 0
      %3996 = vmatprep.subr.bf16.mxu0 0
      %3997 = vmatpush1.bf16.msra.mxu0 0
      %3998 = vmatprep.subr.bf16.mxu0 0
      %3999 = vmatpush1.bf16.msra.mxu0 0
      %4000 = vmatprep.subr.bf16.mxu0 0
      %4001 = vmatpush1.bf16.msra.mxu0 0
      %4002 = vmatprep.subr.bf16.mxu0 0
      %4003 = vmatpush1.bf16.msra.mxu0 0
      %4004 = vmatprep.subr.bf16.mxu0 0
      %4005 = vmatpush1.bf16.msra.mxu0 0
      %4006 = vmatprep.mubr.bf16.mxu0 0
      %4007 = vmatmul.mubr.bf16.gmra.mrb[0].mxu0 %v3969
      %v4008 = vpop.f32.mrb[0].mxu0
      %v4009 = vadd.f32 0.0, %v4008
      %v4010 = vpop.f32.mrb[0].mxu0
      %v4011 = vpop.f32.mrb[0].mxu0
      %v4012 = vadd.f32 0.0, %v4011
      %v4013 = vpop.f32.mrb[0].mxu0
      %4014 = vdwg.mxu0
      %4015 = vrot.lane.b32.xlu0 %v3640, 80
      %v4016 = vpop.permute.xlu0 %4015
      %4017 = vrot.lane.b32.xlu0 %v3640, 16
      %v4018 = vpop.permute.xlu0 %4017
      %v4020 = vsel %vm2628, %v4016, 0
      %v4023 = vsel %vm2628, %v4018, 0
      %4025 = vmatprep.subr.bf16.mxu0 0
      %4026 = vmatpush1.bf16.xpose.msra.mxu0 %v4023
      %4027 = vmatprep.subr.bf16.mxu0 0
      %4028 = vmatpush1.bf16.xpose.msra.mxu0 0
      %4029 = vmatprep.subr.bf16.mxu0 0
      %4030 = vmatpush1.bf16.xpose.msra.mxu0 0
      %4031 = vmatprep.subr.bf16.mxu0 0
      %4032 = vmatpush1.bf16.xpose.msra.mxu0 0
      %4033 = vmatprep.subr.bf16.mxu0 0
      %4034 = vmatpush1.bf16.xpose.msra.mxu0 0
      %4035 = vmatprep.subr.bf16.mxu0 0
      %4036 = vmatpush1.bf16.xpose.msra.mxu0 0
      %4037 = vmatprep.subr.bf16.mxu0 0
      %4038 = vmatpush1.bf16.xpose.msra.mxu0 0
      %4039 = vmatprep.subr.bf16.mxu0 0
      %4040 = vmatpush1.bf16.xpose.msra.mxu0 0
      %4041 = vmatprep.subr.bf16.mxu0 0
      %4042 = vmatpush1.bf16.xpose.msra.mxu0 0
      %4043 = vmatprep.subr.bf16.mxu0 0
      %4044 = vmatpush1.bf16.xpose.msra.mxu0 0
      %4045 = vmatprep.subr.bf16.mxu0 0
      %4046 = vmatpush1.bf16.xpose.msra.mxu0 0
      %4047 = vmatprep.subr.bf16.mxu0 0
      %4048 = vmatpush1.bf16.xpose.msra.mxu0 0
      %4049 = vmatprep.subr.bf16.mxu0 0
      %4050 = vmatpush1.bf16.xpose.msra.mxu0 0
      %4051 = vmatprep.subr.bf16.mxu0 0
      %4052 = vmatpush1.bf16.xpose.msra.mxu0 0
      %4053 = vmatprep.subr.bf16.mxu0 0
      %4054 = vmatpush1.bf16.xpose.msra.mxu0 0
      %4055 = vmatprep.subr.bf16.mxu0 0
      %4056 = vmatpush1.bf16.xpose.msra.mxu0 0
      %4057 = vmatprep.mubr.bf16.mxu0 0
      %4058 = vmatmul.mubr.bf16.gmra.mrb[0].mxu0 %v4020
      %v4059 = vpop.f32.mrb[0].mxu0
      %v4060 = vadd.f32 0.0, %v4059
      %v4061 = vpop.f32.mrb[0].mxu0
      %v4062 = vpop.f32.mrb[0].mxu0
      %v4063 = vadd.f32 0.0, %v4062
      %v4064 = vpop.f32.mrb[0].mxu0
      %4065 = vdwg.mxu0
      %v4066 = vmul.f32 %v4060, 0.25
      %v4067 = vmul.f32 %v4063, 0.25
      %v4068 = vsel %vm2678, %v4066, -inf
      %4069 = vmax.xlane.f32.xlu0 %v4068
      %v4070 = vpop.xlane.xlu0 %4069
      %v4071 = vsel %vm2682, %v4067, -inf
      %4072 = vmax.xlane.f32.xlu0 %v4071
      %v4073 = vpop.xlane.xlu0 %4072
      %v4074 = vsub.f32 %v4066, %v4070
      %v4075 = vsub.f32 %v4067, %v4073
      %v4076 = vmul.f32 %v4074, 1.442695
      %v4077 = vpow.pop %v4076
      %v4078 = vmul.f32 %v4075, 1.442695
      %v4079 = vpow.pop %v4078
      %v4080 = vsel %vm2678, %v4077, 0.0
      %4081 = vadd.xlane.f32.xlu0 %v4080
      %v4082 = vpop.xlane.xlu0 %4081
      %v4083 = vsel %vm2682, %v4079, 0.0
      %4084 = vadd.xlane.f32.xlu0 %v4083
      %v4085 = vpop.xlane.xlu0 %4084
      %v4086 = vrcp.pop %v4082
      %v4087 = vrcp.pop %v4085
      %v4088 = vmul.f32 %v4077, %v4086
      %v4089 = vmul.f32 %v4079, %v4087
      %v4090 = vpack.c.bf16 %v4089, %v4088
      %4091 = vrot.lane.b32.xlu0 %v3716, 80
      %v4092 = vpop.permute.xlu0 %4091
      %v4094 = vsel %vm2678, %v4090, 0
      %v4097 = vand.u32 %v4092, %v2710
      %4099 = vmatprep.subr.bf16.mxu0 0
      %4100 = vmatpush1.bf16.msra.mxu0 %v4097
      %4101 = vmatprep.subr.bf16.mxu0 0
      %4102 = vmatpush1.bf16.msra.mxu0 0
      %4103 = vmatprep.subr.bf16.mxu0 0
      %4104 = vmatpush1.bf16.msra.mxu0 0
      %4105 = vmatprep.subr.bf16.mxu0 0
      %4106 = vmatpush1.bf16.msra.mxu0 0
      %4107 = vmatprep.subr.bf16.mxu0 0
      %4108 = vmatpush1.bf16.msra.mxu0 0
      %4109 = vmatprep.subr.bf16.mxu0 0
      %4110 = vmatpush1.bf16.msra.mxu0 0
      %4111 = vmatprep.subr.bf16.mxu0 0
      %4112 = vmatpush1.bf16.msra.mxu0 0
      %4113 = vmatprep.subr.bf16.mxu0 0
      %4114 = vmatpush1.bf16.msra.mxu0 0
      %4115 = vmatprep.subr.bf16.mxu0 0
      %4116 = vmatpush1.bf16.msra.mxu0 0
      %4117 = vmatprep.subr.bf16.mxu0 0
      %4118 = vmatpush1.bf16.msra.mxu0 0
      %4119 = vmatprep.subr.bf16.mxu0 0
      %4120 = vmatpush1.bf16.msra.mxu0 0
      %4121 = vmatprep.subr.bf16.mxu0 0
      %4122 = vmatpush1.bf16.msra.mxu0 0
      %4123 = vmatprep.subr.bf16.mxu0 0
      %4124 = vmatpush1.bf16.msra.mxu0 0
      %4125 = vmatprep.subr.bf16.mxu0 0
      %4126 = vmatpush1.bf16.msra.mxu0 0
      %4127 = vmatprep.subr.bf16.mxu0 0
      %4128 = vmatpush1.bf16.msra.mxu0 0
      %4129 = vmatprep.subr.bf16.mxu0 0
      %4130 = vmatpush1.bf16.msra.mxu0 0
      %4131 = vmatprep.mubr.bf16.mxu0 0
      %4132 = vmatmul.mubr.bf16.gmra.mrb[0].mxu0 %v4094
      %v4133 = vpop.f32.mrb[0].mxu0
      %v4134 = vadd.f32 0.0, %v4133
      %v4135 = vpop.f32.mrb[0].mxu0
      %v4136 = vpop.f32.mrb[0].mxu0
      %v4137 = vadd.f32 0.0, %v4136
      %v4138 = vpop.f32.mrb[0].mxu0
      %4139 = vdwg.mxu0
      %4142 = vrot.lane.b32.xlu0 %v3884, 16
      %v4143 = vpop.permute.xlu0 %4142
      %4144 = vrot.lane.b32.xlu0 %v3887, 16
      %v4145 = vpop.permute.xlu0 %4144
      %4150 = vrot.lane.b32.xlu0 %v4009, 32
      %v4151 = vpop.permute.xlu0 %4150
      %4152 = vrot.lane.b32.xlu0 %v4012, 32
      %v4153 = vpop.permute.xlu0 %4152
      %4158 = vrot.lane.b32.xlu0 %v4134, 48
      %v4159 = vpop.permute.xlu0 %4158
      %4160 = vrot.lane.b32.xlu0 %v4137, 48
      %v4161 = vpop.permute.xlu0 %4160
      %v4164 = vsel %vm2628, %v3758, %v4143
      %v4165 = vsel %vm2628, %v3761, %v4145
      %v4166 = vsel %vm3157, %v4164, %v4151
      %v4167 = vsel %vm3157, %v4165, %v4153
      %v4168 = vsel %vm3160, %v4166, %v4159
      %v4169 = vsel %vm3160, %v4167, %v4161
      %v4170 = vpack.c.bf16 %v4169, %v4168
      %s4171 = scalar_lea.vmem %s4, 32
      %v4172 = vld [vmem:[%s4171] sm:$0xf]
      %v4173 = vld [vmem:[%s4171 + $0x4] sm:$0xf]
      %v4174 = vld [vmem:[%s4171 + $0x8] sm:$0xf]
      %v4175 = vld [vmem:[%s4171 + $0xc] sm:$0xf]
      %v4176 = vld [vmem:[%s4171 + $0x10] sm:$0xf]
      %v4177 = vld [vmem:[%s4171 + $0x14] sm:$0xf]
      %v4178 = vld [vmem:[%s4171 + $0x18] sm:$0xf]
      %v4179 = vld [vmem:[%s4171 + $0x1c] sm:$0xf]
      %v4180 = vlaneseq
      %v4181 = vshrl.u32 %v4180, 7
      %v4182 = vsub.s32 5, %v4181
      %v4183 = vrot.slane %v3496, %v4182
      %v4192 = vunpack.c.l.b16 %v4172
      %v4193 = vunpack.c.l.b16 %v4173
      %v4194 = vunpack.c.l.b16 %v4174
      %v4195 = vunpack.c.l.b16 %v4175
      %v4196 = vunpack.c.l.b16 %v4176
      %v4197 = vunpack.c.l.b16 %v4177
      %v4198 = vunpack.c.l.b16 %v4178
      %v4199 = vunpack.c.l.b16 %v4179
      %v4200 = vpack.c.b16 %v4193, %v4192
      %v4201 = vpack.c.b16 %v4195, %v4194
      %v4202 = vpack.c.b16 %v4197, %v4196
      %v4203 = vpack.c.b16 %v4199, %v4198
      %v4209 = vsel %vm2480, %v4170, 0
      %4211 = vmatprep.subr.bf16.mxu0 0
      %4212 = vmatpush1.bf16.msra.mxu0 %v4200
      %4213 = vmatprep.subr.bf16.mxu0 0
      %4214 = vmatpush1.bf16.msra.mxu0 %v4201
      %4215 = vmatprep.subr.bf16.mxu0 0
      %4216 = vmatpush1.bf16.msra.mxu0 %v4202
      %4217 = vmatprep.subr.bf16.mxu0 0
      %4218 = vmatpush1.bf16.msra.mxu0 %v4203
      %4219 = vmatprep.subr.bf16.mxu0 0
      %4220 = vmatpush1.bf16.msra.mxu0 0
      %4221 = vmatprep.subr.bf16.mxu0 0
      %4222 = vmatpush1.bf16.msra.mxu0 0
      %4223 = vmatprep.subr.bf16.mxu0 0
      %4224 = vmatpush1.bf16.msra.mxu0 0
      %4225 = vmatprep.subr.bf16.mxu0 0
      %4226 = vmatpush1.bf16.msra.mxu0 0
      %4227 = vmatprep.subr.bf16.mxu0 0
      %4228 = vmatpush1.bf16.msra.mxu0 0
      %4229 = vmatprep.subr.bf16.mxu0 0
      %4230 = vmatpush1.bf16.msra.mxu0 0
      %4231 = vmatprep.subr.bf16.mxu0 0
      %4232 = vmatpush1.bf16.msra.mxu0 0
      %4233 = vmatprep.subr.bf16.mxu0 0
      %4234 = vmatpush1.bf16.msra.mxu0 0
      %4235 = vmatprep.subr.bf16.mxu0 0
      %4236 = vmatpush1.bf16.msra.mxu0 0
      %4237 = vmatprep.subr.bf16.mxu0 0
      %4238 = vmatpush1.bf16.msra.mxu0 0
      %4239 = vmatprep.subr.bf16.mxu0 0
      %4240 = vmatpush1.bf16.msra.mxu0 0
      %4241 = vmatprep.subr.bf16.mxu0 0
      %4242 = vmatpush1.bf16.msra.mxu0 0
      %4243 = vmatprep.mubr.bf16.mxu0 0
      %4244 = vmatmul.mubr.bf16.gmra.mrb[0].mxu0 %v4209
      %v4245 = vpop.f32.mrb[0].mxu0
      %v4246 = vadd.f32 %v4183, %v4245
      %v4247 = vpop.f32.mrb[0].mxu0
      %v4248 = vpop.f32.mrb[0].mxu0
      %v4249 = vadd.f32 %v4183, %v4248
      %v4250 = vpop.f32.mrb[0].mxu0
      %4251 = vdwg.mxu0
      %v4252 = vadd.f32 %v3493, %v4246
      %v4253 = vadd.f32 %v3494, %v4249
      %v4254 = vsel %vm2480, %v4252, 0.0
      %4255 = vadd.xlane.f32.xlu0 %v4254
      %v4256 = vpop.xlane.xlu0 %4255
      %v4257 = vsel %vm2484, %v4253, 0.0
      %4258 = vadd.xlane.f32.xlu0 %v4257
      %v4259 = vpop.xlane.xlu0 %4258
      %v4260 = vmul.f32 %v4256, %v2488
      %v4261 = vmul.f32 %v4259, %v2488
      %v4262 = vsub.f32 %v4252, %v4260
      %v4263 = vsub.f32 %v4253, %v4261
      %v4264 = vmul.f32 %v4262, %v4262
      %v4265 = vmul.f32 %v4263, %v4263
      %v4266 = vsel %vm2480, %v4264, 0.0
      %4267 = vadd.xlane.f32.xlu0 %v4266
      %v4268 = vpop.xlane.xlu0 %4267
      %v4269 = vsel %vm2484, %v4265, 0.0
      %4270 = vadd.xlane.f32.xlu0 %v4269
      %v4271 = vpop.xlane.xlu0 %4270
      %v4272 = vmul.f32 %v4268, %v2488
      %v4273 = vmul.f32 %v4271, %v2488
      %v4274 = vadd.f32 %v4272, 1e-05
      %v4275 = vadd.f32 %v4273, 1e-05
      %v4276 = vrsqrt.pop %v4274
      %v4277 = vrsqrt.pop %v4275
      %v4278 = vmul.f32 %v4262, %v4276
      %v4279 = vmul.f32 %v4263, %v4277
      %v4280 = vlaneseq
      %v4281 = vshrl.u32 %v4280, 7
      %v4282 = vsub.s32 2, %v4281
      %v4283 = vrot.slane %v3496, %v4282
      %v4284 = vmul.f32 %v4278, %v4283
      %v4285 = vmul.f32 %v4279, %v4283
      %v4286 = vlaneseq
      %v4287 = vshrl.u32 %v4286, 7
      %v4288 = vsub.s32 3, %v4287
      %v4289 = vrot.slane %v3496, %v4288
      %v4290 = vadd.f32 %v4284, %v4289
      %v4291 = vadd.f32 %v4285, %v4289
      %v4292 = vpack.c.bf16 %v4291, %v4290
      %s4293 = scalar_lea.vmem %s5, 32
      %v4294 = vld [vmem:[%s4293] sm:$0xf]
      %v4295 = vld [vmem:[%s4293 + $0x4] sm:$0xf]
      %v4296 = vld [vmem:[%s4293 + $0x8] sm:$0xf]
      %v4297 = vld [vmem:[%s4293 + $0xc] sm:$0xf]
      %v4298 = vld [vmem:[%s4293 + $0x10] sm:$0xf]
      %v4299 = vld [vmem:[%s4293 + $0x14] sm:$0xf]
      %v4300 = vld [vmem:[%s4293 + $0x18] sm:$0xf]
      %v4301 = vld [vmem:[%s4293 + $0x1c] sm:$0xf]
      %v4302 = vlaneseq
      %v4303 = vshrl.u32 %v4302, 7
      %v4304 = vsub.s32 6, %v4303
      %v4305 = vrot.slane %v3496, %v4304
      %v4314 = vunpack.c.l.b16 %v4294
      %v4315 = vunpack.c.l.b16 %v4295
      %v4316 = vunpack.c.l.b16 %v4296
      %v4317 = vunpack.c.l.b16 %v4297
      %v4318 = vunpack.c.l.b16 %v4298
      %v4319 = vunpack.c.l.b16 %v4299
      %v4320 = vunpack.c.l.b16 %v4300
      %v4321 = vunpack.c.l.b16 %v4301
      %v4322 = vpack.c.b16 %v4315, %v4314
      %v4323 = vpack.c.b16 %v4317, %v4316
      %v4324 = vpack.c.b16 %v4319, %v4318
      %v4325 = vpack.c.b16 %v4321, %v4320
      %v4331 = vsel %vm2480, %v4292, 0
      %4333 = vmatprep.subr.bf16.mxu0 0
      %4334 = vmatpush1.bf16.msra.mxu0 %v4322
      %4335 = vmatprep.subr.bf16.mxu0 0
      %4336 = vmatpush1.bf16.msra.mxu0 %v4323
      %4337 = vmatprep.subr.bf16.mxu0 0
      %4338 = vmatpush1.bf16.msra.mxu0 %v4324
      %4339 = vmatprep.subr.bf16.mxu0 0
      %4340 = vmatpush1.bf16.msra.mxu0 %v4325
      %4341 = vmatprep.subr.bf16.mxu0 0
      %4342 = vmatpush1.bf16.msra.mxu0 0
      %4343 = vmatprep.subr.bf16.mxu0 0
      %4344 = vmatpush1.bf16.msra.mxu0 0
      %4345 = vmatprep.subr.bf16.mxu0 0
      %4346 = vmatpush1.bf16.msra.mxu0 0
      %4347 = vmatprep.subr.bf16.mxu0 0
      %4348 = vmatpush1.bf16.msra.mxu0 0
      %4349 = vmatprep.subr.bf16.mxu0 0
      %4350 = vmatpush1.bf16.msra.mxu0 0
      %4351 = vmatprep.subr.bf16.mxu0 0
      %4352 = vmatpush1.bf16.msra.mxu0 0
      %4353 = vmatprep.subr.bf16.mxu0 0
      %4354 = vmatpush1.bf16.msra.mxu0 0
      %4355 = vmatprep.subr.bf16.mxu0 0
      %4356 = vmatpush1.bf16.msra.mxu0 0
      %4357 = vmatprep.subr.bf16.mxu0 0
      %4358 = vmatpush1.bf16.msra.mxu0 0
      %4359 = vmatprep.subr.bf16.mxu0 0
      %4360 = vmatpush1.bf16.msra.mxu0 0
      %4361 = vmatprep.subr.bf16.mxu0 0
      %4362 = vmatpush1.bf16.msra.mxu0 0
      %4363 = vmatprep.subr.bf16.mxu0 0
      %4364 = vmatpush1.bf16.msra.mxu0 0
      %4365 = vmatprep.mubr.bf16.mxu0 0
      %4366 = vmatmul.mubr.bf16.gmra.mrb[0].mxu0 %v4331
      %v4367 = vpop.f32.mrb[0].mxu0
      %v4368 = vadd.f32 %v4305, %v4367
      %v4369 = vpop.f32.mrb[0].mxu0
      %v4370 = vpop.f32.mrb[0].mxu0
      %v4371 = vadd.f32 %v4305, %v4370
      %v4372 = vpop.f32.mrb[0].mxu0
      %4373 = vdwg.mxu0
      %v4374 = vmul.f32 %v4368, 0.5
      %v4375 = vmul.f32 %v4371, 0.5
      %v4376 = vmul.f32 %v4368, 0.044715
      %v4377 = vmul.f32 %v4371, 0.044715
      %v4378 = vmul.f32 %v4376, %v4368
      %v4379 = vmul.f32 %v4377, %v4371
      %v4380 = vmul.f32 %v4378, %v4368
      %v4381 = vmul.f32 %v4379, %v4371
      %v4382 = vadd.f32 %v4368, %v4380
      %v4383 = vadd.f32 %v4371, %v4381
      %v4384 = vmul.f32 %v4382, 0.7978846
      %v4385 = vmul.f32 %v4383, 0.7978846
      %v4386 = vtanh.pop %v4384
      %v4387 = vtanh.pop %v4385
      %v4388 = vadd.f32 %v4386, 1.0
      %v4389 = vadd.f32 %v4387, 1.0
      %v4390 = vmul.f32 %v4374, %v4388
      %v4391 = vmul.f32 %v4375, %v4389
      %v4392 = vpack.c.bf16 %v4391, %v4390
      %s4393 = scalar_lea.vmem %s6, 64
      %v4394 = vld [vmem:[%s4393] sm:$0xf]
      %v4395 = vld [vmem:[%s4393 + $0x4] sm:$0xf]
      %v4396 = vld [vmem:[%s4393 + $0x8] sm:$0xf]
      %v4397 = vld [vmem:[%s4393 + $0xc] sm:$0xf]
      %v4398 = vld [vmem:[%s4393 + $0x10] sm:$0xf]
      %v4399 = vld [vmem:[%s4393 + $0x14] sm:$0xf]
      %v4400 = vld [vmem:[%s4393 + $0x18] sm:$0xf]
      %v4401 = vld [vmem:[%s4393 + $0x1c] sm:$0xf]
      %v4402 = vld [vmem:[%s4393 + $0x20] sm:$0xf]
      %v4403 = vld [vmem:[%s4393 + $0x24] sm:$0xf]
      %v4404 = vld [vmem:[%s4393 + $0x28] sm:$0xf]
      %v4405 = vld [vmem:[%s4393 + $0x2c] sm:$0xf]
      %v4406 = vld [vmem:[%s4393 + $0x30] sm:$0xf]
      %v4407 = vld [vmem:[%s4393 + $0x34] sm:$0xf]
      %v4408 = vld [vmem:[%s4393 + $0x38] sm:$0xf]
      %v4409 = vld [vmem:[%s4393 + $0x3c] sm:$0xf]
      %v4410 = vlaneseq
      %v4411 = vshrl.u32 %v4410, 7
      %v4412 = vsub.s32 7, %v4411
      %v4413 = vrot.slane %v3496, %v4412
      %v4430 = vunpack.c.l.b16 %v4394
      %v4431 = vunpack.c.l.b16 %v4395
      %v4432 = vunpack.c.l.b16 %v4396
      %v4433 = vunpack.c.l.b16 %v4397
      %v4434 = vunpack.c.l.b16 %v4398
      %v4435 = vunpack.c.l.b16 %v4399
      %v4436 = vunpack.c.l.b16 %v4400
      %v4437 = vunpack.c.l.b16 %v4401
      %v4438 = vunpack.c.l.b16 %v4402
      %v4439 = vunpack.c.l.b16 %v4403
      %v4440 = vunpack.c.l.b16 %v4404
      %v4441 = vunpack.c.l.b16 %v4405
      %v4442 = vunpack.c.l.b16 %v4406
      %v4443 = vunpack.c.l.b16 %v4407
      %v4444 = vunpack.c.l.b16 %v4408
      %v4445 = vunpack.c.l.b16 %v4409
      %v4446 = vpack.c.b16 %v4431, %v4430
      %v4447 = vpack.c.b16 %v4433, %v4432
      %v4448 = vpack.c.b16 %v4435, %v4434
      %v4449 = vpack.c.b16 %v4437, %v4436
      %v4450 = vpack.c.b16 %v4439, %v4438
      %v4451 = vpack.c.b16 %v4441, %v4440
      %v4452 = vpack.c.b16 %v4443, %v4442
      %v4453 = vpack.c.b16 %v4445, %v4444
      %4462 = vmatprep.subr.bf16.mxu0 0
      %4463 = vmatpush1.bf16.msra.mxu0 %v4446
      %4464 = vmatprep.subr.bf16.mxu0 0
      %4465 = vmatpush1.bf16.msra.mxu0 %v4447
      %4466 = vmatprep.subr.bf16.mxu0 0
      %4467 = vmatpush1.bf16.msra.mxu0 %v4448
      %4468 = vmatprep.subr.bf16.mxu0 0
      %4469 = vmatpush1.bf16.msra.mxu0 %v4449
      %4470 = vmatprep.subr.bf16.mxu0 0
      %4471 = vmatpush1.bf16.msra.mxu0 %v4450
      %4472 = vmatprep.subr.bf16.mxu0 0
      %4473 = vmatpush1.bf16.msra.mxu0 %v4451
      %4474 = vmatprep.subr.bf16.mxu0 0
      %4475 = vmatpush1.bf16.msra.mxu0 %v4452
      %4476 = vmatprep.subr.bf16.mxu0 0
      %4477 = vmatpush1.bf16.msra.mxu0 %v4453
      %4478 = vmatprep.subr.bf16.mxu0 0
      %4479 = vmatpush1.bf16.msra.mxu0 0
      %4480 = vmatprep.subr.bf16.mxu0 0
      %4481 = vmatpush1.bf16.msra.mxu0 0
      %4482 = vmatprep.subr.bf16.mxu0 0
      %4483 = vmatpush1.bf16.msra.mxu0 0
      %4484 = vmatprep.subr.bf16.mxu0 0
      %4485 = vmatpush1.bf16.msra.mxu0 0
      %4486 = vmatprep.subr.bf16.mxu0 0
      %4487 = vmatpush1.bf16.msra.mxu0 0
      %4488 = vmatprep.subr.bf16.mxu0 0
      %4489 = vmatpush1.bf16.msra.mxu0 0
      %4490 = vmatprep.subr.bf16.mxu0 0
      %4491 = vmatpush1.bf16.msra.mxu0 0
      %4492 = vmatprep.subr.bf16.mxu0 0
      %4493 = vmatpush1.bf16.msra.mxu0 0
      %4494 = vmatprep.mubr.bf16.mxu0 0
      %4495 = vmatmul.mubr.bf16.gmra.mrb[0].mxu0 %v4392
      %v4496 = vpop.f32.mrb[0].mxu0
      %v4497 = vadd.f32 %v4413, %v4496
      %v4498 = vpop.f32.mrb[0].mxu0
      %v4499 = vpop.f32.mrb[0].mxu0
      %v4500 = vpop.f32.mrb[0].mxu0
      %4501 = vdwg.mxu0
      %v4502 = vadd.f32 %v4252, %v4497
      %v4503 = vld [vmem:[%s8] sm:$0x1]
      %v4504 = vld [vmem:[%s8 + $0x1] sm:$0x1]
      %v4505 = vsel %vm2484, %v4502, 0.0
      %4506 = vadd.xlane.f32.xlu0 %v4505
      %v4507 = vpop.xlane.xlu0 %4506
      %v4508 = vmul.f32 %v4507, %v2488
      %v4509 = vsub.f32 %v4502, %v4508
      %v4510 = vmul.f32 %v4509, %v4509
      %v4511 = vsel %vm2484, %v4510, 0.0
      %4512 = vadd.xlane.f32.xlu0 %v4511
      %v4513 = vpop.xlane.xlu0 %4512
      %v4514 = vmul.f32 %v4513, %v2488
      %v4515 = vadd.f32 %v4514, 1e-05
      %v4516 = vrsqrt.pop %v4515
      %v4517 = vmul.f32 %v4509, %v4516
      %v4518 = vmul.f32 %v4517, %v4503
      %v4519 = vadd.f32 %v4518, %v4504
      %v4520 = vld [vmem:[%s9] sm:$0xff]
      %v4521 = vld [vmem:[%s9 + $0x8] sm:$0xff]
      %v4522 = vld [vmem:[%s9 + $0x10] sm:$0xff]
      %v4523 = vld [vmem:[%s9 + $0x18] sm:$0xff]
      %v4524 = vld [vmem:[%s9 + $0x20] sm:$0xff]
      %v4525 = vld [vmem:[%s9 + $0x28] sm:$0xff]
      %v4526 = vld [vmem:[%s9 + $0x30] sm:$0xff]
      %v4527 = vld [vmem:[%s9 + $0x38] sm:$0xff]
      %v4528 = vld [vmem:[%s8 + $0x2] sm:$0x1]
      %v4530 = vsel %vm2480, %v4519, 0
      %4532 = vmatprep.subr.mxu0 0.0
      %4533 = vmatpush1.msra.mxu0 %v4520
      %4534 = vmatprep.subr.mxu0 0.0
      %4535 = vmatpush1.msra.mxu0 %v4521
      %4536 = vmatprep.subr.mxu0 0.0
      %4537 = vmatpush1.msra.mxu0 %v4522
      %4538 = vmatprep.subr.mxu0 0.0
      %4539 = vmatpush1.msra.mxu0 %v4523
      %4540 = vmatprep.subr.mxu0 0.0
      %4541 = vmatpush1.msra.mxu0 %v4524
      %4542 = vmatprep.subr.mxu0 0.0
      %4543 = vmatpush1.msra.mxu0 %v4525
      %4544 = vmatprep.subr.mxu0 0.0
      %4545 = vmatpush1.msra.mxu0 %v4526
      %4546 = vmatprep.subr.mxu0 0.0
      %4547 = vmatpush1.msra.mxu0 %v4527
      %4548 = vmatprep.subr.mxu0 0.0
      %4549 = vmatpush1.msra.mxu0 0.0
      %4550 = vmatprep.subr.mxu0 0.0
      %4551 = vmatpush1.msra.mxu0 0.0
      %4552 = vmatprep.subr.mxu0 0.0
      %4553 = vmatpush1.msra.mxu0 0.0
      %4554 = vmatprep.subr.mxu0 0.0
      %4555 = vmatpush1.msra.mxu0 0.0
      %4556 = vmatprep.subr.mxu0 0.0
      %4557 = vmatpush1.msra.mxu0 0.0
      %4558 = vmatprep.subr.mxu0 0.0
      %4559 = vmatpush1.msra.mxu0 0.0
      %4560 = vmatprep.subr.mxu0 0.0
      %4561 = vmatpush1.msra.mxu0 0.0
      %4562 = vmatprep.subr.mxu0 0.0
      %4563 = vmatpush1.msra.mxu0 0.0
      %4564 = vmatprep.subr.mxu0 0.0
      %4565 = vmatpush1.msra.mxu0 0.0
      %4566 = vmatprep.subr.mxu0 0.0
      %4567 = vmatpush1.msra.mxu0 0.0
      %4568 = vmatprep.subr.mxu0 0.0
      %4569 = vmatpush1.msra.mxu0 0.0
      %4570 = vmatprep.subr.mxu0 0.0
      %4571 = vmatpush1.msra.mxu0 0.0
      %4572 = vmatprep.subr.mxu0 0.0
      %4573 = vmatpush1.msra.mxu0 0.0
      %4574 = vmatprep.subr.mxu0 0.0
      %4575 = vmatpush1.msra.mxu0 0.0
      %4576 = vmatprep.subr.mxu0 0.0
      %4577 = vmatpush1.msra.mxu0 0.0
      %4578 = vmatprep.subr.mxu0 0.0
      %4579 = vmatpush1.msra.mxu0 0.0
      %4580 = vmatprep.subr.mxu0 0.0
      %4581 = vmatpush1.msra.mxu0 0.0
      %4582 = vmatprep.subr.mxu0 0.0
      %4583 = vmatpush1.msra.mxu0 0.0
      %4584 = vmatprep.subr.mxu0 0.0
      %4585 = vmatpush1.msra.mxu0 0.0
      %4586 = vmatprep.subr.mxu0 0.0
      %4587 = vmatpush1.msra.mxu0 0.0
      %4588 = vmatprep.subr.mxu0 0.0
      %4589 = vmatpush1.msra.mxu0 0.0
      %4590 = vmatprep.subr.mxu0 0.0
      %4591 = vmatpush1.msra.mxu0 0.0
      %4592 = vmatprep.subr.mxu0 0.0
      %4593 = vmatpush1.msra.mxu0 0.0
      %4594 = vmatprep.subr.mxu0 0.0
      %4595 = vmatpush1.msra.mxu0 0.0
      %4596 = vmatprep.mubr.f32.mxu0 0.0
      %4597 = vmatmul.mubr.f32.gmra.mrb[0].mxu0 %v4530
      %v4598 = vpop.f32.mrb[0].mxu0
      %v4599 = vadd.f32 %v4528, %v4598
      %v4600 = vpop.f32.mrb[0].mxu0
      %4601 = vdwg.mxu0
      %vm4602 = vcmask 0
      %4603 = vst.msk [vmem:[%s355] sm:$0x1] %vm4602, %v4599
      %p4604 = scmp.lt.s32.totalorder %s21, 1
      %s4605 = scalar_select %p4604, %s21, 1
      %s4606 = scalar_lea.vmem %s10, %s4605
      // Predicated region
      $region61: #{reward_model_forward.1} parent=59 // pred_check
        %p4607 = pneg %p254
      $region62: #{reward_model_forward.1} parent=59 // pred_check_branch
        %4609 = sbr.rel (%p4607) target = $region64
      $region63: #{reward_model_forward.1} parent=59 // pred_region
        _
      $region64: #{reward_model_forward.1} parent=59 // pred_fallthru
        _
    $region60: #{reward_model_forward.1} parent=5 // pred_fallthru
      _
    %p4610 = scmp.le.s32.totalorder 2, %s16
    // Predicated region
    $region65: #{reward_model_forward.1} parent=5 // pred_check
      %p4611 = pneg %p4610
    $region66: #{reward_model_forward.1} parent=5 // pred_check_branch
      %4613 = sbr.rel (%p4611) target = $region68
    $region67: #{reward_model_forward.1} parent=5 // pred_region
      %s4614 = ssub.s32 %s16, 2
      // Predicated region
      $region69: #{reward_model_forward.1} parent=67 // pred_check
        %p4615 = pneg %p260
      $region70: #{reward_model_forward.1} parent=67 // pred_check_branch
        %4617 = sbr.rel (%p4615) target = $region72
      $region71: #{reward_model_forward.1} parent=67 // pred_region
        %p4618 = scmp.lt.s32.totalorder %s22, 1
        %s4619 = scalar_select %p4618, %s22, 1
        %s4620 = scalar_lea.vmem %s10, %s4619
      $region72: #{reward_model_forward.1} parent=67 // pred_fallthru
        _
    $region68: #{reward_model_forward.1} parent=5 // pred_fallthru
      _
  $region6: #{reward_model_forward.1} parent=0 // loop_footer
    %s20 = sadd.s32 1, %s16
  $region7: #{reward_model_forward.1} parent=0 // loop_footer_branch
    %15 = sbr.rel target = $region3
  $region8: #{reward_model_forward.1} parent=0 // loop_exit
    _

</llo_original>
